<compile_context>
chip_gen: v7x
topology: tpu7x:2x2x1
jax: 0.10.0
libtpu: 0.0.40
codegen_flags: <defaults>
</compile_context>

<pallas_src>
import functools

import numpy as np
import jax
import jax.numpy as jnp
from jax.experimental import pallas as pl
from jax.experimental.pallas import tpu as pltpu


# Architecture constants (the assumed model_config).
ENC_STAGES = [(8, 2), (16, 2)]   # (channels, num_conv) per encoder depth
DEC_STAGES = [(8, 2)]            # (channels, num_conv) per decoder depth
SIZE_IN = 4
SIZE_OUT = 3
_CH_PAD = 8                      # f32 sublane tile: channel dims padded to this


# =============================================================================
# pltpu.roll direction probe (one tiny eager pallas_call, cached).
# _shift_left(x, k) must satisfy result[:, p] = x[:, (p + k) % n]; if the probe
# fails for any reason we fall back to the known-correct slice+concat roll.
# =============================================================================
_ROLL_MODE = None  # "jnp" (pltpu.roll == jnp.roll) | "neg" | "fallback"


def _detect_roll_mode():
    global _ROLL_MODE
    if _ROLL_MODE is not None:
        return _ROLL_MODE
    try:
        def _probe(x_ref, o_ref):
            o_ref[...] = pltpu.roll(x_ref[...], 3, 1)

        xn = np.arange(8 * 256, dtype=np.float32).reshape(8, 256)
        y = np.asarray(pl.pallas_call(
            _probe, out_shape=jax.ShapeDtypeStruct((8, 256), jnp.float32)
        )(jnp.asarray(xn)))
        if np.array_equal(y, np.roll(xn, 3, axis=1)):
            _ROLL_MODE = "jnp"
        elif np.array_equal(y, np.roll(xn, -3, axis=1)):
            _ROLL_MODE = "neg"
        else:
            _ROLL_MODE = "fallback"
    except Exception:  # noqa: BLE001 - any failure -> safe fallback roll
        _ROLL_MODE = "fallback"
    return _ROLL_MODE


def _shift_left(x, k):
    """result[:, p] = x[:, (p + k) % n] (k static)."""
    n = x.shape[-1]
    k = k % n
    if k == 0:
        return x
    if _ROLL_MODE in ("jnp", "neg") and n % 128 == 0:
        shift = (n - k) if _ROLL_MODE == "jnp" else k
        return pltpu.roll(x, shift, 1)                    # XLU lane rotation
    return jnp.concatenate([x[:, k:], x[:, :k]], axis=1)  # safe fallback


# =============================================================================
# Host-side constants: pool / upsample matrices and per-tap boundary masks.
# =============================================================================
def _pool_matrix(h, w):
    def p1(n):
        m = np.zeros((n, n // 2), np.float32)
        for o in range(n // 2):
            m[2 * o, o] = 0.5
            m[2 * o + 1, o] = 0.5
        return m
    return np.kron(p1(h), p1(w))            # (h*w, h*w // 4)


def _upsample_matrix(h2, w2):
    def u1(n):
        m = np.zeros((n, 2 * n), np.float32)
        for o in range(2 * n):
            src = (o + 0.5) / 2.0 - 0.5     # align_corners=False coordinate map
            i0 = int(np.floor(src))
            frac = src - i0
            lo = min(max(i0, 0), n - 1)
            hi = min(max(i0 + 1, 0), n - 1)
            m[lo, o] += 1.0 - frac
            m[hi, o] += frac
        return m
    return np.kron(u1(h2), u1(w2))          # (h2*w2, 4*h2*w2)


def _tap_masks(h, w, reps):
    """(9, reps*h*w) f32 validity mask of each 3x3 tap, tiled per image."""
    hw = h * w
    p = np.arange(hw)
    row, col = p // w, p % w
    rows = []
    for dy in (-1, 0, 1):
        for dx in (-1, 0, 1):
            rows.append(((row + dy >= 0) & (row + dy < h) &
                         (col + dx >= 0) & (col + dx < w)).astype(np.float32))
    return np.tile(np.stack(rows, axis=0), (1, reps))


# =============================================================================
# Fused UNet kernel: B_TILE images per grid step, everything in VMEM.
# =============================================================================
def _unet_kernel(x_ref, *refs, H, W, b_tile, stage_convs, apply_final_act):
    o_ref = refs[-1]
    mf_ref, mh_ref, pool_ref, up_ref = refs[-5], refs[-4], refs[-3], refs[-2]
    w_refs = list(refs[:-5])
    n_e0, n_e1, n_d0 = stage_convs

    HW = H * W
    H2, W2 = H // 2, W // 2
    HW4 = H2 * W2
    n_full = b_tile * HW
    n_half = b_tile * HW4

    # Batched lane layout: images concatenated along the flattened-spatial axis.
    x = jnp.concatenate([x_ref[b] for b in range(b_tile)], axis=-1)  # (Cpad, n_full)

    # Hoisted constants: mask rows and folded-bias "ones" rows (built once).
    masks_full = [mf_ref[i:i + 1, :] for i in range(9)]
    masks_half = [mh_ref[i:i + 1, :] for i in range(9)]
    ones_full = jnp.ones((1, n_full), jnp.float32)
    ones_half = jnp.ones((1, n_half), jnp.float32)

    def conv3x3(v, w_ref, img_w, masks, ones_row, relu=True):
        """3x3 same conv + bias (+ReLU) as one bf16 MXU matmul (bias folded)."""
        taps = []
        i = 0
        for dy in (-1, 0, 1):
            for dx in (-1, 0, 1):
                k = dy * img_w + dx
                if k == 0:
                    taps.append(v)
                else:
                    taps.append(_shift_left(v, k) * masks[i])
                i += 1
        patch = jnp.concatenate(taps + [ones_row], axis=0).astype(jnp.bfloat16)
        acc = jnp.dot(w_ref[...], patch, preferred_element_type=jnp.float32)
        return jnp.maximum(acc, 0.0) if relu else acc

    idx = 0

    # --- encoder stage, depth 0 ---
    for _ in range(n_e0):
        x = conv3x3(x, w_refs[idx], W, masks_full, ones_full)
        idx += 1
    skip = x                                                   # (C0, n_full)

    # --- avg_pool2d(2): per-image constant matmul on flattened spatial axis ---
    xb = skip.astype(jnp.bfloat16)
    y = jnp.concatenate(
        [jnp.dot(xb[:, b * HW:(b + 1) * HW], pool_ref[...],
                 preferred_element_type=jnp.float32) for b in range(b_tile)],
        axis=-1)                                               # (C0, n_half)

    # --- encoder stage, depth 1 (deepest; no decoder below it) ---
    for _ in range(n_e1):
        y = conv3x3(y, w_refs[idx], W2, masks_half, ones_half)
        idx += 1

    # --- bilinear x2 upsample (align_corners=False): per-image matmul ---
    yb = y.astype(jnp.bfloat16)
    y = jnp.concatenate(
        [jnp.dot(yb[:, b * HW4:(b + 1) * HW4], up_ref[...],
                 preferred_element_type=jnp.float32) for b in range(b_tile)],
        axis=-1)                                               # (C1, n_full)

    # --- skip concat (channel axis = sublanes) + decoder stage, depth 0 ---
    d = jnp.concatenate([skip, y], axis=0)                     # (C0+C1, n_full)
    for _ in range(n_d0):
        d = conv3x3(d, w_refs[idx], W, masks_full, ones_full)
        idx += 1

    # --- final 1x1 conv (bias folded, Cout padded to 8) ---
    patch = jnp.concatenate([d, ones_full], axis=0).astype(jnp.bfloat16)
    out = jnp.dot(w_refs[idx][...], patch, preferred_element_type=jnp.float32)
    if apply_final_act:
        out = jnp.maximum(out, 0.0)

    # Per-image unmasked (8, HW) stores (lane offsets are multiples of HW).
    for b in range(b_tile):
        o_ref[b] = out[:, b * HW:(b + 1) * HW].astype(o_ref.dtype)


# =============================================================================
# Parameters: raw (k,k,Cin,Cout)/(Cout,) conv weights + packed kernel form.
# =============================================================================
def _he_conv(key, k, cin, cout):
    kw, kb = jax.random.split(key)
    fan_in = k * k * cin
    w = jax.random.normal(kw, (k, k, cin, cout), jnp.float32) * (2.0 / fan_in) ** 0.5
    bound = 1.0 / fan_in ** 0.5
    b = jax.random.uniform(kb, (cout,), jnp.float32, minval=-bound, maxval=bound)
    return w, b


def _pack_conv(w, b, cin_pad, cout_pad):
    """(k,k,cin,cout)+(cout,) -> (cout_pad, k*k*cin_pad + 1) bf16, bias folded."""
    k = w.shape[0]
    cin, cout = w.shape[2], w.shape[3]
    w = jnp.pad(w, ((0, 0), (0, 0), (0, cin_pad - cin), (0, 0)))
    wp = jnp.transpose(w, (3, 0, 1, 2)).reshape(cout, k * k * cin_pad)
    wp = jnp.concatenate([wp, b.reshape(cout, 1).astype(jnp.float32)], axis=1)
    wp = jnp.pad(wp, ((0, cout_pad - cout), (0, 0)))
    return wp.astype(jnp.bfloat16)


def init_params(seed):
    enc0_ch, enc0_nc = ENC_STAGES[0]
    enc1_ch, enc1_nc = ENC_STAGES[1]
    dec0_ch, dec0_nc = DEC_STAGES[0]
    key = jax.random.PRNGKey(seed)
    keys = list(jax.random.split(key, enc0_nc + enc1_nc + dec0_nc + 1))

    raw = []

    def stage(cin, cout, n):
        c = cin
        for _ in range(n):
            raw.append(_he_conv(keys.pop(0), 3, c, cout))
            c = cout

    stage(SIZE_IN, enc0_ch, enc0_nc)                 # encoder depth 0
    stage(enc0_ch, enc1_ch, enc1_nc)                 # encoder depth 1 (deepest)
    stage(enc0_ch + enc1_ch, dec0_ch, dec0_nc)       # decoder depth 0
    # final 1x1 conv: xavier_uniform weight, zero bias (as in UNet.__init__)
    limit = (6.0 / (dec0_ch + SIZE_OUT)) ** 0.5
    wf = jax.random.uniform(keys.pop(0), (1, 1, dec0_ch, SIZE_OUT), jnp.float32,
                            minval=-limit, maxval=limit)
    raw.append((wf, jnp.zeros((SIZE_OUT,), jnp.float32)))

    packed = []
    for i, (wi, bi) in enumerate(raw):
        cin, cout = wi.shape[2], wi.shape[3]
        cin_pad = -(-cin // _CH_PAD) * _CH_PAD
        cout_pad = -(-cout // _CH_PAD) * _CH_PAD if i == len(raw) - 1 else cout
        packed.append(_pack_conv(wi, bi, cin_pad, cout_pad))
    return {"convs": packed}, raw


# =============================================================================
# Wrapper: one pallas_call for the whole forward pass.
# =============================================================================
def unet_forward(x_nchw, params, apply_final_act=False):
    _detect_roll_mode()                     # eager, cached, safe fallback
    return _forward_impl(x_nchw, params, apply_final_act)


@functools.partial(jax.jit, static_argnames=("apply_final_act",))
def _forward_impl(x_nchw, params, apply_final_act):
    """x_nchw: (N, SIZE_IN, H, W) f32 -> (N, SIZE_OUT, H, W) f32."""
    N, cin, H, W = x_nchw.shape
    assert cin == SIZE_IN
    assert H % 2 == 0 and W % 2 == 0, "spatial dims must be even"
    HW = H * W
    HW4 = HW // 4
    # Dense pool/upsample matrices are O(HW^2); guard VMEM.
    # TODO(synk): separable per-axis pool/upsample for large H, W.
    assert 2 * HW * HW4 * 2 <= (8 << 20), "switch pool/upsample to separable form"

    # v7x has 2 TensorCores: keep 2 parallel grid steps when the batch is even;
    # otherwise a single step with the whole batch packed on the lane axis.
    num_steps = 2 if (N % 2 == 0 and N >= 2) else 1
    b_tile = N // num_steps

    cin_pad = -(-cin // _CH_PAD) * _CH_PAD
    x_flat = x_nchw.reshape(N, cin, HW).astype(jnp.float32)
    if cin_pad != cin:
        x_flat = jnp.pad(x_flat, ((0, 0), (0, cin_pad - cin), (0, 0)))

    convs = params["convs"]
    cout_pad = convs[-1].shape[0]

    masks_full = jnp.asarray(_tap_masks(H, W, b_tile), jnp.float32)
    masks_half = jnp.asarray(_tap_masks(H // 2, W // 2, b_tile), jnp.float32)
    pool_m = jnp.asarray(_pool_matrix(H, W), jnp.bfloat16)
    up_m = jnp.asarray(_upsample_matrix(H // 2, W // 2), jnp.bfloat16)

    inputs = [x_flat]
    in_specs = [pl.BlockSpec((b_tile, cin_pad, HW), lambda n: (n, 0, 0))]
    for wp in convs:
        inputs.append(wp)
        in_specs.append(pl.BlockSpec(wp.shape, lambda n: (0, 0)))
    for cst in (masks_full, masks_half, pool_m, up_m):
        inputs.append(cst)
        in_specs.append(pl.BlockSpec(cst.shape, lambda n: (0, 0)))

    stage_convs = (ENC_STAGES[0][1], ENC_STAGES[1][1], DEC_STAGES[0][1])
    kernel = functools.partial(_unet_kernel, H=H, W=W, b_tile=b_tile,
                               stage_convs=stage_convs,
                               apply_final_act=apply_final_act)

    out = pl.pallas_call(
        kernel,
        out_shape=jax.ShapeDtypeStruct((N, cout_pad, HW), jnp.float32),
        grid=(num_steps,),
        in_specs=in_specs,
        out_specs=pl.BlockSpec((b_tile, cout_pad, HW), lambda n: (n, 0, 0)),
        compiler_params=pltpu.CompilerParams(
            dimension_semantics=("parallel",)),      # v7x: 2 steps -> 2 TCs
    )(*inputs)
    return out[:, :SIZE_OUT, :].reshape(N, SIZE_OUT, H, W)


# =============================================================================
# Pure-JAX (XLA) reference for a structural correctness check.
# =============================================================================
def _ref_up_axis(a, axis):
    # F.interpolate(scale_factor=2, mode='bilinear', align_corners=False), 1 axis
    n = a.shape[axis]
    prev = jnp.concatenate([jax.lax.slice_in_dim(a, 0, 1, axis=axis),
                            jax.lax.slice_in_dim(a, 0, n - 1, axis=axis)], axis=axis)
    nxt = jnp.concatenate([jax.lax.slice_in_dim(a, 1, n, axis=axis),
                           jax.lax.slice_in_dim(a, n - 1, n, axis=axis)], axis=axis)
    even = 0.75 * a + 0.25 * prev
    odd = 0.75 * a + 0.25 * nxt
    stacked = jnp.stack([even, odd], axis=axis + 1)
    shp = list(a.shape)
    shp[axis] = 2 * n
    return stacked.reshape(shp)


def reference_forward(x, raw, apply_final_act=False):
    enc0_nc = ENC_STAGES[0][1]
    enc1_nc = ENC_STAGES[1][1]
    dec0_nc = DEC_STAGES[0][1]
    idx = [0]

    def conv(v, relu=True):
        w, b = raw[idx[0]]
        idx[0] += 1
        out = jax.lax.conv_general_dilated(
            v, w, (1, 1), "SAME",
            dimension_numbers=("NCHW", "HWIO", "NCHW"))
        out = out + b.reshape(1, -1, 1, 1)
        return jnp.maximum(out, 0.0) if relu else out

    x0 = x
    for _ in range(enc0_nc):
        x0 = conv(x0)
    n, c, h, w = x0.shape
    y = x0.reshape(n, c, h // 2, 2, w // 2, 2).mean(axis=(3, 5))
    for _ in range(enc1_nc):
        y = conv(y)
    y = _ref_up_axis(_ref_up_axis(y, 2), 3)
    d = jnp.concatenate([x0, y], axis=1)
    for _ in range(dec0_nc):
        d = conv(d)
    return conv(d, relu=apply_final_act)


if __name__ == "__main__":
    H = W = 16
    N = 4   # even batch -> 2 parallel grid steps, 2 images per step in lanes
    x = jax.random.normal(jax.random.PRNGKey(0), (N, SIZE_IN, H, W), jnp.float32)
    params, raw = init_params(0)

    out = jax.block_until_ready(unet_forward(x, params))
    assert out.shape == (N, SIZE_OUT, H, W), out.shape
    assert bool(jnp.all(jnp.isfinite(out)))

    # Structural check against a pure-XLA reference (bf16 MXU operands in the
    # Pallas kernel -> small numerical difference, compared in norm).
    ref = reference_forward(x, raw)
    rel = float(jnp.linalg.norm(out - ref) / (jnp.linalg.norm(ref) + 1e-8))
    assert rel < 5e-2, f"relative error vs JAX reference too high: {rel}"

    print("KERNEL_OK")
</pallas_src>

<mosaic_0001>
module attributes {stable_mosaic.version = 11 : i64} {
  func.func @_probe(%arg0: memref<8x256xf32, #tpu.memory_space<vmem>>, %arg1: memref<8x256xf32, #tpu.memory_space<vmem>>) attributes {dimension_semantics = [], scalar_prefetch = 0 : i64, scratch_operands = 0 : i64, tpu.core_type = #tpu.core_type<tc>} {
    %c0 = arith.constant 0 : index
    %c0_0 = arith.constant 0 : index
    %0 = vector.load %arg0[%c0, %c0_0] : memref<8x256xf32, #tpu.memory_space<vmem>>, vector<8x256xf32>
    %c3_i32 = arith.constant 3 : i32
    %1 = tpu.dynamic_rotate %0 by %c3_i32 dim 1 : vector<8x256xf32>, i32 -> vector<8x256xf32>
    %c0_1 = arith.constant 0 : index
    %c0_2 = arith.constant 0 : index
    %2 = vector.load %arg1[%c0_1, %c0_2] : memref<8x256xf32, #tpu.memory_space<vmem>>, vector<8x256xf32>
    tpu.vector_store %arg1[%c0_1, %c0_2], %1 {strides = array<i32>} : memref<8x256xf32, #tpu.memory_space<vmem>>, vector<8x256xf32>,
    return
  }
}

module attributes {stable_mosaic.version = 11 : i64} {
  func.func @_unet_kernel(%arg0: i32, %arg1: memref<2x8x256xf32, #tpu.memory_space<vmem>>, %arg2: memref<8x73xbf16, #tpu.memory_space<vmem>>, %arg3: memref<8x73xbf16, #tpu.memory_space<vmem>>, %arg4: memref<16x73xbf16, #tpu.memory_space<vmem>>, %arg5: memref<16x145xbf16, #tpu.memory_space<vmem>>, %arg6: memref<8x217xbf16, #tpu.memory_space<vmem>>, %arg7: memref<8x73xbf16, #tpu.memory_space<vmem>>, %arg8: memref<8x9xbf16, #tpu.memory_space<vmem>>, %arg9: memref<9x512xf32, #tpu.memory_space<vmem>>, %arg10: memref<9x128xf32, #tpu.memory_space<vmem>>, %arg11: memref<256x64xbf16, #tpu.memory_space<vmem>>, %arg12: memref<64x256xbf16, #tpu.memory_space<vmem>>, %arg13: memref<2x8x256xf32, #tpu.memory_space<vmem>>) attributes {dimension_semantics = [#tpu.dimension_semantics<parallel>], iteration_bounds = array<i64: 2>, scalar_prefetch = 0 : i64, scratch_operands = 0 : i64, tpu.core_type = #tpu.core_type<tc>, window_params = [{transform_indices = @transform_0, window_bounds = array<i64: 2, 8, 256>}, {pipeline_mode = #tpu.pipeline_mode<synchronous>, transform_indices = @transform_1, window_bounds = array<i64: 8, 73>}, {pipeline_mode = #tpu.pipeline_mode<synchronous>, transform_indices = @transform_2, window_bounds = array<i64: 8, 73>}, {pipeline_mode = #tpu.pipeline_mode<synchronous>, transform_indices = @transform_3, window_bounds = array<i64: 16, 73>}, {pipeline_mode = #tpu.pipeline_mode<synchronous>, transform_indices = @transform_4, window_bounds = array<i64: 16, 145>}, {pipeline_mode = #tpu.pipeline_mode<synchronous>, transform_indices = @transform_5, window_bounds = array<i64: 8, 217>}, {pipeline_mode = #tpu.pipeline_mode<synchronous>, transform_indices = @transform_6, window_bounds = array<i64: 8, 73>}, {pipeline_mode = #tpu.pipeline_mode<synchronous>, transform_indices = @transform_7, window_bounds = array<i64: 8, 9>}, {pipeline_mode = #tpu.pipeline_mode<synchronous>, transform_indices = @transform_8, window_bounds = array<i64: 9, 512>}, {pipeline_mode = #tpu.pipeline_mode<synchronous>, transform_indices = @transform_9, window_bounds = array<i64: 9, 128>}, {pipeline_mode = #tpu.pipeline_mode<synchronous>, transform_indices = @transform_10, window_bounds = array<i64: 256, 64>}, {pipeline_mode = #tpu.pipeline_mode<synchronous>, transform_indices = @transform_11, window_bounds = array<i64: 64, 256>}, {transform_indices = @transform_12, window_bounds = array<i64: 2, 8, 256>}]} {
    %c0 = arith.constant 0 : index
    %c0_0 = arith.constant 0 : index
    %c0_1 = arith.constant 0 : index
    %0 = vector.load %arg1[%c0, %c0_0, %c0_1] : memref<2x8x256xf32, #tpu.memory_space<vmem>>, vector<1x8x256xf32>
    %1 = vector.shape_cast %0 : vector<1x8x256xf32> to vector<8x256xf32>
    %c1 = arith.constant 1 : index
    %c0_2 = arith.constant 0 : index
    %c0_3 = arith.constant 0 : index
    %2 = vector.load %arg1[%c1, %c0_2, %c0_3] : memref<2x8x256xf32, #tpu.memory_space<vmem>>, vector<1x8x256xf32>
    %3 = vector.shape_cast %2 : vector<1x8x256xf32> to vector<8x256xf32>
    %4 = tpu.concatenate %1, %3 in 1 : vector<8x256xf32>, vector<8x256xf32> -> vector<8x512xf32>
    %c0_4 = arith.constant 0 : index
    %c0_5 = arith.constant 0 : index
    %5 = vector.load %arg9[%c0_4, %c0_5] : memref<9x512xf32, #tpu.memory_space<vmem>>, vector<1x512xf32>
    %c1_6 = arith.constant 1 : index
    %c0_7 = arith.constant 0 : index
    %6 = vector.load %arg9[%c1_6, %c0_7] : memref<9x512xf32, #tpu.memory_space<vmem>>, vector<1x512xf32>
    %c2 = arith.constant 2 : index
    %c0_8 = arith.constant 0 : index
    %7 = vector.load %arg9[%c2, %c0_8] : memref<9x512xf32, #tpu.memory_space<vmem>>, vector<1x512xf32>
    %c3 = arith.constant 3 : index
    %c0_9 = arith.constant 0 : index
    %8 = vector.load %arg9[%c3, %c0_9] : memref<9x512xf32, #tpu.memory_space<vmem>>, vector<1x512xf32>
    %c5 = arith.constant 5 : index
    %c0_10 = arith.constant 0 : index
    %9 = vector.load %arg9[%c5, %c0_10] : memref<9x512xf32, #tpu.memory_space<vmem>>, vector<1x512xf32>
    %c6 = arith.constant 6 : index
    %c0_11 = arith.constant 0 : index
    %10 = vector.load %arg9[%c6, %c0_11] : memref<9x512xf32, #tpu.memory_space<vmem>>, vector<1x512xf32>
    %c7 = arith.constant 7 : index
    %c0_12 = arith.constant 0 : index
    %11 = vector.load %arg9[%c7, %c0_12] : memref<9x512xf32, #tpu.memory_space<vmem>>, vector<1x512xf32>
    %c8 = arith.constant 8 : index
    %c0_13 = arith.constant 0 : index
    %12 = vector.load %arg9[%c8, %c0_13] : memref<9x512xf32, #tpu.memory_space<vmem>>, vector<1x512xf32>
    %c0_14 = arith.constant 0 : index
    %c0_15 = arith.constant 0 : index
    %13 = vector.load %arg10[%c0_14, %c0_15] : memref<9x128xf32, #tpu.memory_space<vmem>>, vector<1x128xf32>
    %c1_16 = arith.constant 1 : index
    %c0_17 = arith.constant 0 : index
    %14 = vector.load %arg10[%c1_16, %c0_17] : memref<9x128xf32, #tpu.memory_space<vmem>>, vector<1x128xf32>
    %c2_18 = arith.constant 2 : index
    %c0_19 = arith.constant 0 : index
    %15 = vector.load %arg10[%c2_18, %c0_19] : memref<9x128xf32, #tpu.memory_space<vmem>>, vector<1x128xf32>
    %c3_20 = arith.constant 3 : index
    %c0_21 = arith.constant 0 : index
    %16 = vector.load %arg10[%c3_20, %c0_21] : memref<9x128xf32, #tpu.memory_space<vmem>>, vector<1x128xf32>
    %c5_22 = arith.constant 5 : index
    %c0_23 = arith.constant 0 : index
    %17 = vector.load %arg10[%c5_22, %c0_23] : memref<9x128xf32, #tpu.memory_space<vmem>>, vector<1x128xf32>
    %c6_24 = arith.constant 6 : index
    %c0_25 = arith.constant 0 : index
    %18 = vector.load %arg10[%c6_24, %c0_25] : memref<9x128xf32, #tpu.memory_space<vmem>>, vector<1x128xf32>
    %c7_26 = arith.constant 7 : index
    %c0_27 = arith.constant 0 : index
    %19 = vector.load %arg10[%c7_26, %c0_27] : memref<9x128xf32, #tpu.memory_space<vmem>>, vector<1x128xf32>
    %c8_28 = arith.constant 8 : index
    %c0_29 = arith.constant 0 : index
    %20 = vector.load %arg10[%c8_28, %c0_29] : memref<9x128xf32, #tpu.memory_space<vmem>>, vector<1x128xf32>
    %cst = arith.constant 1.000000e+00 : f32
    %21 = vector.broadcast %cst : f32 to vector<1x512xf32>
    %cst_30 = arith.constant 1.000000e+00 : f32
    %22 = vector.broadcast %cst_30 : f32 to vector<1x128xf32>
    %23 = vector.extract_strided_slice %4 {offsets = [0, 495], sizes = [8, 17], strides = [1, 1]} : vector<8x512xf32> to vector<8x17xf32>
    %24 = vector.extract_strided_slice %4 {offsets = [0, 0], sizes = [8, 495], strides = [1, 1]} : vector<8x512xf32> to vector<8x495xf32>
    %25 = tpu.concatenate %23, %24 in 1 : vector<8x17xf32>, vector<8x495xf32> -> vector<8x512xf32>
    %26 = vector.broadcast %5 : vector<1x512xf32> to vector<8x512xf32>
    %27 = arith.mulf %25, %26 : vector<8x512xf32>
    %28 = vector.extract_strided_slice %4 {offsets = [0, 496], sizes = [8, 16], strides = [1, 1]} : vector<8x512xf32> to vector<8x16xf32>
    %29 = vector.extract_strided_slice %4 {offsets = [0, 0], sizes = [8, 496], strides = [1, 1]} : vector<8x512xf32> to vector<8x496xf32>
    %30 = tpu.concatenate %28, %29 in 1 : vector<8x16xf32>, vector<8x496xf32> -> vector<8x512xf32>
    %31 = vector.broadcast %6 : vector<1x512xf32> to vector<8x512xf32>
    %32 = arith.mulf %30, %31 : vector<8x512xf32>
    %33 = vector.extract_strided_slice %4 {offsets = [0, 497], sizes = [8, 15], strides = [1, 1]} : vector<8x512xf32> to vector<8x15xf32>
    %34 = vector.extract_strided_slice %4 {offsets = [0, 0], sizes = [8, 497], strides = [1, 1]} : vector<8x512xf32> to vector<8x497xf32>
    %35 = tpu.concatenate %33, %34 in 1 : vector<8x15xf32>, vector<8x497xf32> -> vector<8x512xf32>
    %36 = vector.broadcast %7 : vector<1x512xf32> to vector<8x512xf32>
    %37 = arith.mulf %35, %36 : vector<8x512xf32>
    %38 = vector.extract_strided_slice %4 {offsets = [0, 511], sizes = [8, 1], strides = [1, 1]} : vector<8x512xf32> to vector<8x1xf32>
    %39 = vector.extract_strided_slice %4 {offsets = [0, 0], sizes = [8, 511], strides = [1, 1]} : vector<8x512xf32> to vector<8x511xf32>
    %40 = tpu.concatenate %38, %39 in 1 : vector<8x1xf32>, vector<8x511xf32> -> vector<8x512xf32>
    %41 = vector.broadcast %8 : vector<1x512xf32> to vector<8x512xf32>
    %42 = arith.mulf %40, %41 : vector<8x512xf32>
    %43 = vector.extract_strided_slice %4 {offsets = [0, 1], sizes = [8, 511], strides = [1, 1]} : vector<8x512xf32> to vector<8x511xf32>
    %44 = vector.extract_strided_slice %4 {offsets = [0, 0], sizes = [8, 1], strides = [1, 1]} : vector<8x512xf32> to vector<8x1xf32>
    %45 = tpu.concatenate %43, %44 in 1 : vector<8x511xf32>, vector<8x1xf32> -> vector<8x512xf32>
    %46 = vector.broadcast %9 : vector<1x512xf32> to vector<8x512xf32>
    %47 = arith.mulf %45, %46 : vector<8x512xf32>
    %48 = vector.extract_strided_slice %4 {offsets = [0, 15], sizes = [8, 497], strides = [1, 1]} : vector<8x512xf32> to vector<8x497xf32>
    %49 = vector.extract_strided_slice %4 {offsets = [0, 0], sizes = [8, 15], strides = [1, 1]} : vector<8x512xf32> to vector<8x15xf32>
    %50 = tpu.concatenate %48, %49 in 1 : vector<8x497xf32>, vector<8x15xf32> -> vector<8x512xf32>
    %51 = vector.broadcast %10 : vector<1x512xf32> to vector<8x512xf32>
    %52 = arith.mulf %50, %51 : vector<8x512xf32>
    %53 = vector.extract_strided_slice %4 {offsets = [0, 16], sizes = [8, 496], strides = [1, 1]} : vector<8x512xf32> to vector<8x496xf32>
    %54 = vector.extract_strided_slice %4 {offsets = [0, 0], sizes = [8, 16], strides = [1, 1]} : vector<8x512xf32> to vector<8x16xf32>
    %55 = tpu.concatenate %53, %54 in 1 : vector<8x496xf32>, vector<8x16xf32> -> vector<8x512xf32>
    %56 = vector.broadcast %11 : vector<1x512xf32> to vector<8x512xf32>
    %57 = arith.mulf %55, %56 : vector<8x512xf32>
    %58 = vector.extract_strided_slice %4 {offsets = [0, 17], sizes = [8, 495], strides = [1, 1]} : vector<8x512xf32> to vector<8x495xf32>
    %59 = vector.extract_strided_slice %4 {offsets = [0, 0], sizes = [8, 17], strides = [1, 1]} : vector<8x512xf32> to vector<8x17xf32>
    %60 = tpu.concatenate %58, %59 in 1 : vector<8x495xf32>, vector<8x17xf32> -> vector<8x512xf32>
    %61 = vector.broadcast %12 : vector<1x512xf32> to vector<8x512xf32>
    %62 = arith.mulf %60, %61 : vector<8x512xf32>
    %63 = tpu.concatenate %27, %32, %37, %42, %4, %47, %52, %57, %62, %21 in 0 : vector<8x512xf32>, vector<8x512xf32>, vector<8x512xf32>, vector<8x512xf32>, vector<8x512xf32>, vector<8x512xf32>, vector<8x512xf32>, vector<8x512xf32>, vector<8x512xf32>, vector<1x512xf32> -> vector<73x512xf32>
    %64 = arith.truncf %63 : vector<73x512xf32> to vector<73x512xbf16>
    %c0_31 = arith.constant 0 : index
    %c0_32 = arith.constant 0 : index
    %65 = vector.load %arg2[%c0_31, %c0_32] : memref<8x73xbf16, #tpu.memory_space<vmem>>, vector<8x73xbf16>
    %cst_33 = arith.constant dense<0.000000e+00> : vector<8x512xf32>
    %66 = tpu.matmul %65, %64, %cst_33 {dimension_numbers = #tpu.dot_dimension_numbers<[1], [0], [0], [1], [0, 0, 1, 1], [], []>} : vector<8x73xbf16>, vector<73x512xbf16>, vector<8x512xf32> -> vector<8x512xf32>
    %cst_34 = arith.constant 0.000000e+00 : f32
    %67 = vector.broadcast %cst_34 : f32 to vector<8x512xf32>
    %68 = arith.maximumf %66, %67 : vector<8x512xf32>
    %69 = vector.extract_strided_slice %68 {offsets = [0, 495], sizes = [8, 17], strides = [1, 1]} : vector<8x512xf32> to vector<8x17xf32>
    %70 = vector.extract_strided_slice %68 {offsets = [0, 0], sizes = [8, 495], strides = [1, 1]} : vector<8x512xf32> to vector<8x495xf32>
    %71 = tpu.concatenate %69, %70 in 1 : vector<8x17xf32>, vector<8x495xf32> -> vector<8x512xf32>
    %72 = vector.broadcast %5 : vector<1x512xf32> to vector<8x512xf32>
    %73 = arith.mulf %71, %72 : vector<8x512xf32>
    %74 = vector.extract_strided_slice %68 {offsets = [0, 496], sizes = [8, 16], strides = [1, 1]} : vector<8x512xf32> to vector<8x16xf32>
    %75 = vector.extract_strided_slice %68 {offsets = [0, 0], sizes = [8, 496], strides = [1, 1]} : vector<8x512xf32> to vector<8x496xf32>
    %76 = tpu.concatenate %74, %75 in 1 : vector<8x16xf32>, vector<8x496xf32> -> vector<8x512xf32>
    %77 = vector.broadcast %6 : vector<1x512xf32> to vector<8x512xf32>
    %78 = arith.mulf %76, %77 : vector<8x512xf32>
    %79 = vector.extract_strided_slice %68 {offsets = [0, 497], sizes = [8, 15], strides = [1, 1]} : vector<8x512xf32> to vector<8x15xf32>
    %80 = vector.extract_strided_slice %68 {offsets = [0, 0], sizes = [8, 497], strides = [1, 1]} : vector<8x512xf32> to vector<8x497xf32>
    %81 = tpu.concatenate %79, %80 in 1 : vector<8x15xf32>, vector<8x497xf32> -> vector<8x512xf32>
    %82 = vector.broadcast %7 : vector<1x512xf32> to vector<8x512xf32>
    %83 = arith.mulf %81, %82 : vector<8x512xf32>
    %84 = vector.extract_strided_slice %68 {offsets = [0, 511], sizes = [8, 1], strides = [1, 1]} : vector<8x512xf32> to vector<8x1xf32>
    %85 = vector.extract_strided_slice %68 {offsets = [0, 0], sizes = [8, 511], strides = [1, 1]} : vector<8x512xf32> to vector<8x511xf32>
    %86 = tpu.concatenate %84, %85 in 1 : vector<8x1xf32>, vector<8x511xf32> -> vector<8x512xf32>
    %87 = vector.broadcast %8 : vector<1x512xf32> to vector<8x512xf32>
    %88 = arith.mulf %86, %87 : vector<8x512xf32>
    %89 = vector.extract_strided_slice %68 {offsets = [0, 1], sizes = [8, 511], strides = [1, 1]} : vector<8x512xf32> to vector<8x511xf32>
    %90 = vector.extract_strided_slice %68 {offsets = [0, 0], sizes = [8, 1], strides = [1, 1]} : vector<8x512xf32> to vector<8x1xf32>
    %91 = tpu.concatenate %89, %90 in 1 : vector<8x511xf32>, vector<8x1xf32> -> vector<8x512xf32>
    %92 = vector.broadcast %9 : vector<1x512xf32> to vector<8x512xf32>
    %93 = arith.mulf %91, %92 : vector<8x512xf32>
    %94 = vector.extract_strided_slice %68 {offsets = [0, 15], sizes = [8, 497], strides = [1, 1]} : vector<8x512xf32> to vector<8x497xf32>
    %95 = vector.extract_strided_slice %68 {offsets = [0, 0], sizes = [8, 15], strides = [1, 1]} : vector<8x512xf32> to vector<8x15xf32>
    %96 = tpu.concatenate %94, %95 in 1 : vector<8x497xf32>, vector<8x15xf32> -> vector<8x512xf32>
    %97 = vector.broadcast %10 : vector<1x512xf32> to vector<8x512xf32>
    %98 = arith.mulf %96, %97 : vector<8x512xf32>
    %99 = vector.extract_strided_slice %68 {offsets = [0, 16], sizes = [8, 496], strides = [1, 1]} : vector<8x512xf32> to vector<8x496xf32>
    %100 = vector.extract_strided_slice %68 {offsets = [0, 0], sizes = [8, 16], strides = [1, 1]} : vector<8x512xf32> to vector<8x16xf32>
    %101 = tpu.concatenate %99, %100 in 1 : vector<8x496xf32>, vector<8x16xf32> -> vector<8x512xf32>
    %102 = vector.broadcast %11 : vector<1x512xf32> to vector<8x512xf32>
    %103 = arith.mulf %101, %102 : vector<8x512xf32>
    %104 = vector.extract_strided_slice %68 {offsets = [0, 17], sizes = [8, 495], strides = [1, 1]} : vector<8x512xf32> to vector<8x495xf32>
    %105 = vector.extract_strided_slice %68 {offsets = [0, 0], sizes = [8, 17], strides = [1, 1]} : vector<8x512xf32> to vector<8x17xf32>
    %106 = tpu.concatenate %104, %105 in 1 : vector<8x495xf32>, vector<8x17xf32> -> vector<8x512xf32>
    %107 = vector.broadcast %12 : vector<1x512xf32> to vector<8x512xf32>
    %108 = arith.mulf %106, %107 : vector<8x512xf32>
    %109 = tpu.concatenate %73, %78, %83, %88, %68, %93, %98, %103, %108, %21 in 0 : vector<8x512xf32>, vector<8x512xf32>, vector<8x512xf32>, vector<8x512xf32>, vector<8x512xf32>, vector<8x512xf32>, vector<8x512xf32>, vector<8x512xf32>, vector<8x512xf32>, vector<1x512xf32> -> vector<73x512xf32>
    %110 = arith.truncf %109 : vector<73x512xf32> to vector<73x512xbf16>
    %c0_35 = arith.constant 0 : index
    %c0_36 = arith.constant 0 : index
    %111 = vector.load %arg3[%c0_35, %c0_36] : memref<8x73xbf16, #tpu.memory_space<vmem>>, vector<8x73xbf16>
    %cst_37 = arith.constant dense<0.000000e+00> : vector<8x512xf32>
    %112 = tpu.matmul %111, %110, %cst_37 {dimension_numbers = #tpu.dot_dimension_numbers<[1], [0], [0], [1], [0, 0, 1, 1], [], []>} : vector<8x73xbf16>, vector<73x512xbf16>, vector<8x512xf32> -> vector<8x512xf32>
    %cst_38 = arith.constant 0.000000e+00 : f32
    %113 = vector.broadcast %cst_38 : f32 to vector<8x512xf32>
    %114 = arith.maximumf %112, %113 : vector<8x512xf32>
    %115 = arith.truncf %114 : vector<8x512xf32> to vector<8x512xbf16>
    %116 = vector.extract_strided_slice %115 {offsets = [0, 0], sizes = [8, 256], strides = [1, 1]} : vector<8x512xbf16> to vector<8x256xbf16>
    %c0_39 = arith.constant 0 : index
    %c0_40 = arith.constant 0 : index
    %117 = vector.load %arg11[%c0_39, %c0_40] : memref<256x64xbf16, #tpu.memory_space<vmem>>, vector<256x64xbf16>
    %cst_41 = arith.constant dense<0.000000e+00> : vector<8x64xf32>
    %118 = tpu.matmul %116, %117, %cst_41 {dimension_numbers = #tpu.dot_dimension_numbers<[1], [0], [0], [1], [0, 0, 1, 1], [], []>} : vector<8x256xbf16>, vector<256x64xbf16>, vector<8x64xf32> -> vector<8x64xf32>
    %119 = vector.extract_strided_slice %115 {offsets = [0, 256], sizes = [8, 256], strides = [1, 1]} : vector<8x512xbf16> to vector<8x256xbf16>
    %c0_42 = arith.constant 0 : index
    %c0_43 = arith.constant 0 : index
    %120 = vector.load %arg11[%c0_42, %c0_43] : memref<256x64xbf16, #tpu.memory_space<vmem>>, vector<256x64xbf16>
    %cst_44 = arith.constant dense<0.000000e+00> : vector<8x64xf32>
    %121 = tpu.matmul %119, %120, %cst_44 {dimension_numbers = #tpu.dot_dimension_numbers<[1], [0], [0], [1], [0, 0, 1, 1], [], []>} : vector<8x256xbf16>, vector<256x64xbf16>, vector<8x64xf32> -> vector<8x64xf32>
    %122 = tpu.concatenate %118, %121 in 1 : vector<8x64xf32>, vector<8x64xf32> -> vector<8x128xf32>
    %123 = vector.extract_strided_slice %122 {offsets = [0, 119], sizes = [8, 9], strides = [1, 1]} : vector<8x128xf32> to vector<8x9xf32>
    %124 = vector.extract_strided_slice %122 {offsets = [0, 0], sizes = [8, 119], strides = [1, 1]} : vector<8x128xf32> to vector<8x119xf32>
    %125 = tpu.concatenate %123, %124 in 1 : vector<8x9xf32>, vector<8x119xf32> -> vector<8x128xf32>
    %126 = vector.broadcast %13 : vector<1x128xf32> to vector<8x128xf32>
    %127 = arith.mulf %125, %126 : vector<8x128xf32>
    %128 = vector.extract_strided_slice %122 {offsets = [0, 120], sizes = [8, 8], strides = [1, 1]} : vector<8x128xf32> to vector<8x8xf32>
    %129 = vector.extract_strided_slice %122 {offsets = [0, 0], sizes = [8, 120], strides = [1, 1]} : vector<8x128xf32> to vector<8x120xf32>
    %130 = tpu.concatenate %128, %129 in 1 : vector<8x8xf32>, vector<8x120xf32> -> vector<8x128xf32>
    %131 = vector.broadcast %14 : vector<1x128xf32> to vector<8x128xf32>
    %132 = arith.mulf %130, %131 : vector<8x128xf32>
    %133 = vector.extract_strided_slice %122 {offsets = [0, 121], sizes = [8, 7], strides = [1, 1]} : vector<8x128xf32> to vector<8x7xf32>
    %134 = vector.extract_strided_slice %122 {offsets = [0, 0], sizes = [8, 121], strides = [1, 1]} : vector<8x128xf32> to vector<8x121xf32>
    %135 = tpu.concatenate %133, %134 in 1 : vector<8x7xf32>, vector<8x121xf32> -> vector<8x128xf32>
    %136 = vector.broadcast %15 : vector<1x128xf32> to vector<8x128xf32>
    %137 = arith.mulf %135, %136 : vector<8x128xf32>
    %138 = vector.extract_strided_slice %122 {offsets = [0, 127], sizes = [8, 1], strides = [1, 1]} : vector<8x128xf32> to vector<8x1xf32>
    %139 = vector.extract_strided_slice %122 {offsets = [0, 0], sizes = [8, 127], strides = [1, 1]} : vector<8x128xf32> to vector<8x127xf32>
    %140 = tpu.concatenate %138, %139 in 1 : vector<8x1xf32>, vector<8x127xf32> -> vector<8x128xf32>
    %141 = vector.broadcast %16 : vector<1x128xf32> to vector<8x128xf32>
    %142 = arith.mulf %140, %141 : vector<8x128xf32>
    %143 = vector.extract_strided_slice %122 {offsets = [0, 1], sizes = [8, 127], strides = [1, 1]} : vector<8x128xf32> to vector<8x127xf32>
    %144 = vector.extract_strided_slice %122 {offsets = [0, 0], sizes = [8, 1], strides = [1, 1]} : vector<8x128xf32> to vector<8x1xf32>
    %145 = tpu.concatenate %143, %144 in 1 : vector<8x127xf32>, vector<8x1xf32> -> vector<8x128xf32>
    %146 = vector.broadcast %17 : vector<1x128xf32> to vector<8x128xf32>
    %147 = arith.mulf %145, %146 : vector<8x128xf32>
    %148 = vector.extract_strided_slice %122 {offsets = [0, 7], sizes = [8, 121], strides = [1, 1]} : vector<8x128xf32> to vector<8x121xf32>
    %149 = vector.extract_strided_slice %122 {offsets = [0, 0], sizes = [8, 7], strides = [1, 1]} : vector<8x128xf32> to vector<8x7xf32>
    %150 = tpu.concatenate %148, %149 in 1 : vector<8x121xf32>, vector<8x7xf32> -> vector<8x128xf32>
    %151 = vector.broadcast %18 : vector<1x128xf32> to vector<8x128xf32>
    %152 = arith.mulf %150, %151 : vector<8x128xf32>
    %153 = vector.extract_strided_slice %122 {offsets = [0, 8], sizes = [8, 120], strides = [1, 1]} : vector<8x128xf32> to vector<8x120xf32>
    %154 = vector.extract_strided_slice %122 {offsets = [0, 0], sizes = [8, 8], strides = [1, 1]} : vector<8x128xf32> to vector<8x8xf32>
    %155 = tpu.concatenate %153, %154 in 1 : vector<8x120xf32>, vector<8x8xf32> -> vector<8x128xf32>
    %156 = vector.broadcast %19 : vector<1x128xf32> to vector<8x128xf32>
    %157 = arith.mulf %155, %156 : vector<8x128xf32>
    %158 = vector.extract_strided_slice %122 {offsets = [0, 9], sizes = [8, 119], strides = [1, 1]} : vector<8x128xf32> to vector<8x119xf32>
    %159 = vector.extract_strided_slice %122 {offsets = [0, 0], sizes = [8, 9], strides = [1, 1]} : vector<8x128xf32> to vector<8x9xf32>
    %160 = tpu.concatenate %158, %159 in 1 : vector<8x119xf32>, vector<8x9xf32> -> vector<8x128xf32>
    %161 = vector.broadcast %20 : vector<1x128xf32> to vector<8x128xf32>
    %162 = arith.mulf %160, %161 : vector<8x128xf32>
    %163 = tpu.concatenate %127, %132, %137, %142, %122, %147, %152, %157, %162, %22 in 0 : vector<8x128xf32>, vector<8x128xf32>, vector<8x128xf32>, vector<8x128xf32>, vector<8x128xf32>, vector<8x128xf32>, vector<8x128xf32>, vector<8x128xf32>, vector<8x128xf32>, vector<1x128xf32> -> vector<73x128xf32>
    %164 = arith.truncf %163 : vector<73x128xf32> to vector<73x128xbf16>
    %c0_45 = arith.constant 0 : index
    %c0_46 = arith.constant 0 : index
    %165 = vector.load %arg4[%c0_45, %c0_46] : memref<16x73xbf16, #tpu.memory_space<vmem>>, vector<16x73xbf16>
    %cst_47 = arith.constant dense<0.000000e+00> : vector<16x128xf32>
    %166 = tpu.matmul %165, %164, %cst_47 {dimension_numbers = #tpu.dot_dimension_numbers<[1], [0], [0], [1], [0, 0, 1, 1], [], []>} : vector<16x73xbf16>, vector<73x128xbf16>, vector<16x128xf32> -> vector<16x128xf32>
    %cst_48 = arith.constant 0.000000e+00 : f32
    %167 = vector.broadcast %cst_48 : f32 to vector<16x128xf32>
    %168 = arith.maximumf %166, %167 : vector<16x128xf32>
    %169 = vector.extract_strided_slice %168 {offsets = [0, 119], sizes = [16, 9], strides = [1, 1]} : vector<16x128xf32> to vector<16x9xf32>
    %170 = vector.extract_strided_slice %168 {offsets = [0, 0], sizes = [16, 119], strides = [1, 1]} : vector<16x128xf32> to vector<16x119xf32>
    %171 = tpu.concatenate %169, %170 in 1 : vector<16x9xf32>, vector<16x119xf32> -> vector<16x128xf32>
    %172 = vector.broadcast %13 : vector<1x128xf32> to vector<16x128xf32>
    %173 = arith.mulf %171, %172 : vector<16x128xf32>
    %174 = vector.extract_strided_slice %168 {offsets = [0, 120], sizes = [16, 8], strides = [1, 1]} : vector<16x128xf32> to vector<16x8xf32>
    %175 = vector.extract_strided_slice %168 {offsets = [0, 0], sizes = [16, 120], strides = [1, 1]} : vector<16x128xf32> to vector<16x120xf32>
    %176 = tpu.concatenate %174, %175 in 1 : vector<16x8xf32>, vector<16x120xf32> -> vector<16x128xf32>
    %177 = vector.broadcast %14 : vector<1x128xf32> to vector<16x128xf32>
    %178 = arith.mulf %176, %177 : vector<16x128xf32>
    %179 = vector.extract_strided_slice %168 {offsets = [0, 121], sizes = [16, 7], strides = [1, 1]} : vector<16x128xf32> to vector<16x7xf32>
    %180 = vector.extract_strided_slice %168 {offsets = [0, 0], sizes = [16, 121], strides = [1, 1]} : vector<16x128xf32> to vector<16x121xf32>
    %181 = tpu.concatenate %179, %180 in 1 : vector<16x7xf32>, vector<16x121xf32> -> vector<16x128xf32>
    %182 = vector.broadcast %15 : vector<1x128xf32> to vector<16x128xf32>
    %183 = arith.mulf %181, %182 : vector<16x128xf32>
    %184 = vector.extract_strided_slice %168 {offsets = [0, 127], sizes = [16, 1], strides = [1, 1]} : vector<16x128xf32> to vector<16x1xf32>
    %185 = vector.extract_strided_slice %168 {offsets = [0, 0], sizes = [16, 127], strides = [1, 1]} : vector<16x128xf32> to vector<16x127xf32>
    %186 = tpu.concatenate %184, %185 in 1 : vector<16x1xf32>, vector<16x127xf32> -> vector<16x128xf32>
    %187 = vector.broadcast %16 : vector<1x128xf32> to vector<16x128xf32>
    %188 = arith.mulf %186, %187 : vector<16x128xf32>
    %189 = vector.extract_strided_slice %168 {offsets = [0, 1], sizes = [16, 127], strides = [1, 1]} : vector<16x128xf32> to vector<16x127xf32>
    %190 = vector.extract_strided_slice %168 {offsets = [0, 0], sizes = [16, 1], strides = [1, 1]} : vector<16x128xf32> to vector<16x1xf32>
    %191 = tpu.concatenate %189, %190 in 1 : vector<16x127xf32>, vector<16x1xf32> -> vector<16x128xf32>
    %192 = vector.broadcast %17 : vector<1x128xf32> to vector<16x128xf32>
    %193 = arith.mulf %191, %192 : vector<16x128xf32>
    %194 = vector.extract_strided_slice %168 {offsets = [0, 7], sizes = [16, 121], strides = [1, 1]} : vector<16x128xf32> to vector<16x121xf32>
    %195 = vector.extract_strided_slice %168 {offsets = [0, 0], sizes = [16, 7], strides = [1, 1]} : vector<16x128xf32> to vector<16x7xf32>
    %196 = tpu.concatenate %194, %195 in 1 : vector<16x121xf32>, vector<16x7xf32> -> vector<16x128xf32>
    %197 = vector.broadcast %18 : vector<1x128xf32> to vector<16x128xf32>
    %198 = arith.mulf %196, %197 : vector<16x128xf32>
    %199 = vector.extract_strided_slice %168 {offsets = [0, 8], sizes = [16, 120], strides = [1, 1]} : vector<16x128xf32> to vector<16x120xf32>
    %200 = vector.extract_strided_slice %168 {offsets = [0, 0], sizes = [16, 8], strides = [1, 1]} : vector<16x128xf32> to vector<16x8xf32>
    %201 = tpu.concatenate %199, %200 in 1 : vector<16x120xf32>, vector<16x8xf32> -> vector<16x128xf32>
    %202 = vector.broadcast %19 : vector<1x128xf32> to vector<16x128xf32>
    %203 = arith.mulf %201, %202 : vector<16x128xf32>
    %204 = vector.extract_strided_slice %168 {offsets = [0, 9], sizes = [16, 119], strides = [1, 1]} : vector<16x128xf32> to vector<16x119xf32>
    %205 = vector.extract_strided_slice %168 {offsets = [0, 0], sizes = [16, 9], strides = [1, 1]} : vector<16x128xf32> to vector<16x9xf32>
    %206 = tpu.concatenate %204, %205 in 1 : vector<16x119xf32>, vector<16x9xf32> -> vector<16x128xf32>
    %207 = vector.broadcast %20 : vector<1x128xf32> to vector<16x128xf32>
    %208 = arith.mulf %206, %207 : vector<16x128xf32>
    %209 = tpu.concatenate %173, %178, %183, %188, %168, %193, %198, %203, %208, %22 in 0 : vector<16x128xf32>, vector<16x128xf32>, vector<16x128xf32>, vector<16x128xf32>, vector<16x128xf32>, vector<16x128xf32>, vector<16x128xf32>, vector<16x128xf32>, vector<16x128xf32>, vector<1x128xf32> -> vector<145x128xf32>
    %210 = arith.truncf %209 : vector<145x128xf32> to vector<145x128xbf16>
    %c0_49 = arith.constant 0 : index
    %c0_50 = arith.constant 0 : index
    %211 = vector.load %arg5[%c0_49, %c0_50] : memref<16x145xbf16, #tpu.memory_space<vmem>>, vector<16x145xbf16>
    %cst_51 = arith.constant dense<0.000000e+00> : vector<16x128xf32>
    %212 = tpu.matmul %211, %210, %cst_51 {dimension_numbers = #tpu.dot_dimension_numbers<[1], [0], [0], [1], [0, 0, 1, 1], [], []>} : vector<16x145xbf16>, vector<145x128xbf16>, vector<16x128xf32> -> vector<16x128xf32>
    %cst_52 = arith.constant 0.000000e+00 : f32
    %213 = vector.broadcast %cst_52 : f32 to vector<16x128xf32>
    %214 = arith.maximumf %212, %213 : vector<16x128xf32>
    %215 = arith.truncf %214 : vector<16x128xf32> to vector<16x128xbf16>
    %216 = vector.extract_strided_slice %215 {offsets = [0, 0], sizes = [16, 64], strides = [1, 1]} : vector<16x128xbf16> to vector<16x64xbf16>
    %c0_53 = arith.constant 0 : index
    %c0_54 = arith.constant 0 : index
    %217 = vector.load %arg12[%c0_53, %c0_54] : memref<64x256xbf16, #tpu.memory_space<vmem>>, vector<64x256xbf16>
    %cst_55 = arith.constant dense<0.000000e+00> : vector<16x256xf32>
    %218 = tpu.matmul %216, %217, %cst_55 {dimension_numbers = #tpu.dot_dimension_numbers<[1], [0], [0], [1], [0, 0, 1, 1], [], []>} : vector<16x64xbf16>, vector<64x256xbf16>, vector<16x256xf32> -> vector<16x256xf32>
    %219 = vector.extract_strided_slice %215 {offsets = [0, 64], sizes = [16, 64], strides = [1, 1]} : vector<16x128xbf16> to vector<16x64xbf16>
    %c0_56 = arith.constant 0 : index
    %c0_57 = arith.constant 0 : index
    %220 = vector.load %arg12[%c0_56, %c0_57] : memref<64x256xbf16, #tpu.memory_space<vmem>>, vector<64x256xbf16>
    %cst_58 = arith.constant dense<0.000000e+00> : vector<16x256xf32>
    %221 = tpu.matmul %219, %220, %cst_58 {dimension_numbers = #tpu.dot_dimension_numbers<[1], [0], [0], [1], [0, 0, 1, 1], [], []>} : vector<16x64xbf16>, vector<64x256xbf16>, vector<16x256xf32> -> vector<16x256xf32>
    %222 = tpu.concatenate %218, %221 in 1 : vector<16x256xf32>, vector<16x256xf32> -> vector<16x512xf32>
    %223 = tpu.concatenate %114, %222 in 0 : vector<8x512xf32>, vector<16x512xf32> -> vector<24x512xf32>
    %224 = vector.extract_strided_slice %223 {offsets = [0, 495], sizes = [24, 17], strides = [1, 1]} : vector<24x512xf32> to vector<24x17xf32>
    %225 = vector.extract_strided_slice %223 {offsets = [0, 0], sizes = [24, 495], strides = [1, 1]} : vector<24x512xf32> to vector<24x495xf32>
    %226 = tpu.concatenate %224, %225 in 1 : vector<24x17xf32>, vector<24x495xf32> -> vector<24x512xf32>
    %227 = vector.broadcast %5 : vector<1x512xf32> to vector<24x512xf32>
    %228 = arith.mulf %226, %227 : vector<24x512xf32>
    %229 = vector.extract_strided_slice %223 {offsets = [0, 496], sizes = [24, 16], strides = [1, 1]} : vector<24x512xf32> to vector<24x16xf32>
    %230 = vector.extract_strided_slice %223 {offsets = [0, 0], sizes = [24, 496], strides = [1, 1]} : vector<24x512xf32> to vector<24x496xf32>
    %231 = tpu.concatenate %229, %230 in 1 : vector<24x16xf32>, vector<24x496xf32> -> vector<24x512xf32>
    %232 = vector.broadcast %6 : vector<1x512xf32> to vector<24x512xf32>
    %233 = arith.mulf %231, %232 : vector<24x512xf32>
    %234 = vector.extract_strided_slice %223 {offsets = [0, 497], sizes = [24, 15], strides = [1, 1]} : vector<24x512xf32> to vector<24x15xf32>
    %235 = vector.extract_strided_slice %223 {offsets = [0, 0], sizes = [24, 497], strides = [1, 1]} : vector<24x512xf32> to vector<24x497xf32>
    %236 = tpu.concatenate %234, %235 in 1 : vector<24x15xf32>, vector<24x497xf32> -> vector<24x512xf32>
    %237 = vector.broadcast %7 : vector<1x512xf32> to vector<24x512xf32>
    %238 = arith.mulf %236, %237 : vector<24x512xf32>
    %239 = vector.extract_strided_slice %223 {offsets = [0, 511], sizes = [24, 1], strides = [1, 1]} : vector<24x512xf32> to vector<24x1xf32>
    %240 = vector.extract_strided_slice %223 {offsets = [0, 0], sizes = [24, 511], strides = [1, 1]} : vector<24x512xf32> to vector<24x511xf32>
    %241 = tpu.concatenate %239, %240 in 1 : vector<24x1xf32>, vector<24x511xf32> -> vector<24x512xf32>
    %242 = vector.broadcast %8 : vector<1x512xf32> to vector<24x512xf32>
    %243 = arith.mulf %241, %242 : vector<24x512xf32>
    %244 = vector.extract_strided_slice %223 {offsets = [0, 1], sizes = [24, 511], strides = [1, 1]} : vector<24x512xf32> to vector<24x511xf32>
    %245 = vector.extract_strided_slice %223 {offsets = [0, 0], sizes = [24, 1], strides = [1, 1]} : vector<24x512xf32> to vector<24x1xf32>
    %246 = tpu.concatenate %244, %245 in 1 : vector<24x511xf32>, vector<24x1xf32> -> vector<24x512xf32>
    %247 = vector.broadcast %9 : vector<1x512xf32> to vector<24x512xf32>
    %248 = arith.mulf %246, %247 : vector<24x512xf32>
    %249 = vector.extract_strided_slice %223 {offsets = [0, 15], sizes = [24, 497], strides = [1, 1]} : vector<24x512xf32> to vector<24x497xf32>
    %250 = vector.extract_strided_slice %223 {offsets = [0, 0], sizes = [24, 15], strides = [1, 1]} : vector<24x512xf32> to vector<24x15xf32>
    %251 = tpu.concatenate %249, %250 in 1 : vector<24x497xf32>, vector<24x15xf32> -> vector<24x512xf32>
    %252 = vector.broadcast %10 : vector<1x512xf32> to vector<24x512xf32>
    %253 = arith.mulf %251, %252 : vector<24x512xf32>
    %254 = vector.extract_strided_slice %223 {offsets = [0, 16], sizes = [24, 496], strides = [1, 1]} : vector<24x512xf32> to vector<24x496xf32>
    %255 = vector.extract_strided_slice %223 {offsets = [0, 0], sizes = [24, 16], strides = [1, 1]} : vector<24x512xf32> to vector<24x16xf32>
    %256 = tpu.concatenate %254, %255 in 1 : vector<24x496xf32>, vector<24x16xf32> -> vector<24x512xf32>
    %257 = vector.broadcast %11 : vector<1x512xf32> to vector<24x512xf32>
    %258 = arith.mulf %256, %257 : vector<24x512xf32>
    %259 = vector.extract_strided_slice %223 {offsets = [0, 17], sizes = [24, 495], strides = [1, 1]} : vector<24x512xf32> to vector<24x495xf32>
    %260 = vector.extract_strided_slice %223 {offsets = [0, 0], sizes = [24, 17], strides = [1, 1]} : vector<24x512xf32> to vector<24x17xf32>
    %261 = tpu.concatenate %259, %260 in 1 : vector<24x495xf32>, vector<24x17xf32> -> vector<24x512xf32>
    %262 = vector.broadcast %12 : vector<1x512xf32> to vector<24x512xf32>
    %263 = arith.mulf %261, %262 : vector<24x512xf32>
    %264 = tpu.concatenate %228, %233, %238, %243, %223, %248, %253, %258, %263, %21 in 0 : vector<24x512xf32>, vector<24x512xf32>, vector<24x512xf32>, vector<24x512xf32>, vector<24x512xf32>, vector<24x512xf32>, vector<24x512xf32>, vector<24x512xf32>, vector<24x512xf32>, vector<1x512xf32> -> vector<217x512xf32>
    %265 = arith.truncf %264 : vector<217x512xf32> to vector<217x512xbf16>
    %c0_59 = arith.constant 0 : index
    %c0_60 = arith.constant 0 : index
    %266 = vector.load %arg6[%c0_59, %c0_60] : memref<8x217xbf16, #tpu.memory_space<vmem>>, vector<8x217xbf16>
    %cst_61 = arith.constant dense<0.000000e+00> : vector<8x512xf32>
    %267 = tpu.matmul %266, %265, %cst_61 {dimension_numbers = #tpu.dot_dimension_numbers<[1], [0], [0], [1], [0, 0, 1, 1], [], []>} : vector<8x217xbf16>, vector<217x512xbf16>, vector<8x512xf32> -> vector<8x512xf32>
    %cst_62 = arith.constant 0.000000e+00 : f32
    %268 = vector.broadcast %cst_62 : f32 to vector<8x512xf32>
    %269 = arith.maximumf %267, %268 : vector<8x512xf32>
    %270 = vector.extract_strided_slice %269 {offsets = [0, 495], sizes = [8, 17], strides = [1, 1]} : vector<8x512xf32> to vector<8x17xf32>
    %271 = vector.extract_strided_slice %269 {offsets = [0, 0], sizes = [8, 495], strides = [1, 1]} : vector<8x512xf32> to vector<8x495xf32>
    %272 = tpu.concatenate %270, %271 in 1 : vector<8x17xf32>, vector<8x495xf32> -> vector<8x512xf32>
    %273 = vector.broadcast %5 : vector<1x512xf32> to vector<8x512xf32>
    %274 = arith.mulf %272, %273 : vector<8x512xf32>
    %275 = vector.extract_strided_slice %269 {offsets = [0, 496], sizes = [8, 16], strides = [1, 1]} : vector<8x512xf32> to vector<8x16xf32>
    %276 = vector.extract_strided_slice %269 {offsets = [0, 0], sizes = [8, 496], strides = [1, 1]} : vector<8x512xf32> to vector<8x496xf32>
    %277 = tpu.concatenate %275, %276 in 1 : vector<8x16xf32>, vector<8x496xf32> -> vector<8x512xf32>
    %278 = vector.broadcast %6 : vector<1x512xf32> to vector<8x512xf32>
    %279 = arith.mulf %277, %278 : vector<8x512xf32>
    %280 = vector.extract_strided_slice %269 {offsets = [0, 497], sizes = [8, 15], strides = [1, 1]} : vector<8x512xf32> to vector<8x15xf32>
    %281 = vector.extract_strided_slice %269 {offsets = [0, 0], sizes = [8, 497], strides = [1, 1]} : vector<8x512xf32> to vector<8x497xf32>
    %282 = tpu.concatenate %280, %281 in 1 : vector<8x15xf32>, vector<8x497xf32> -> vector<8x512xf32>
    %283 = vector.broadcast %7 : vector<1x512xf32> to vector<8x512xf32>
    %284 = arith.mulf %282, %283 : vector<8x512xf32>
    %285 = vector.extract_strided_slice %269 {offsets = [0, 511], sizes = [8, 1], strides = [1, 1]} : vector<8x512xf32> to vector<8x1xf32>
    %286 = vector.extract_strided_slice %269 {offsets = [0, 0], sizes = [8, 511], strides = [1, 1]} : vector<8x512xf32> to vector<8x511xf32>
    %287 = tpu.concatenate %285, %286 in 1 : vector<8x1xf32>, vector<8x511xf32> -> vector<8x512xf32>
    %288 = vector.broadcast %8 : vector<1x512xf32> to vector<8x512xf32>
    %289 = arith.mulf %287, %288 : vector<8x512xf32>
    %290 = vector.extract_strided_slice %269 {offsets = [0, 1], sizes = [8, 511], strides = [1, 1]} : vector<8x512xf32> to vector<8x511xf32>
    %291 = vector.extract_strided_slice %269 {offsets = [0, 0], sizes = [8, 1], strides = [1, 1]} : vector<8x512xf32> to vector<8x1xf32>
    %292 = tpu.concatenate %290, %291 in 1 : vector<8x511xf32>, vector<8x1xf32> -> vector<8x512xf32>
    %293 = vector.broadcast %9 : vector<1x512xf32> to vector<8x512xf32>
    %294 = arith.mulf %292, %293 : vector<8x512xf32>
    %295 = vector.extract_strided_slice %269 {offsets = [0, 15], sizes = [8, 497], strides = [1, 1]} : vector<8x512xf32> to vector<8x497xf32>
    %296 = vector.extract_strided_slice %269 {offsets = [0, 0], sizes = [8, 15], strides = [1, 1]} : vector<8x512xf32> to vector<8x15xf32>
    %297 = tpu.concatenate %295, %296 in 1 : vector<8x497xf32>, vector<8x15xf32> -> vector<8x512xf32>
    %298 = vector.broadcast %10 : vector<1x512xf32> to vector<8x512xf32>
    %299 = arith.mulf %297, %298 : vector<8x512xf32>
    %300 = vector.extract_strided_slice %269 {offsets = [0, 16], sizes = [8, 496], strides = [1, 1]} : vector<8x512xf32> to vector<8x496xf32>
    %301 = vector.extract_strided_slice %269 {offsets = [0, 0], sizes = [8, 16], strides = [1, 1]} : vector<8x512xf32> to vector<8x16xf32>
    %302 = tpu.concatenate %300, %301 in 1 : vector<8x496xf32>, vector<8x16xf32> -> vector<8x512xf32>
    %303 = vector.broadcast %11 : vector<1x512xf32> to vector<8x512xf32>
    %304 = arith.mulf %302, %303 : vector<8x512xf32>
    %305 = vector.extract_strided_slice %269 {offsets = [0, 17], sizes = [8, 495], strides = [1, 1]} : vector<8x512xf32> to vector<8x495xf32>
    %306 = vector.extract_strided_slice %269 {offsets = [0, 0], sizes = [8, 17], strides = [1, 1]} : vector<8x512xf32> to vector<8x17xf32>
    %307 = tpu.concatenate %305, %306 in 1 : vector<8x495xf32>, vector<8x17xf32> -> vector<8x512xf32>
    %308 = vector.broadcast %12 : vector<1x512xf32> to vector<8x512xf32>
    %309 = arith.mulf %307, %308 : vector<8x512xf32>
    %310 = tpu.concatenate %274, %279, %284, %289, %269, %294, %299, %304, %309, %21 in 0 : vector<8x512xf32>, vector<8x512xf32>, vector<8x512xf32>, vector<8x512xf32>, vector<8x512xf32>, vector<8x512xf32>, vector<8x512xf32>, vector<8x512xf32>, vector<8x512xf32>, vector<1x512xf32> -> vector<73x512xf32>
    %311 = arith.truncf %310 : vector<73x512xf32> to vector<73x512xbf16>
    %c0_63 = arith.constant 0 : index
    %c0_64 = arith.constant 0 : index
    %312 = vector.load %arg7[%c0_63, %c0_64] : memref<8x73xbf16, #tpu.memory_space<vmem>>, vector<8x73xbf16>
    %cst_65 = arith.constant dense<0.000000e+00> : vector<8x512xf32>
    %313 = tpu.matmul %312, %311, %cst_65 {dimension_numbers = #tpu.dot_dimension_numbers<[1], [0], [0], [1], [0, 0, 1, 1], [], []>} : vector<8x73xbf16>, vector<73x512xbf16>, vector<8x512xf32> -> vector<8x512xf32>
    %cst_66 = arith.constant 0.000000e+00 : f32
    %314 = vector.broadcast %cst_66 : f32 to vector<8x512xf32>
    %315 = arith.maximumf %313, %314 : vector<8x512xf32>
    %316 = tpu.concatenate %315, %21 in 0 : vector<8x512xf32>, vector<1x512xf32> -> vector<9x512xf32>
    %317 = arith.truncf %316 : vector<9x512xf32> to vector<9x512xbf16>
    %c0_67 = arith.constant 0 : index
    %c0_68 = arith.constant 0 : index
    %318 = vector.load %arg8[%c0_67, %c0_68] : memref<8x9xbf16, #tpu.memory_space<vmem>>, vector<8x9xbf16>
    %cst_69 = arith.constant dense<0.000000e+00> : vector<8x512xf32>
    %319 = tpu.matmul %318, %317, %cst_69 {dimension_numbers = #tpu.dot_dimension_numbers<[1], [0], [0], [1], [0, 0, 1, 1], [], []>} : vector<8x9xbf16>, vector<9x512xbf16>, vector<8x512xf32> -> vector<8x512xf32>
    %320 = vector.extract_strided_slice %319 {offsets = [0, 0], sizes = [8, 256], strides = [1, 1]} : vector<8x512xf32> to vector<8x256xf32>
    %c0_70 = arith.constant 0 : index
    %c0_71 = arith.constant 0 : index
    %c0_72 = arith.constant 0 : index
    %321 = vector.load %arg13[%c0_70, %c0_71, %c0_72] : memref<2x8x256xf32, #tpu.memory_space<vmem>>, vector<1x8x256xf32>
    %322 = vector.shape_cast %321 : vector<1x8x256xf32> to vector<8x256xf32>
    %323 = vector.shape_cast %320 : vector<8x256xf32> to vector<1x8x256xf32>
    tpu.vector_store %arg13[%c0_70, %c0_71, %c0_72], %323 {strides = array<i32>} : memref<2x8x256xf32, #tpu.memory_space<vmem>>, vector<1x8x256xf32>,
    %324 = vector.extract_strided_slice %319 {offsets = [0, 256], sizes = [8, 256], strides = [1, 1]} : vector<8x512xf32> to vector<8x256xf32>
    %c1_73 = arith.constant 1 : index
    %c0_74 = arith.constant 0 : index
    %c0_75 = arith.constant 0 : index
    %325 = vector.load %arg13[%c1_73, %c0_74, %c0_75] : memref<2x8x256xf32, #tpu.memory_space<vmem>>, vector<1x8x256xf32>
    %326 = vector.shape_cast %325 : vector<1x8x256xf32> to vector<8x256xf32>
    %327 = vector.shape_cast %324 : vector<8x256xf32> to vector<1x8x256xf32>
    tpu.vector_store %arg13[%c1_73, %c0_74, %c0_75], %327 {strides = array<i32>} : memref<2x8x256xf32, #tpu.memory_space<vmem>>, vector<1x8x256xf32>,
    return
  }
  func.func @transform_0(%arg0: i32) -> (i32, i32, i32) {
    %c0_i32 = arith.constant 0 : i32
    %c0_i32_0 = arith.constant 0 : i32
    %c0_i32_1 = arith.constant 0 : i32
    return %arg0, %c0_i32, %c0_i32_0 : i32, i32, i32
  }
  func.func @transform_1(%arg0: i32) -> (i32, i32) {
    %c0_i32 = arith.constant 0 : i32
    %c0_i32_0 = arith.constant 0 : i32
    %c0_i32_1 = arith.constant 0 : i32
    return %c0_i32, %c0_i32_0 : i32, i32
  }
  func.func @transform_2(%arg0: i32) -> (i32, i32) {
    %c0_i32 = arith.constant 0 : i32
    %c0_i32_0 = arith.constant 0 : i32
    %c0_i32_1 = arith.constant 0 : i32
    return %c0_i32, %c0_i32_0 : i32, i32
  }
  func.func @transform_3(%arg0: i32) -> (i32, i32) {
    %c0_i32 = arith.constant 0 : i32
    %c0_i32_0 = arith.constant 0 : i32
    %c0_i32_1 = arith.constant 0 : i32
    return %c0_i32, %c0_i32_0 : i32, i32
  }
  func.func @transform_4(%arg0: i32) -> (i32, i32) {
    %c0_i32 = arith.constant 0 : i32
    %c0_i32_0 = arith.constant 0 : i32
    %c0_i32_1 = arith.constant 0 : i32
    return %c0_i32, %c0_i32_0 : i32, i32
  }
  func.func @transform_5(%arg0: i32) -> (i32, i32) {
    %c0_i32 = arith.constant 0 : i32
    %c0_i32_0 = arith.constant 0 : i32
    %c0_i32_1 = arith.constant 0 : i32
    return %c0_i32, %c0_i32_0 : i32, i32
  }
  func.func @transform_6(%arg0: i32) -> (i32, i32) {
    %c0_i32 = arith.constant 0 : i32
    %c0_i32_0 = arith.constant 0 : i32
    %c0_i32_1 = arith.constant 0 : i32
    return %c0_i32, %c0_i32_0 : i32, i32
  }
  func.func @transform_7(%arg0: i32) -> (i32, i32) {
    %c0_i32 = arith.constant 0 : i32
    %c0_i32_0 = arith.constant 0 : i32
    %c0_i32_1 = arith.constant 0 : i32
    return %c0_i32, %c0_i32_0 : i32, i32
  }
  func.func @transform_8(%arg0: i32) -> (i32, i32) {
    %c0_i32 = arith.constant 0 : i32
    %c0_i32_0 = arith.constant 0 : i32
    %c0_i32_1 = arith.constant 0 : i32
    return %c0_i32, %c0_i32_0 : i32, i32
  }
  func.func @transform_9(%arg0: i32) -> (i32, i32) {
    %c0_i32 = arith.constant 0 : i32
    %c0_i32_0 = arith.constant 0 : i32
    %c0_i32_1 = arith.constant 0 : i32
    return %c0_i32, %c0_i32_0 : i32, i32
  }
  func.func @transform_10(%arg0: i32) -> (i32, i32) {
    %c0_i32 = arith.constant 0 : i32
    %c0_i32_0 = arith.constant 0 : i32
    %c0_i32_1 = arith.constant 0 : i32
    return %c0_i32, %c0_i32_0 : i32, i32
  }
  func.func @transform_11(%arg0: i32) -> (i32, i32) {
    %c0_i32 = arith.constant 0 : i32
    %c0_i32_0 = arith.constant 0 : i32
    %c0_i32_1 = arith.constant 0 : i32
    return %c0_i32, %c0_i32_0 : i32, i32
  }
  func.func @transform_12(%arg0: i32) -> (i32, i32, i32) {
    %c0_i32 = arith.constant 0 : i32
    %c0_i32_0 = arith.constant 0 : i32
    %c0_i32_1 = arith.constant 0 : i32
    return %arg0, %c0_i32, %c0_i32_0 : i32, i32, i32
  }
}

</mosaic_0001>

<llo_original>
// kernel: tpu_custom_call.1
$region0: #{tpu_custom_call.1}
  #allocation0 [shape = 'u32[]', space=smem, size = 0x4, offset = 0x4, fixed_abs, tag = 'smem constant byte address 0x4 - core index']
  #allocation1 [shape = 'u32[144,128]{1,0:T(1,128)}', space=vmem, size = 0x12000, scoped, tag = 'internal scratch']
  %s0 = inlined_call_operand.hbm [shape: f32[8,256], index: 0, kind: input, shape index: {}]
  %s1 = inlined_call_operand.hbm [shape: f32[8,256], index: 1, kind: output, shape index: {}]
  %s2 = sld [smem:[#allocation0]]
  $region18: #{tpu_custom_call.1} parent=0
    _
  %s4 = ssub.s32 1, %s2
  %s5 = scalar_select 0, %s4, %s2
  $region1: #{tpu_custom_call.1} parent=0
    #allocation2 [shape = 'u8[8192]{0}', space=vmem, size = 0x2000, scoped, tag = 'input window, operand 0, single buffered']
    #allocation3 [shape = 's32[1]{0}', space=sflag, size = 0x4, scoped, tag = 'scoped memory for tpu_custom_call.1']
    #allocation4 [shape = 's32[1]{0}', space=sflag, size = 0x4, scoped, tag = 'scoped memory for tpu_custom_call.1']
    #allocation5 [shape = 'u8[8192]{0}', space=vmem, size = 0x2000, scoped, tag = 'output window, operand 0, single buffered']
    %6 = vsyncpa [#allocation3], 0
    %7 = vsyncpa [#allocation4], 0
    // Predicated region
    $region2: #{tpu_custom_call.1} parent=1 // pred_check
      _
    $region3: #{tpu_custom_call.1} parent=1 // pred_check_branch
      %9 = sbr.rel (0) target = $region5
    $region4: #{tpu_custom_call.1} parent=1 // pred_region
      %s11 = ssub.s32 256, 256
      %12 = vsyncadd [#allocation3], %s11
      %s14 = sshll.u32 [#allocation2], 4
      %s15 = int_to_ptr.vmem [resolvable:$true] %s14
      %17 = dma.hbm_to_vmem [thread:$0]  %s0, 256, %s15, [#allocation3]
    $region5: #{tpu_custom_call.1} parent=1 // pred_fallthru
      _
    // Predicated region
    $region6: #{tpu_custom_call.1} parent=1 // pred_check
      _
    $region7: #{tpu_custom_call.1} parent=1 // pred_check_branch
      %19 = sbr.rel (0) target = $region9
    $region8: #{tpu_custom_call.1} parent=1 // pred_region
      %20 = dma.done [#allocation3], 256
    $region9: #{tpu_custom_call.1} parent=1 // pred_fallthru
      _
    %v21 = vld [vmem:[#allocation2] sm:$0xff]
    %v22 = vld [vmem:[#allocation2 + $0x8] sm:$0xff]
    %23 = vrot.lane.b32.xlu0 %v21, 3
    %v24 = vpop.permute.xlu0 %23
    %25 = vrot.lane.b32.xlu0 %v22, 3
    %v26 = vpop.permute.xlu0 %25
    %v27 = vlaneseq
    %v28 = vand.u32 %v27, 127
    %vm29 = vcmp.lt.s32.totalorder %v28, 3
    %v30 = vsel %vm29, %v24, %v26
    %v31 = vsel %vm29, %v26, %v24
    %32 = vst [vmem:[#allocation5] sm:$0xff] %v31
    %33 = vst [vmem:[#allocation5 + $0x8] sm:$0xff] %v30
    // Predicated region
    $region10: #{tpu_custom_call.1} parent=1 // pred_check
      _
    $region11: #{tpu_custom_call.1} parent=1 // pred_check_branch
      %35 = sbr.rel (0) target = $region13
    $region12: #{tpu_custom_call.1} parent=1 // pred_region
      %s37 = ssub.s32 256, 256
      %38 = vsyncadd [#allocation4], %s37
      %s40 = sshll.u32 [#allocation5], 4
      %s41 = int_to_ptr.vmem [resolvable:$true] %s40
      %43 = dma.vmem_to_hbm [thread:$0]  %s41, 256, %s1, [#allocation4]
    $region13: #{tpu_custom_call.1} parent=1 // pred_fallthru
      _
    // Predicated region
    $region14: #{tpu_custom_call.1} parent=1 // pred_check
      _
    $region15: #{tpu_custom_call.1} parent=1 // pred_check_branch
      %45 = sbr.rel (0) target = $region17
    $region16: #{tpu_custom_call.1} parent=1 // pred_region
      %46 = dma.done [#allocation4], 256
    $region17: #{tpu_custom_call.1} parent=1 // pred_fallthru
      _
    %47 = vsyncpa [#allocation3], 1
    %48 = vsyncpa [#allocation4], 1

// kernel: _forward_impl.1
$region0: #{_forward_impl.1}
  #allocation0 [shape = 'u32[]', space=smem, size = 0x4, offset = 0x4, fixed_abs, tag = 'smem constant byte address 0x4 - core index']
  #allocation1 [shape = 'u32[144,128]{1,0:T(1,128)}', space=vmem, size = 0x12000, scoped, tag = 'internal scratch']
  %s0 = inlined_call_operand.vmem [shape: f32[4,8,256], index: 0, kind: input, shape index: {}]
  %s1 = inlined_call_operand.vmem [shape: bf16[8,73], index: 1, kind: input, shape index: {}]
  %s2 = inlined_call_operand.vmem [shape: bf16[8,73], index: 2, kind: input, shape index: {}]
  %s3 = inlined_call_operand.vmem [shape: bf16[16,73], index: 3, kind: input, shape index: {}]
  %s4 = inlined_call_operand.vmem [shape: bf16[16,145], index: 4, kind: input, shape index: {}]
  %s5 = inlined_call_operand.vmem [shape: bf16[8,217], index: 5, kind: input, shape index: {}]
  %s6 = inlined_call_operand.vmem [shape: bf16[8,73], index: 6, kind: input, shape index: {}]
  %s7 = inlined_call_operand.vmem [shape: bf16[8,9], index: 7, kind: input, shape index: {}]
  %s8 = inlined_call_operand.vmem [shape: f32[9,512], index: 8, kind: input, shape index: {}]
  %s9 = inlined_call_operand.vmem [shape: f32[9,128], index: 9, kind: input, shape index: {}]
  %s10 = inlined_call_operand.vmem [shape: bf16[256,64], index: 10, kind: input, shape index: {}]
  %s11 = inlined_call_operand.vmem [shape: bf16[64,256], index: 11, kind: input, shape index: {}]
  %s12 = inlined_call_operand.vmem [shape: f32[4,8,256], index: 12, kind: output, shape index: {}]
  %s13 = sld [smem:[#allocation0]]
  $region81: #{_forward_impl.1} parent=0
    _
  %s15 = ssub.s32 1, %s13
  %s16 = scalar_select 0, %s15, %s13
  loop: start=0, step=1, limit=4
  $region2: #{_forward_impl.1} parent=0 // loop_pre_header
    _
  $region3: #{_forward_impl.1} parent=0 // loop_header
    %s18 = sphi 0, %s22
    %p19 = scmp.ge.s32.totalorder %s18, 4
    %s28 = sphi 0, %s30
    %s31 = sphi 0, %s28
    %s32 = sphi 0, %s31
    %s48 = sphi 0, %s32
    %s52 = sphi 0, %s52
    %s54 = sphi 0, %s52
    %s55 = sphi 0, %s54
    %s69 = sphi 0, %s55
    %s73 = sphi 0, %s73
    %s75 = sphi 0, %s73
    %s76 = sphi 0, %s75
    %s90 = sphi 0, %s76
    %s94 = sphi 0, %s94
    %s96 = sphi 0, %s94
    %s97 = sphi 0, %s96
    %s111 = sphi 0, %s97
    %s115 = sphi 0, %s115
    %s117 = sphi 0, %s115
    %s118 = sphi 0, %s117
    %s132 = sphi 0, %s118
    %s136 = sphi 0, %s136
    %s138 = sphi 0, %s136
    %s139 = sphi 0, %s138
    %s153 = sphi 0, %s139
    %s157 = sphi 0, %s157
    %s159 = sphi 0, %s157
    %s160 = sphi 0, %s159
    %s174 = sphi 0, %s160
    %s178 = sphi 0, %s178
    %s180 = sphi 0, %s178
    %s181 = sphi 0, %s180
    %s195 = sphi 0, %s181
    %s199 = sphi 0, %s199
    %s201 = sphi 0, %s199
    %s202 = sphi 0, %s201
    %s216 = sphi 0, %s202
    %s220 = sphi 0, %s220
    %s222 = sphi 0, %s220
    %s223 = sphi 0, %s222
    %s237 = sphi 0, %s223
    %s241 = sphi 0, %s241
    %s243 = sphi 0, %s241
    %s244 = sphi 0, %s243
    %s258 = sphi 0, %s244
    %s262 = sphi 0, %s262
    %s264 = sphi 0, %s262
    %s265 = sphi 0, %s264
    %s279 = sphi 0, %s265
    %s285 = sphi 0, %s287
    %s288 = sphi 0, %s285
    %s289 = sphi 0, %s288
    %s305 = sphi 0, %s289
  $region4: #{_forward_impl.1} parent=0 // loop_header_branch
    %21 = sbr.rel (%p19) target = $region8
  $region5: #{_forward_impl.1} parent=0 // loop_body
    %s23 = ssub.s32 %s18, 1
    %s24 = ssub.s32 %s18, 2
    %s25 = sadd.s32 %s18, 1
    %s26 = ssub.s32 %s18, %s25
    %p27 = scmp.eq.s32.totalorder %s26, 0
    %s29 = sadd.s32 %s28, 1
    %s30 = scalar_select %p27, %s28, %s29
    %p33 = pneg %p27
    %p34 = scmp.eq.s32.totalorder %s18, 1
    %p35 = por %p33, %p34
    %p36 = scmp.ne.s32.totalorder %s28, %s31
    %p37 = scmp.eq.s32.totalorder %s18, 0
    %p38 = por %p36, %p37
    %p39 = scmp.ne.s32.totalorder %s28, %s31
    %p40 = scmp.eq.s32.totalorder %s23, 1
    %p41 = por %p39, %p40
    %p42 = scmp.ne.s32.totalorder %s31, %s32
    %p43 = scmp.eq.s32.totalorder %s23, 0
    %p44 = por %p42, %p43
    %p45 = scmp.ne.s32.totalorder %s31, %s32
    %p46 = scmp.eq.s32.totalorder %s24, 1
    %p47 = por %p45, %p46
    %p49 = scmp.ne.s32.totalorder %s32, %s48
    %p50 = scmp.eq.s32.totalorder %s24, 0
    %p51 = por %p49, %p50
    %s53 = sadd.s32 %s52, 1
    %p56 = scmp.eq.s32.totalorder %s18, 1
    %p57 = scmp.ne.s32.totalorder %s52, %s54
    %p58 = scmp.eq.s32.totalorder %s18, 0
    %p59 = por %p57, %p58
    %p60 = scmp.ne.s32.totalorder %s52, %s54
    %p61 = scmp.eq.s32.totalorder %s23, 1
    %p62 = por %p60, %p61
    %p63 = scmp.ne.s32.totalorder %s54, %s55
    %p64 = scmp.eq.s32.totalorder %s23, 0
    %p65 = por %p63, %p64
    %p66 = scmp.ne.s32.totalorder %s54, %s55
    %p67 = scmp.eq.s32.totalorder %s24, 1
    %p68 = por %p66, %p67
    %p70 = scmp.ne.s32.totalorder %s55, %s69
    %p71 = scmp.eq.s32.totalorder %s24, 0
    %p72 = por %p70, %p71
    %s74 = sadd.s32 %s73, 1
    %p77 = scmp.eq.s32.totalorder %s18, 1
    %p78 = scmp.ne.s32.totalorder %s73, %s75
    %p79 = scmp.eq.s32.totalorder %s18, 0
    %p80 = por %p78, %p79
    %p81 = scmp.ne.s32.totalorder %s73, %s75
    %p82 = scmp.eq.s32.totalorder %s23, 1
    %p83 = por %p81, %p82
    %p84 = scmp.ne.s32.totalorder %s75, %s76
    %p85 = scmp.eq.s32.totalorder %s23, 0
    %p86 = por %p84, %p85
    %p87 = scmp.ne.s32.totalorder %s75, %s76
    %p88 = scmp.eq.s32.totalorder %s24, 1
    %p89 = por %p87, %p88
    %p91 = scmp.ne.s32.totalorder %s76, %s90
    %p92 = scmp.eq.s32.totalorder %s24, 0
    %p93 = por %p91, %p92
    %s95 = sadd.s32 %s94, 1
    %p98 = scmp.eq.s32.totalorder %s18, 1
    %p99 = scmp.ne.s32.totalorder %s94, %s96
    %p100 = scmp.eq.s32.totalorder %s18, 0
    %p101 = por %p99, %p100
    %p102 = scmp.ne.s32.totalorder %s94, %s96
    %p103 = scmp.eq.s32.totalorder %s23, 1
    %p104 = por %p102, %p103
    %p105 = scmp.ne.s32.totalorder %s96, %s97
    %p106 = scmp.eq.s32.totalorder %s23, 0
    %p107 = por %p105, %p106
    %p108 = scmp.ne.s32.totalorder %s96, %s97
    %p109 = scmp.eq.s32.totalorder %s24, 1
    %p110 = por %p108, %p109
    %p112 = scmp.ne.s32.totalorder %s97, %s111
    %p113 = scmp.eq.s32.totalorder %s24, 0
    %p114 = por %p112, %p113
    %s116 = sadd.s32 %s115, 1
    %p119 = scmp.eq.s32.totalorder %s18, 1
    %p120 = scmp.ne.s32.totalorder %s115, %s117
    %p121 = scmp.eq.s32.totalorder %s18, 0
    %p122 = por %p120, %p121
    %p123 = scmp.ne.s32.totalorder %s115, %s117
    %p124 = scmp.eq.s32.totalorder %s23, 1
    %p125 = por %p123, %p124
    %p126 = scmp.ne.s32.totalorder %s117, %s118
    %p127 = scmp.eq.s32.totalorder %s23, 0
    %p128 = por %p126, %p127
    %p129 = scmp.ne.s32.totalorder %s117, %s118
    %p130 = scmp.eq.s32.totalorder %s24, 1
    %p131 = por %p129, %p130
    %p133 = scmp.ne.s32.totalorder %s118, %s132
    %p134 = scmp.eq.s32.totalorder %s24, 0
    %p135 = por %p133, %p134
    %s137 = sadd.s32 %s136, 1
    %p140 = scmp.eq.s32.totalorder %s18, 1
    %p141 = scmp.ne.s32.totalorder %s136, %s138
    %p142 = scmp.eq.s32.totalorder %s18, 0
    %p143 = por %p141, %p142
    %p144 = scmp.ne.s32.totalorder %s136, %s138
    %p145 = scmp.eq.s32.totalorder %s23, 1
    %p146 = por %p144, %p145
    %p147 = scmp.ne.s32.totalorder %s138, %s139
    %p148 = scmp.eq.s32.totalorder %s23, 0
    %p149 = por %p147, %p148
    %p150 = scmp.ne.s32.totalorder %s138, %s139
    %p151 = scmp.eq.s32.totalorder %s24, 1
    %p152 = por %p150, %p151
    %p154 = scmp.ne.s32.totalorder %s139, %s153
    %p155 = scmp.eq.s32.totalorder %s24, 0
    %p156 = por %p154, %p155
    %s158 = sadd.s32 %s157, 1
    %p161 = scmp.eq.s32.totalorder %s18, 1
    %p162 = scmp.ne.s32.totalorder %s157, %s159
    %p163 = scmp.eq.s32.totalorder %s18, 0
    %p164 = por %p162, %p163
    %p165 = scmp.ne.s32.totalorder %s157, %s159
    %p166 = scmp.eq.s32.totalorder %s23, 1
    %p167 = por %p165, %p166
    %p168 = scmp.ne.s32.totalorder %s159, %s160
    %p169 = scmp.eq.s32.totalorder %s23, 0
    %p170 = por %p168, %p169
    %p171 = scmp.ne.s32.totalorder %s159, %s160
    %p172 = scmp.eq.s32.totalorder %s24, 1
    %p173 = por %p171, %p172
    %p175 = scmp.ne.s32.totalorder %s160, %s174
    %p176 = scmp.eq.s32.totalorder %s24, 0
    %p177 = por %p175, %p176
    %s179 = sadd.s32 %s178, 1
    %p182 = scmp.eq.s32.totalorder %s18, 1
    %p183 = scmp.ne.s32.totalorder %s178, %s180
    %p184 = scmp.eq.s32.totalorder %s18, 0
    %p185 = por %p183, %p184
    %p186 = scmp.ne.s32.totalorder %s178, %s180
    %p187 = scmp.eq.s32.totalorder %s23, 1
    %p188 = por %p186, %p187
    %p189 = scmp.ne.s32.totalorder %s180, %s181
    %p190 = scmp.eq.s32.totalorder %s23, 0
    %p191 = por %p189, %p190
    %p192 = scmp.ne.s32.totalorder %s180, %s181
    %p193 = scmp.eq.s32.totalorder %s24, 1
    %p194 = por %p192, %p193
    %p196 = scmp.ne.s32.totalorder %s181, %s195
    %p197 = scmp.eq.s32.totalorder %s24, 0
    %p198 = por %p196, %p197
    %s200 = sadd.s32 %s199, 1
    %p203 = scmp.eq.s32.totalorder %s18, 1
    %p204 = scmp.ne.s32.totalorder %s199, %s201
    %p205 = scmp.eq.s32.totalorder %s18, 0
    %p206 = por %p204, %p205
    %p207 = scmp.ne.s32.totalorder %s199, %s201
    %p208 = scmp.eq.s32.totalorder %s23, 1
    %p209 = por %p207, %p208
    %p210 = scmp.ne.s32.totalorder %s201, %s202
    %p211 = scmp.eq.s32.totalorder %s23, 0
    %p212 = por %p210, %p211
    %p213 = scmp.ne.s32.totalorder %s201, %s202
    %p214 = scmp.eq.s32.totalorder %s24, 1
    %p215 = por %p213, %p214
    %p217 = scmp.ne.s32.totalorder %s202, %s216
    %p218 = scmp.eq.s32.totalorder %s24, 0
    %p219 = por %p217, %p218
    %s221 = sadd.s32 %s220, 1
    %p224 = scmp.eq.s32.totalorder %s18, 1
    %p225 = scmp.ne.s32.totalorder %s220, %s222
    %p226 = scmp.eq.s32.totalorder %s18, 0
    %p227 = por %p225, %p226
    %p228 = scmp.ne.s32.totalorder %s220, %s222
    %p229 = scmp.eq.s32.totalorder %s23, 1
    %p230 = por %p228, %p229
    %p231 = scmp.ne.s32.totalorder %s222, %s223
    %p232 = scmp.eq.s32.totalorder %s23, 0
    %p233 = por %p231, %p232
    %p234 = scmp.ne.s32.totalorder %s222, %s223
    %p235 = scmp.eq.s32.totalorder %s24, 1
    %p236 = por %p234, %p235
    %p238 = scmp.ne.s32.totalorder %s223, %s237
    %p239 = scmp.eq.s32.totalorder %s24, 0
    %p240 = por %p238, %p239
    %s242 = sadd.s32 %s241, 1
    %p245 = scmp.eq.s32.totalorder %s18, 1
    %p246 = scmp.ne.s32.totalorder %s241, %s243
    %p247 = scmp.eq.s32.totalorder %s18, 0
    %p248 = por %p246, %p247
    %p249 = scmp.ne.s32.totalorder %s241, %s243
    %p250 = scmp.eq.s32.totalorder %s23, 1
    %p251 = por %p249, %p250
    %p252 = scmp.ne.s32.totalorder %s243, %s244
    %p253 = scmp.eq.s32.totalorder %s23, 0
    %p254 = por %p252, %p253
    %p255 = scmp.ne.s32.totalorder %s243, %s244
    %p256 = scmp.eq.s32.totalorder %s24, 1
    %p257 = por %p255, %p256
    %p259 = scmp.ne.s32.totalorder %s244, %s258
    %p260 = scmp.eq.s32.totalorder %s24, 0
    %p261 = por %p259, %p260
    %s263 = sadd.s32 %s262, 1
    %p266 = scmp.eq.s32.totalorder %s18, 1
    %p267 = scmp.ne.s32.totalorder %s262, %s264
    %p268 = scmp.eq.s32.totalorder %s18, 0
    %p269 = por %p267, %p268
    %p270 = scmp.ne.s32.totalorder %s262, %s264
    %p271 = scmp.eq.s32.totalorder %s23, 1
    %p272 = por %p270, %p271
    %p273 = scmp.ne.s32.totalorder %s264, %s265
    %p274 = scmp.eq.s32.totalorder %s23, 0
    %p275 = por %p273, %p274
    %p276 = scmp.ne.s32.totalorder %s264, %s265
    %p277 = scmp.eq.s32.totalorder %s24, 1
    %p278 = por %p276, %p277
    %p280 = scmp.ne.s32.totalorder %s265, %s279
    %p281 = scmp.eq.s32.totalorder %s24, 0
    %p282 = por %p280, %p281
    %s283 = ssub.s32 %s18, %s25
    %p284 = scmp.eq.s32.totalorder %s283, 0
    %s286 = sadd.s32 %s285, 1
    %s287 = scalar_select %p284, %s285, %s286
    %p290 = pneg %p284
    %p291 = scmp.eq.s32.totalorder %s18, 1
    %p292 = por %p290, %p291
    %p293 = scmp.ne.s32.totalorder %s285, %s288
    %p294 = scmp.eq.s32.totalorder %s18, 0
    %p295 = por %p293, %p294
    %p296 = scmp.ne.s32.totalorder %s285, %s288
    %p297 = scmp.eq.s32.totalorder %s23, 1
    %p298 = por %p296, %p297
    %p299 = scmp.ne.s32.totalorder %s288, %s289
    %p300 = scmp.eq.s32.totalorder %s23, 0
    %p301 = por %p299, %p300
    %p302 = scmp.ne.s32.totalorder %s288, %s289
    %p303 = scmp.eq.s32.totalorder %s24, 1
    %p304 = por %p302, %p303
    %p306 = scmp.ne.s32.totalorder %s289, %s305
    %p307 = scmp.eq.s32.totalorder %s24, 0
    %p308 = por %p306, %p307
    %p309 = scmp.le.s32.totalorder 1, %s18
    %p310 = scmp.lt.s32.totalorder %s18, 3
    %p311 = pnand %p309, %p310
    %p312 = pneg %p311
    // Predicated region
    $region9: #{_forward_impl.1} parent=5 // pred_check
      _
    $region10: #{_forward_impl.1} parent=5 // pred_check_branch
      %314 = sbr.rel (%p311) target = $region12
    $region11: #{_forward_impl.1} parent=5 // pred_region
      %s315 = ssub.s32 %s18, 1
      // Predicated region
      $region13: #{_forward_impl.1} parent=11 // pred_check
        %p316 = pneg %p65
      $region14: #{_forward_impl.1} parent=11 // pred_check_branch
        %318 = sbr.rel (%p316) target = $region16
      $region15: #{_forward_impl.1} parent=11 // pred_region
        _
      $region16: #{_forward_impl.1} parent=11 // pred_fallthru
        _
      // Predicated region
      $region17: #{_forward_impl.1} parent=11 // pred_check
        %p319 = pneg %p86
      $region18: #{_forward_impl.1} parent=11 // pred_check_branch
        %321 = sbr.rel (%p319) target = $region20
      $region19: #{_forward_impl.1} parent=11 // pred_region
        _
      $region20: #{_forward_impl.1} parent=11 // pred_fallthru
        _
      // Predicated region
      $region21: #{_forward_impl.1} parent=11 // pred_check
        %p322 = pneg %p107
      $region22: #{_forward_impl.1} parent=11 // pred_check_branch
        %324 = sbr.rel (%p322) target = $region24
      $region23: #{_forward_impl.1} parent=11 // pred_region
        _
      $region24: #{_forward_impl.1} parent=11 // pred_fallthru
        _
      // Predicated region
      $region25: #{_forward_impl.1} parent=11 // pred_check
        %p325 = pneg %p128
      $region26: #{_forward_impl.1} parent=11 // pred_check_branch
        %327 = sbr.rel (%p325) target = $region28
      $region27: #{_forward_impl.1} parent=11 // pred_region
        _
      $region28: #{_forward_impl.1} parent=11 // pred_fallthru
        _
      // Predicated region
      $region29: #{_forward_impl.1} parent=11 // pred_check
        %p328 = pneg %p149
      $region30: #{_forward_impl.1} parent=11 // pred_check_branch
        %330 = sbr.rel (%p328) target = $region32
      $region31: #{_forward_impl.1} parent=11 // pred_region
        _
      $region32: #{_forward_impl.1} parent=11 // pred_fallthru
        _
      // Predicated region
      $region33: #{_forward_impl.1} parent=11 // pred_check
        %p331 = pneg %p170
      $region34: #{_forward_impl.1} parent=11 // pred_check_branch
        %333 = sbr.rel (%p331) target = $region36
      $region35: #{_forward_impl.1} parent=11 // pred_region
        _
      $region36: #{_forward_impl.1} parent=11 // pred_fallthru
        _
      // Predicated region
      $region37: #{_forward_impl.1} parent=11 // pred_check
        %p334 = pneg %p191
      $region38: #{_forward_impl.1} parent=11 // pred_check_branch
        %336 = sbr.rel (%p334) target = $region40
      $region39: #{_forward_impl.1} parent=11 // pred_region
        _
      $region40: #{_forward_impl.1} parent=11 // pred_fallthru
        _
      // Predicated region
      $region41: #{_forward_impl.1} parent=11 // pred_check
        %p337 = pneg %p212
      $region42: #{_forward_impl.1} parent=11 // pred_check_branch
        %339 = sbr.rel (%p337) target = $region44
      $region43: #{_forward_impl.1} parent=11 // pred_region
        _
      $region44: #{_forward_impl.1} parent=11 // pred_fallthru
        _
      // Predicated region
      $region45: #{_forward_impl.1} parent=11 // pred_check
        %p340 = pneg %p233
      $region46: #{_forward_impl.1} parent=11 // pred_check_branch
        %342 = sbr.rel (%p340) target = $region48
      $region47: #{_forward_impl.1} parent=11 // pred_region
        _
      $region48: #{_forward_impl.1} parent=11 // pred_fallthru
        _
      // Predicated region
      $region49: #{_forward_impl.1} parent=11 // pred_check
        %p343 = pneg %p254
      $region50: #{_forward_impl.1} parent=11 // pred_check_branch
        %345 = sbr.rel (%p343) target = $region52
      $region51: #{_forward_impl.1} parent=11 // pred_region
        _
      $region52: #{_forward_impl.1} parent=11 // pred_fallthru
        _
      // Predicated region
      $region53: #{_forward_impl.1} parent=11 // pred_check
        %p346 = pneg %p275
      $region54: #{_forward_impl.1} parent=11 // pred_check_branch
        %348 = sbr.rel (%p346) target = $region56
      $region55: #{_forward_impl.1} parent=11 // pred_region
        _
      $region56: #{_forward_impl.1} parent=11 // pred_fallthru
        _
    $region12: #{_forward_impl.1} parent=5 // pred_fallthru
      _
    %p349 = scmp.lt.s32.totalorder %s18, 2
    // Predicated region
    $region57: #{_forward_impl.1} parent=5 // pred_check
      %p350 = pneg %p349
    $region58: #{_forward_impl.1} parent=5 // pred_check_branch
      %352 = sbr.rel (%p350) target = $region60
    $region59: #{_forward_impl.1} parent=5 // pred_region
      // Predicated region
      $region61: #{_forward_impl.1} parent=59 // pred_check
        %p353 = pneg %p38
      $region62: #{_forward_impl.1} parent=59 // pred_check_branch
        %355 = sbr.rel (%p353) target = $region64
      $region63: #{_forward_impl.1} parent=59 // pred_region
        %s356 = smul.u32 2, %s18
        %p357 = scmp.lt.s32.totalorder %s356, 3
        %s358 = scalar_select %p357, %s356, 3
        %s359 = smul.addr %s358, 2
        %s360 = smul.addr %s359, 8
        %s361 = scalar_lea.vmem %s0, %s360
        %s362 = smul.u32 2, %s18
      $region64: #{_forward_impl.1} parent=59 // pred_fallthru
        _
    $region60: #{_forward_impl.1} parent=5 // pred_fallthru
      _
    %p363 = scmp.le.s32.totalorder 1, %s18
    %p364 = scmp.lt.s32.totalorder %s18, 3
    %p365 = pnand %p363, %p364
    %p366 = pneg %p365
    // Predicated region
    $region65: #{_forward_impl.1} parent=5 // pred_check
      _
    $region66: #{_forward_impl.1} parent=5 // pred_check_branch
      %368 = sbr.rel (%p365) target = $region68
    $region67: #{_forward_impl.1} parent=5 // pred_region
      %s369 = ssub.s32 %s18, 1
      %s370 = smul.u32 2, %s23
      %p371 = scmp.lt.s32.totalorder %s370, 3
      %s372 = scalar_select %p371, %s370, 3
      %s373 = smul.addr %s372, 2
      %s374 = smul.addr %s373, 8
      %s375 = scalar_lea.vmem %s0, %s374
      %p376 = pneg %p44
      %p377 = pneg %p41
      %p378 = pneg %p65
      %p379 = pneg %p62
      %p380 = pneg %p86
      %p381 = pneg %p83
      %p382 = pneg %p107
      %p383 = pneg %p104
      %p384 = pneg %p128
      %p385 = pneg %p125
      %p386 = pneg %p149
      %p387 = pneg %p146
      %p388 = pneg %p170
      %p389 = pneg %p167
      %p390 = pneg %p191
      %p391 = pneg %p188
      %p392 = pneg %p212
      %p393 = pneg %p209
      %p394 = pneg %p233
      %p395 = pneg %p230
      %p396 = pneg %p254
      %p397 = pneg %p251
      %p398 = pneg %p275
      %p399 = pneg %p272
      %p400 = pneg %p301
      %p401 = pneg %p298
      %s402 = smul.u32 2, %s23
      %p403 = scmp.lt.s32.totalorder %s402, 3
      %s404 = scalar_select %p403, %s402, 3
      %s405 = smul.addr %s404, 2
      %s406 = smul.addr %s405, 8
      %s407 = scalar_lea.vmem %s12, %s406
      %s408 = smul.u32 2, %s23
      %p409 = scmp.lt.s32.totalorder %s408, 3
      %s410 = scalar_select %p409, %s408, 3
      %s411 = smul.addr %s410, 2
      %s412 = smul.addr %s411, 8
      %s413 = scalar_lea.vmem %s0, %s412
      %s414 = smul.u32 2, %s23
      %s415 = smul.u32 2, %s23
      %p416 = scmp.lt.s32.totalorder %s415, 3
      %s417 = scalar_select %p416, %s415, 3
      %s418 = smul.addr %s417, 2
      %s419 = smul.addr %s418, 8
      %s420 = scalar_lea.vmem %s12, %s419
      %s421 = smul.u32 2, %s23
      %v423 = vld [vmem:[%s413] sm:$0xff]
      %v424 = vld [vmem:[%s413 + $0x8] sm:$0xff]
      %s425 = scalar_lea.vmem %s413, 16
      %v426 = vld [vmem:[%s425] sm:$0xff]
      %v427 = vld [vmem:[%s425 + $0x8] sm:$0xff]
      %v428 = vld [vmem:[%s8] ss:$8 sm:$0xf]
      %s429 = scalar_lea.vmem %s8, 1
      %v430 = vld [vmem:[%s429] ss:$8 sm:$0xf]
      %s431 = scalar_lea.vmem %s8, 2
      %v432 = vld [vmem:[%s431] ss:$8 sm:$0xf]
      %s433 = scalar_lea.vmem %s8, 3
      %v434 = vld [vmem:[%s433] ss:$8 sm:$0xf]
      %s435 = scalar_lea.vmem %s8, 5
      %v436 = vld [vmem:[%s435] ss:$8 sm:$0xf]
      %s437 = scalar_lea.vmem %s8, 6
      %v438 = vld [vmem:[%s437] ss:$8 sm:$0xf]
      %s439 = scalar_lea.vmem %s8, 7
      %v440 = vld [vmem:[%s439] ss:$8 sm:$0xf]
      %s441 = scalar_lea.vmem %s8, 32
      %v442 = vld [vmem:[%s441] ss:$8 sm:$0xf]
      %v443 = vld [vmem:[%s9] sm:$0x1]
      %v444 = vld [vmem:[%s9 + $0x1] sm:$0x1]
      %v445 = vld [vmem:[%s9 + $0x2] sm:$0x1]
      %v446 = vld [vmem:[%s9 + $0x3] sm:$0x1]
      %v447 = vld [vmem:[%s9 + $0x5] sm:$0x1]
      %v448 = vld [vmem:[%s9 + $0x6] sm:$0x1]
      %v449 = vld [vmem:[%s9 + $0x7] sm:$0x1]
      %v450 = vld [vmem:[%s9 + $0x8] sm:$0x1]
      %452 = vrot.lane.b32.xlu0 %v427, 17
      %v453 = vpop.permute.xlu0 %452
      %458 = vrot.lane.b32.xlu0 %v423, 17
      %v459 = vpop.permute.xlu0 %458
      %460 = vrot.lane.b32.xlu0 %v424, 17
      %v461 = vpop.permute.xlu0 %460
      %462 = vrot.lane.b32.xlu0 %v426, 17
      %v463 = vpop.permute.xlu0 %462
      %vm464 = vcmask 138240
      %v465 = vsel %vm464, %v459, %v461
      %v466 = vsel %vm464, %v461, %v463
      %v467 = vsel %vm464, %v463, %v453
      %v472 = vsel %vm464, %v453, %v459
      %v474 = vlaneseq
      %v475 = vshrl.u32 %v474, 7
      %v476 = vsub.s32 0, %v475
      %v477 = vrot.slane %v428, %v476
      %v478 = vlaneseq
      %v479 = vshrl.u32 %v478, 7
      %v480 = vsub.s32 1, %v479
      %v481 = vrot.slane %v428, %v480
      %v482 = vlaneseq
      %v483 = vshrl.u32 %v482, 7
      %v484 = vsub.s32 2, %v483
      %v485 = vrot.slane %v428, %v484
      %v486 = vlaneseq
      %v487 = vshrl.u32 %v486, 7
      %v488 = vsub.s32 3, %v487
      %v489 = vrot.slane %v428, %v488
      %v494 = vmul.f32 %v472, %v477
      %v495 = vmul.f32 %v465, %v481
      %v496 = vmul.f32 %v466, %v485
      %v497 = vmul.f32 %v467, %v489
      %498 = vrot.lane.b32.xlu0 %v427, 16
      %v499 = vpop.permute.xlu0 %498
      %501 = vrot.lane.b32.xlu0 %v423, 16
      %v502 = vpop.permute.xlu0 %501
      %503 = vrot.lane.b32.xlu0 %v424, 16
      %v504 = vpop.permute.xlu0 %503
      %505 = vrot.lane.b32.xlu0 %v426, 16
      %v506 = vpop.permute.xlu0 %505
      %vm507 = vcmask 130048
      %v508 = vsel %vm507, %v502, %v504
      %v509 = vsel %vm507, %v504, %v506
      %v510 = vsel %vm507, %v506, %v499
      %v515 = vsel %vm507, %v499, %v502
      %v517 = vlaneseq
      %v518 = vshrl.u32 %v517, 7
      %v519 = vsub.s32 0, %v518
      %v520 = vrot.slane %v430, %v519
      %v521 = vlaneseq
      %v522 = vshrl.u32 %v521, 7
      %v523 = vsub.s32 1, %v522
      %v524 = vrot.slane %v430, %v523
      %v525 = vlaneseq
      %v526 = vshrl.u32 %v525, 7
      %v527 = vsub.s32 2, %v526
      %v528 = vrot.slane %v430, %v527
      %v529 = vlaneseq
      %v530 = vshrl.u32 %v529, 7
      %v531 = vsub.s32 3, %v530
      %v532 = vrot.slane %v430, %v531
      %v537 = vmul.f32 %v515, %v520
      %v538 = vmul.f32 %v508, %v524
      %v539 = vmul.f32 %v509, %v528
      %v540 = vmul.f32 %v510, %v532
      %541 = vrot.lane.b32.xlu0 %v427, 15
      %v542 = vpop.permute.xlu0 %541
      %544 = vrot.lane.b32.xlu0 %v423, 15
      %v545 = vpop.permute.xlu0 %544
      %546 = vrot.lane.b32.xlu0 %v424, 15
      %v547 = vpop.permute.xlu0 %546
      %548 = vrot.lane.b32.xlu0 %v426, 15
      %v549 = vpop.permute.xlu0 %548
      %vm550 = vcmask 121856
      %v551 = vsel %vm550, %v545, %v547
      %v552 = vsel %vm550, %v547, %v549
      %v553 = vsel %vm550, %v549, %v542
      %v558 = vsel %vm550, %v542, %v545
      %v560 = vlaneseq
      %v561 = vshrl.u32 %v560, 7
      %v562 = vsub.s32 0, %v561
      %v563 = vrot.slane %v432, %v562
      %v564 = vlaneseq
      %v565 = vshrl.u32 %v564, 7
      %v566 = vsub.s32 1, %v565
      %v567 = vrot.slane %v432, %v566
      %v568 = vlaneseq
      %v569 = vshrl.u32 %v568, 7
      %v570 = vsub.s32 2, %v569
      %v571 = vrot.slane %v432, %v570
      %v572 = vlaneseq
      %v573 = vshrl.u32 %v572, 7
      %v574 = vsub.s32 3, %v573
      %v575 = vrot.slane %v432, %v574
      %v580 = vmul.f32 %v558, %v563
      %v581 = vmul.f32 %v551, %v567
      %v582 = vmul.f32 %v552, %v571
      %v583 = vmul.f32 %v553, %v575
      %584 = vrot.lane.b32.xlu0 %v427, 1
      %v585 = vpop.permute.xlu0 %584
      %587 = vrot.lane.b32.xlu0 %v423, 1
      %v588 = vpop.permute.xlu0 %587
      %589 = vrot.lane.b32.xlu0 %v424, 1
      %v590 = vpop.permute.xlu0 %589
      %591 = vrot.lane.b32.xlu0 %v426, 1
      %v592 = vpop.permute.xlu0 %591
      %vm593 = vcmask 7168
      %v594 = vsel %vm593, %v588, %v590
      %v595 = vsel %vm593, %v590, %v592
      %v596 = vsel %vm593, %v592, %v585
      %v601 = vsel %vm593, %v585, %v588
      %v603 = vlaneseq
      %v604 = vshrl.u32 %v603, 7
      %v605 = vsub.s32 0, %v604
      %v606 = vrot.slane %v434, %v605
      %v607 = vlaneseq
      %v608 = vshrl.u32 %v607, 7
      %v609 = vsub.s32 1, %v608
      %v610 = vrot.slane %v434, %v609
      %v611 = vlaneseq
      %v612 = vshrl.u32 %v611, 7
      %v613 = vsub.s32 2, %v612
      %v614 = vrot.slane %v434, %v613
      %v615 = vlaneseq
      %v616 = vshrl.u32 %v615, 7
      %v617 = vsub.s32 3, %v616
      %v618 = vrot.slane %v434, %v617
      %v623 = vmul.f32 %v601, %v606
      %v624 = vmul.f32 %v594, %v610
      %v625 = vmul.f32 %v595, %v614
      %v626 = vmul.f32 %v596, %v618
      %627 = vrot.lane.b32.xlu0 %v423, 127
      %v628 = vpop.permute.xlu0 %627
      %629 = vrot.lane.b32.xlu0 %v424, 127
      %v630 = vpop.permute.xlu0 %629
      %631 = vrot.lane.b32.xlu0 %v426, 127
      %v632 = vpop.permute.xlu0 %631
      %633 = vrot.lane.b32.xlu0 %v427, 127
      %v634 = vpop.permute.xlu0 %633
      %vm635 = vcmask 1039360
      %v636 = vsel %vm635, %v628, %v630
      %v637 = vsel %vm635, %v630, %v632
      %v638 = vsel %vm635, %v632, %v634
      %v644 = vsel %vm635, %v634, %v628
      %v646 = vlaneseq
      %v647 = vshrl.u32 %v646, 7
      %v648 = vsub.s32 0, %v647
      %v649 = vrot.slane %v436, %v648
      %v650 = vlaneseq
      %v651 = vshrl.u32 %v650, 7
      %v652 = vsub.s32 1, %v651
      %v653 = vrot.slane %v436, %v652
      %v654 = vlaneseq
      %v655 = vshrl.u32 %v654, 7
      %v656 = vsub.s32 2, %v655
      %v657 = vrot.slane %v436, %v656
      %v658 = vlaneseq
      %v659 = vshrl.u32 %v658, 7
      %v660 = vsub.s32 3, %v659
      %v661 = vrot.slane %v436, %v660
      %v666 = vmul.f32 %v636, %v649
      %v667 = vmul.f32 %v637, %v653
      %v668 = vmul.f32 %v638, %v657
      %v669 = vmul.f32 %v644, %v661
      %670 = vrot.lane.b32.xlu0 %v423, 113
      %v671 = vpop.permute.xlu0 %670
      %672 = vrot.lane.b32.xlu0 %v424, 113
      %v673 = vpop.permute.xlu0 %672
      %674 = vrot.lane.b32.xlu0 %v426, 113
      %v675 = vpop.permute.xlu0 %674
      %676 = vrot.lane.b32.xlu0 %v427, 113
      %v677 = vpop.permute.xlu0 %676
      %vm678 = vcmask 924672
      %v679 = vsel %vm678, %v671, %v673
      %v680 = vsel %vm678, %v673, %v675
      %v681 = vsel %vm678, %v675, %v677
      %v687 = vsel %vm678, %v677, %v671
      %v689 = vlaneseq
      %v690 = vshrl.u32 %v689, 7
      %v691 = vsub.s32 0, %v690
      %v692 = vrot.slane %v438, %v691
      %v693 = vlaneseq
      %v694 = vshrl.u32 %v693, 7
      %v695 = vsub.s32 1, %v694
      %v696 = vrot.slane %v438, %v695
      %v697 = vlaneseq
      %v698 = vshrl.u32 %v697, 7
      %v699 = vsub.s32 2, %v698
      %v700 = vrot.slane %v438, %v699
      %v701 = vlaneseq
      %v702 = vshrl.u32 %v701, 7
      %v703 = vsub.s32 3, %v702
      %v704 = vrot.slane %v438, %v703
      %v709 = vmul.f32 %v679, %v692
      %v710 = vmul.f32 %v680, %v696
      %v711 = vmul.f32 %v681, %v700
      %v712 = vmul.f32 %v687, %v704
      %713 = vrot.lane.b32.xlu0 %v423, 112
      %v714 = vpop.permute.xlu0 %713
      %715 = vrot.lane.b32.xlu0 %v424, 112
      %v716 = vpop.permute.xlu0 %715
      %717 = vrot.lane.b32.xlu0 %v426, 112
      %v718 = vpop.permute.xlu0 %717
      %719 = vrot.lane.b32.xlu0 %v427, 112
      %v720 = vpop.permute.xlu0 %719
      %vm721 = vcmask 916480
      %v722 = vsel %vm721, %v714, %v716
      %v723 = vsel %vm721, %v716, %v718
      %v724 = vsel %vm721, %v718, %v720
      %v730 = vsel %vm721, %v720, %v714
      %v732 = vlaneseq
      %v733 = vshrl.u32 %v732, 7
      %v734 = vsub.s32 0, %v733
      %v735 = vrot.slane %v440, %v734
      %v736 = vlaneseq
      %v737 = vshrl.u32 %v736, 7
      %v738 = vsub.s32 1, %v737
      %v739 = vrot.slane %v440, %v738
      %v740 = vlaneseq
      %v741 = vshrl.u32 %v740, 7
      %v742 = vsub.s32 2, %v741
      %v743 = vrot.slane %v440, %v742
      %v744 = vlaneseq
      %v745 = vshrl.u32 %v744, 7
      %v746 = vsub.s32 3, %v745
      %v747 = vrot.slane %v440, %v746
      %v752 = vmul.f32 %v722, %v735
      %v753 = vmul.f32 %v723, %v739
      %v754 = vmul.f32 %v724, %v743
      %v755 = vmul.f32 %v730, %v747
      %756 = vrot.lane.b32.xlu0 %v423, 111
      %v757 = vpop.permute.xlu0 %756
      %758 = vrot.lane.b32.xlu0 %v424, 111
      %v759 = vpop.permute.xlu0 %758
      %760 = vrot.lane.b32.xlu0 %v426, 111
      %v761 = vpop.permute.xlu0 %760
      %762 = vrot.lane.b32.xlu0 %v427, 111
      %v763 = vpop.permute.xlu0 %762
      %vm764 = vcmask 908288
      %v765 = vsel %vm764, %v757, %v759
      %v766 = vsel %vm764, %v759, %v761
      %v767 = vsel %vm764, %v761, %v763
      %v773 = vsel %vm764, %v763, %v757
      %v775 = vlaneseq
      %v776 = vshrl.u32 %v775, 7
      %v777 = vsub.s32 0, %v776
      %v778 = vrot.slane %v442, %v777
      %v779 = vlaneseq
      %v780 = vshrl.u32 %v779, 7
      %v781 = vsub.s32 1, %v780
      %v782 = vrot.slane %v442, %v781
      %v783 = vlaneseq
      %v784 = vshrl.u32 %v783, 7
      %v785 = vsub.s32 2, %v784
      %v786 = vrot.slane %v442, %v785
      %v787 = vlaneseq
      %v788 = vshrl.u32 %v787, 7
      %v789 = vsub.s32 3, %v788
      %v790 = vrot.slane %v442, %v789
      %v795 = vmul.f32 %v765, %v778
      %v796 = vmul.f32 %v766, %v782
      %v797 = vmul.f32 %v767, %v786
      %v798 = vmul.f32 %v773, %v790
      %v799 = vpack.c.bf16 %v537, %v494
      %v800 = vpack.c.bf16 %v538, %v495
      %v801 = vpack.c.bf16 %v539, %v496
      %v802 = vpack.c.bf16 %v540, %v497
      %v803 = vpack.c.bf16 %v623, %v580
      %v804 = vpack.c.bf16 %v624, %v581
      %v805 = vpack.c.bf16 %v625, %v582
      %v806 = vpack.c.bf16 %v626, %v583
      %v807 = vpack.c.bf16 %v666, %v423
      %v808 = vpack.c.bf16 %v667, %v424
      %v809 = vpack.c.bf16 %v668, %v426
      %v810 = vpack.c.bf16 %v669, %v427
      %v811 = vpack.c.bf16 %v752, %v709
      %v812 = vpack.c.bf16 %v753, %v710
      %v813 = vpack.c.bf16 %v754, %v711
      %v814 = vpack.c.bf16 %v755, %v712
      %v815 = vpack.c.bf16 1.0, %v795
      %v816 = vpack.c.bf16 1.0, %v796
      %v817 = vpack.c.bf16 1.0, %v797
      %v818 = vpack.c.bf16 1.0, %v798
      %v819 = vld [vmem:[%s1] sm:$0xf]
      %vm820 = vcmask 596992
      %v822 = vsel %vm820, %v819, 0
      %vm824 = vcmask 1043456
      %vm825 = vcmask 1044480
      %v826 = vsel %vm824, 4294967295, 65535
      %v827 = vsel %vm825, %v826, 0
      %v829 = vand.u32 %v815, %v827
      %v832 = vand.u32 %v816, %v827
      %v835 = vand.u32 %v817, %v827
      %v838 = vand.u32 %v818, %v827
      %840 = vmatprep.subr.bf16.mxu0 %v800
      %841 = vmatpush1.bf16.msra.mxu0 %v799
      %842 = vmatprep.subr.bf16.mxu0 %v804
      %843 = vmatpush1.bf16.msra.mxu0 %v803
      %844 = vmatprep.subr.bf16.mxu0 %v808
      %845 = vmatpush1.bf16.msra.mxu0 %v807
      %846 = vmatprep.subr.bf16.mxu0 %v812
      %847 = vmatpush1.bf16.msra.mxu0 %v811
      %848 = vmatprep.subr.bf16.mxu0 %v832
      %849 = vmatpush1.bf16.msra.mxu0 %v829
      %850 = vmatprep.subr.bf16.mxu0 0
      %851 = vmatpush1.bf16.msra.mxu0 0
      %852 = vmatprep.subr.bf16.mxu0 0
      %853 = vmatpush1.bf16.msra.mxu0 0
      %854 = vmatprep.subr.bf16.mxu0 0
      %855 = vmatpush1.bf16.msra.mxu0 0
      %856 = vmatprep.subr.bf16.mxu0 0
      %857 = vmatpush1.bf16.msra.mxu0 0
      %858 = vmatprep.subr.bf16.mxu0 0
      %859 = vmatpush1.bf16.msra.mxu0 0
      %860 = vmatprep.subr.bf16.mxu0 0
      %861 = vmatpush1.bf16.msra.mxu0 0
      %862 = vmatprep.subr.bf16.mxu0 0
      %863 = vmatpush1.bf16.msra.mxu0 0
      %864 = vmatprep.subr.bf16.mxu0 0
      %865 = vmatpush1.bf16.msra.mxu0 0
      %866 = vmatprep.subr.bf16.mxu0 0
      %867 = vmatpush1.bf16.msra.mxu0 0
      %868 = vmatprep.subr.bf16.mxu0 0
      %869 = vmatpush1.bf16.msra.mxu0 0
      %870 = vmatprep.subr.bf16.mxu0 0
      %871 = vmatpush1.bf16.msra.mxu0 0
      %872 = vmatprep.mubr.bf16.mxu0 0
      %873 = vmatmul.mubr.bf16.gmra.mrb[0].mxu0 %v822
      %v874 = vpop.f32.mrb[0].mxu0
      %v875 = vadd.f32 0.0, %v874
      %v876 = vpop.f32.mrb[0].mxu0
      %v877 = vadd.f32 0.0, %v876
      %v878 = vpop.f32.mrb[0].mxu0
      %v879 = vpop.f32.mrb[0].mxu0
      %880 = vdwg.mxu0
      %881 = vmatprep.subr.bf16.mxu0 %v802
      %882 = vmatpush1.bf16.msra.mxu0 %v801
      %883 = vmatprep.subr.bf16.mxu0 %v806
      %884 = vmatpush1.bf16.msra.mxu0 %v805
      %885 = vmatprep.subr.bf16.mxu0 %v810
      %886 = vmatpush1.bf16.msra.mxu0 %v809
      %887 = vmatprep.subr.bf16.mxu0 %v814
      %888 = vmatpush1.bf16.msra.mxu0 %v813
      %889 = vmatprep.subr.bf16.mxu0 %v838
      %890 = vmatpush1.bf16.msra.mxu0 %v835
      %891 = vmatprep.subr.bf16.mxu0 0
      %892 = vmatpush1.bf16.msra.mxu0 0
      %893 = vmatprep.subr.bf16.mxu0 0
      %894 = vmatpush1.bf16.msra.mxu0 0
      %895 = vmatprep.subr.bf16.mxu0 0
      %896 = vmatpush1.bf16.msra.mxu0 0
      %897 = vmatprep.subr.bf16.mxu0 0
      %898 = vmatpush1.bf16.msra.mxu0 0
      %899 = vmatprep.subr.bf16.mxu0 0
      %900 = vmatpush1.bf16.msra.mxu0 0
      %901 = vmatprep.subr.bf16.mxu0 0
      %902 = vmatpush1.bf16.msra.mxu0 0
      %903 = vmatprep.subr.bf16.mxu0 0
      %904 = vmatpush1.bf16.msra.mxu0 0
      %905 = vmatprep.subr.bf16.mxu0 0
      %906 = vmatpush1.bf16.msra.mxu0 0
      %907 = vmatprep.subr.bf16.mxu0 0
      %908 = vmatpush1.bf16.msra.mxu0 0
      %909 = vmatprep.subr.bf16.mxu0 0
      %910 = vmatpush1.bf16.msra.mxu0 0
      %911 = vmatprep.subr.bf16.mxu0 0
      %912 = vmatpush1.bf16.msra.mxu0 0
      %913 = vmatprep.mubr.bf16.mxu0 0
      %914 = vmatmul.mubr.bf16.gmra.mrb[0].mxu0 %v822
      %v915 = vpop.f32.mrb[0].mxu0
      %v916 = vadd.f32 0.0, %v915
      %v917 = vpop.f32.mrb[0].mxu0
      %v918 = vadd.f32 0.0, %v917
      %v919 = vpop.f32.mrb[0].mxu0
      %v920 = vpop.f32.mrb[0].mxu0
      %921 = vdwg.mxu0
      %v922 = vmax.f32 %v875, 0.0
      %v923 = vmax.f32 %v877, 0.0
      %v924 = vmax.f32 %v916, 0.0
      %v925 = vmax.f32 %v918, 0.0
      %927 = vrot.lane.b32.xlu0 %v925, 17
      %v928 = vpop.permute.xlu0 %927
      %933 = vrot.lane.b32.xlu0 %v922, 17
      %v934 = vpop.permute.xlu0 %933
      %935 = vrot.lane.b32.xlu0 %v923, 17
      %v936 = vpop.permute.xlu0 %935
      %937 = vrot.lane.b32.xlu0 %v924, 17
      %v938 = vpop.permute.xlu0 %937
      %v939 = vsel %vm464, %v934, %v936
      %v940 = vsel %vm464, %v936, %v938
      %v941 = vsel %vm464, %v938, %v928
      %v946 = vsel %vm464, %v928, %v934
      %v947 = vmul.f32 %v946, %v477
      %v948 = vmul.f32 %v939, %v481
      %v949 = vmul.f32 %v940, %v485
      %v950 = vmul.f32 %v941, %v489
      %951 = vrot.lane.b32.xlu0 %v925, 16
      %v952 = vpop.permute.xlu0 %951
      %954 = vrot.lane.b32.xlu0 %v922, 16
      %v955 = vpop.permute.xlu0 %954
      %956 = vrot.lane.b32.xlu0 %v923, 16
      %v957 = vpop.permute.xlu0 %956
      %958 = vrot.lane.b32.xlu0 %v924, 16
      %v959 = vpop.permute.xlu0 %958
      %v960 = vsel %vm507, %v955, %v957
      %v961 = vsel %vm507, %v957, %v959
      %v962 = vsel %vm507, %v959, %v952
      %v967 = vsel %vm507, %v952, %v955
      %v968 = vmul.f32 %v967, %v520
      %v969 = vmul.f32 %v960, %v524
      %v970 = vmul.f32 %v961, %v528
      %v971 = vmul.f32 %v962, %v532
      %972 = vrot.lane.b32.xlu0 %v925, 15
      %v973 = vpop.permute.xlu0 %972
      %975 = vrot.lane.b32.xlu0 %v922, 15
      %v976 = vpop.permute.xlu0 %975
      %977 = vrot.lane.b32.xlu0 %v923, 15
      %v978 = vpop.permute.xlu0 %977
      %979 = vrot.lane.b32.xlu0 %v924, 15
      %v980 = vpop.permute.xlu0 %979
      %v981 = vsel %vm550, %v976, %v978
      %v982 = vsel %vm550, %v978, %v980
      %v983 = vsel %vm550, %v980, %v973
      %v988 = vsel %vm550, %v973, %v976
      %v989 = vmul.f32 %v988, %v563
      %v990 = vmul.f32 %v981, %v567
      %v991 = vmul.f32 %v982, %v571
      %v992 = vmul.f32 %v983, %v575
      %993 = vrot.lane.b32.xlu0 %v925, 1
      %v994 = vpop.permute.xlu0 %993
      %996 = vrot.lane.b32.xlu0 %v922, 1
      %v997 = vpop.permute.xlu0 %996
      %998 = vrot.lane.b32.xlu0 %v923, 1
      %v999 = vpop.permute.xlu0 %998
      %1000 = vrot.lane.b32.xlu0 %v924, 1
      %v1001 = vpop.permute.xlu0 %1000
      %v1002 = vsel %vm593, %v997, %v999
      %v1003 = vsel %vm593, %v999, %v1001
      %v1004 = vsel %vm593, %v1001, %v994
      %v1009 = vsel %vm593, %v994, %v997
      %v1010 = vmul.f32 %v1009, %v606
      %v1011 = vmul.f32 %v1002, %v610
      %v1012 = vmul.f32 %v1003, %v614
      %v1013 = vmul.f32 %v1004, %v618
      %1014 = vrot.lane.b32.xlu0 %v922, 127
      %v1015 = vpop.permute.xlu0 %1014
      %1016 = vrot.lane.b32.xlu0 %v923, 127
      %v1017 = vpop.permute.xlu0 %1016
      %1018 = vrot.lane.b32.xlu0 %v924, 127
      %v1019 = vpop.permute.xlu0 %1018
      %1020 = vrot.lane.b32.xlu0 %v925, 127
      %v1021 = vpop.permute.xlu0 %1020
      %v1022 = vsel %vm635, %v1015, %v1017
      %v1023 = vsel %vm635, %v1017, %v1019
      %v1024 = vsel %vm635, %v1019, %v1021
      %v1030 = vsel %vm635, %v1021, %v1015
      %v1031 = vmul.f32 %v1022, %v649
      %v1032 = vmul.f32 %v1023, %v653
      %v1033 = vmul.f32 %v1024, %v657
      %v1034 = vmul.f32 %v1030, %v661
      %1035 = vrot.lane.b32.xlu0 %v922, 113
      %v1036 = vpop.permute.xlu0 %1035
      %1037 = vrot.lane.b32.xlu0 %v923, 113
      %v1038 = vpop.permute.xlu0 %1037
      %1039 = vrot.lane.b32.xlu0 %v924, 113
      %v1040 = vpop.permute.xlu0 %1039
      %1041 = vrot.lane.b32.xlu0 %v925, 113
      %v1042 = vpop.permute.xlu0 %1041
      %v1043 = vsel %vm678, %v1036, %v1038
      %v1044 = vsel %vm678, %v1038, %v1040
      %v1045 = vsel %vm678, %v1040, %v1042
      %v1051 = vsel %vm678, %v1042, %v1036
      %v1052 = vmul.f32 %v1043, %v692
      %v1053 = vmul.f32 %v1044, %v696
      %v1054 = vmul.f32 %v1045, %v700
      %v1055 = vmul.f32 %v1051, %v704
      %1056 = vrot.lane.b32.xlu0 %v922, 112
      %v1057 = vpop.permute.xlu0 %1056
      %1058 = vrot.lane.b32.xlu0 %v923, 112
      %v1059 = vpop.permute.xlu0 %1058
      %1060 = vrot.lane.b32.xlu0 %v924, 112
      %v1061 = vpop.permute.xlu0 %1060
      %1062 = vrot.lane.b32.xlu0 %v925, 112
      %v1063 = vpop.permute.xlu0 %1062
      %v1064 = vsel %vm721, %v1057, %v1059
      %v1065 = vsel %vm721, %v1059, %v1061
      %v1066 = vsel %vm721, %v1061, %v1063
      %v1072 = vsel %vm721, %v1063, %v1057
      %v1073 = vmul.f32 %v1064, %v735
      %v1074 = vmul.f32 %v1065, %v739
      %v1075 = vmul.f32 %v1066, %v743
      %v1076 = vmul.f32 %v1072, %v747
      %1077 = vrot.lane.b32.xlu0 %v922, 111
      %v1078 = vpop.permute.xlu0 %1077
      %1079 = vrot.lane.b32.xlu0 %v923, 111
      %v1080 = vpop.permute.xlu0 %1079
      %1081 = vrot.lane.b32.xlu0 %v924, 111
      %v1082 = vpop.permute.xlu0 %1081
      %1083 = vrot.lane.b32.xlu0 %v925, 111
      %v1084 = vpop.permute.xlu0 %1083
      %v1085 = vsel %vm764, %v1078, %v1080
      %v1086 = vsel %vm764, %v1080, %v1082
      %v1087 = vsel %vm764, %v1082, %v1084
      %v1093 = vsel %vm764, %v1084, %v1078
      %v1094 = vmul.f32 %v1085, %v778
      %v1095 = vmul.f32 %v1086, %v782
      %v1096 = vmul.f32 %v1087, %v786
      %v1097 = vmul.f32 %v1093, %v790
      %v1098 = vpack.c.bf16 %v968, %v947
      %v1099 = vpack.c.bf16 %v969, %v948
      %v1100 = vpack.c.bf16 %v970, %v949
      %v1101 = vpack.c.bf16 %v971, %v950
      %v1102 = vpack.c.bf16 %v1010, %v989
      %v1103 = vpack.c.bf16 %v1011, %v990
      %v1104 = vpack.c.bf16 %v1012, %v991
      %v1105 = vpack.c.bf16 %v1013, %v992
      %v1106 = vpack.c.bf16 %v1031, %v922
      %v1107 = vpack.c.bf16 %v1032, %v923
      %v1108 = vpack.c.bf16 %v1033, %v924
      %v1109 = vpack.c.bf16 %v1034, %v925
      %v1110 = vpack.c.bf16 %v1073, %v1052
      %v1111 = vpack.c.bf16 %v1074, %v1053
      %v1112 = vpack.c.bf16 %v1075, %v1054
      %v1113 = vpack.c.bf16 %v1076, %v1055
      %v1114 = vpack.c.bf16 1.0, %v1094
      %v1115 = vpack.c.bf16 1.0, %v1095
      %v1116 = vpack.c.bf16 1.0, %v1096
      %v1117 = vpack.c.bf16 1.0, %v1097
      %v1118 = vld [vmem:[%s2] sm:$0xf]
      %v1120 = vsel %vm820, %v1118, 0
      %v1123 = vand.u32 %v1114, %v827
      %v1126 = vand.u32 %v1115, %v827
      %v1129 = vand.u32 %v1116, %v827
      %v1132 = vand.u32 %v1117, %v827
      %1134 = vmatprep.subr.bf16.mxu0 %v1099
      %1135 = vmatpush1.bf16.msra.mxu0 %v1098
      %1136 = vmatprep.subr.bf16.mxu0 %v1103
      %1137 = vmatpush1.bf16.msra.mxu0 %v1102
      %1138 = vmatprep.subr.bf16.mxu0 %v1107
      %1139 = vmatpush1.bf16.msra.mxu0 %v1106
      %1140 = vmatprep.subr.bf16.mxu0 %v1111
      %1141 = vmatpush1.bf16.msra.mxu0 %v1110
      %1142 = vmatprep.subr.bf16.mxu0 %v1126
      %1143 = vmatpush1.bf16.msra.mxu0 %v1123
      %1144 = vmatprep.subr.bf16.mxu0 0
      %1145 = vmatpush1.bf16.msra.mxu0 0
      %1146 = vmatprep.subr.bf16.mxu0 0
      %1147 = vmatpush1.bf16.msra.mxu0 0
      %1148 = vmatprep.subr.bf16.mxu0 0
      %1149 = vmatpush1.bf16.msra.mxu0 0
      %1150 = vmatprep.subr.bf16.mxu0 0
      %1151 = vmatpush1.bf16.msra.mxu0 0
      %1152 = vmatprep.subr.bf16.mxu0 0
      %1153 = vmatpush1.bf16.msra.mxu0 0
      %1154 = vmatprep.subr.bf16.mxu0 0
      %1155 = vmatpush1.bf16.msra.mxu0 0
      %1156 = vmatprep.subr.bf16.mxu0 0
      %1157 = vmatpush1.bf16.msra.mxu0 0
      %1158 = vmatprep.subr.bf16.mxu0 0
      %1159 = vmatpush1.bf16.msra.mxu0 0
      %1160 = vmatprep.subr.bf16.mxu0 0
      %1161 = vmatpush1.bf16.msra.mxu0 0
      %1162 = vmatprep.subr.bf16.mxu0 0
      %1163 = vmatpush1.bf16.msra.mxu0 0
      %1164 = vmatprep.subr.bf16.mxu0 0
      %1165 = vmatpush1.bf16.msra.mxu0 0
      %1166 = vmatprep.mubr.bf16.mxu0 0
      %1167 = vmatmul.mubr.bf16.gmra.mrb[0].mxu0 %v1120
      %v1168 = vpop.f32.mrb[0].mxu0
      %v1169 = vadd.f32 0.0, %v1168
      %v1170 = vpop.f32.mrb[0].mxu0
      %v1171 = vadd.f32 0.0, %v1170
      %v1172 = vpop.f32.mrb[0].mxu0
      %v1173 = vpop.f32.mrb[0].mxu0
      %1174 = vdwg.mxu0
      %1175 = vmatprep.subr.bf16.mxu0 %v1101
      %1176 = vmatpush1.bf16.msra.mxu0 %v1100
      %1177 = vmatprep.subr.bf16.mxu0 %v1105
      %1178 = vmatpush1.bf16.msra.mxu0 %v1104
      %1179 = vmatprep.subr.bf16.mxu0 %v1109
      %1180 = vmatpush1.bf16.msra.mxu0 %v1108
      %1181 = vmatprep.subr.bf16.mxu0 %v1113
      %1182 = vmatpush1.bf16.msra.mxu0 %v1112
      %1183 = vmatprep.subr.bf16.mxu0 %v1132
      %1184 = vmatpush1.bf16.msra.mxu0 %v1129
      %1185 = vmatprep.subr.bf16.mxu0 0
      %1186 = vmatpush1.bf16.msra.mxu0 0
      %1187 = vmatprep.subr.bf16.mxu0 0
      %1188 = vmatpush1.bf16.msra.mxu0 0
      %1189 = vmatprep.subr.bf16.mxu0 0
      %1190 = vmatpush1.bf16.msra.mxu0 0
      %1191 = vmatprep.subr.bf16.mxu0 0
      %1192 = vmatpush1.bf16.msra.mxu0 0
      %1193 = vmatprep.subr.bf16.mxu0 0
      %1194 = vmatpush1.bf16.msra.mxu0 0
      %1195 = vmatprep.subr.bf16.mxu0 0
      %1196 = vmatpush1.bf16.msra.mxu0 0
      %1197 = vmatprep.subr.bf16.mxu0 0
      %1198 = vmatpush1.bf16.msra.mxu0 0
      %1199 = vmatprep.subr.bf16.mxu0 0
      %1200 = vmatpush1.bf16.msra.mxu0 0
      %1201 = vmatprep.subr.bf16.mxu0 0
      %1202 = vmatpush1.bf16.msra.mxu0 0
      %1203 = vmatprep.subr.bf16.mxu0 0
      %1204 = vmatpush1.bf16.msra.mxu0 0
      %1205 = vmatprep.subr.bf16.mxu0 0
      %1206 = vmatpush1.bf16.msra.mxu0 0
      %1207 = vmatprep.mubr.bf16.mxu0 0
      %1208 = vmatmul.mubr.bf16.gmra.mrb[0].mxu0 %v1120
      %v1209 = vpop.f32.mrb[0].mxu0
      %v1210 = vadd.f32 0.0, %v1209
      %v1211 = vpop.f32.mrb[0].mxu0
      %v1212 = vadd.f32 0.0, %v1211
      %v1213 = vpop.f32.mrb[0].mxu0
      %v1214 = vpop.f32.mrb[0].mxu0
      %1215 = vdwg.mxu0
      %v1216 = vmax.f32 %v1169, 0.0
      %v1217 = vmax.f32 %v1171, 0.0
      %v1218 = vmax.f32 %v1210, 0.0
      %v1219 = vmax.f32 %v1212, 0.0
      %v1220 = vpack.c.bf16 %v1216, %v1216
      %v1221 = vpack.c.bf16 %v1217, %v1217
      %v1222 = vpack.c.bf16 %v1218, %v1218
      %v1223 = vpack.c.bf16 %v1219, %v1219
      %v1224 = vld [vmem:[%s10] sm:$0xf]
      %v1225 = vld [vmem:[%s10 + $0x4] sm:$0xf]
      %v1226 = vld [vmem:[%s10 + $0x8] sm:$0xf]
      %v1227 = vld [vmem:[%s10 + $0xc] sm:$0xf]
      %v1228 = vld [vmem:[%s10 + $0x10] sm:$0xf]
      %v1229 = vld [vmem:[%s10 + $0x14] sm:$0xf]
      %v1230 = vld [vmem:[%s10 + $0x18] sm:$0xf]
      %v1231 = vld [vmem:[%s10 + $0x1c] sm:$0xf]
      %v1232 = vld [vmem:[%s10 + $0x20] sm:$0xf]
      %v1233 = vld [vmem:[%s10 + $0x24] sm:$0xf]
      %v1234 = vld [vmem:[%s10 + $0x28] sm:$0xf]
      %v1235 = vld [vmem:[%s10 + $0x2c] sm:$0xf]
      %v1236 = vld [vmem:[%s10 + $0x30] sm:$0xf]
      %v1237 = vld [vmem:[%s10 + $0x34] sm:$0xf]
      %v1238 = vld [vmem:[%s10 + $0x38] sm:$0xf]
      %v1239 = vld [vmem:[%s10 + $0x3c] sm:$0xf]
      %v1240 = vld [vmem:[%s10 + $0x40] sm:$0xf]
      %v1241 = vld [vmem:[%s10 + $0x44] sm:$0xf]
      %v1242 = vld [vmem:[%s10 + $0x48] sm:$0xf]
      %v1243 = vld [vmem:[%s10 + $0x4c] sm:$0xf]
      %v1244 = vld [vmem:[%s10 + $0x50] sm:$0xf]
      %v1245 = vld [vmem:[%s10 + $0x54] sm:$0xf]
      %v1246 = vld [vmem:[%s10 + $0x58] sm:$0xf]
      %v1247 = vld [vmem:[%s10 + $0x5c] sm:$0xf]
      %v1248 = vld [vmem:[%s10 + $0x60] sm:$0xf]
      %v1249 = vld [vmem:[%s10 + $0x64] sm:$0xf]
      %v1250 = vld [vmem:[%s10 + $0x68] sm:$0xf]
      %v1251 = vld [vmem:[%s10 + $0x6c] sm:$0xf]
      %v1252 = vld [vmem:[%s10 + $0x70] sm:$0xf]
      %v1253 = vld [vmem:[%s10 + $0x74] sm:$0xf]
      %v1254 = vld [vmem:[%s10 + $0x78] sm:$0xf]
      %v1255 = vld [vmem:[%s10 + $0x7c] sm:$0xf]
      %v1288 = vunpack.c.l.b16 %v1224
      %v1289 = vunpack.c.l.b16 %v1225
      %v1290 = vunpack.c.l.b16 %v1226
      %v1291 = vunpack.c.l.b16 %v1227
      %v1292 = vunpack.c.l.b16 %v1228
      %v1293 = vunpack.c.l.b16 %v1229
      %v1294 = vunpack.c.l.b16 %v1230
      %v1295 = vunpack.c.l.b16 %v1231
      %v1296 = vunpack.c.l.b16 %v1232
      %v1297 = vunpack.c.l.b16 %v1233
      %v1298 = vunpack.c.l.b16 %v1234
      %v1299 = vunpack.c.l.b16 %v1235
      %v1300 = vunpack.c.l.b16 %v1236
      %v1301 = vunpack.c.l.b16 %v1237
      %v1302 = vunpack.c.l.b16 %v1238
      %v1303 = vunpack.c.l.b16 %v1239
      %v1304 = vunpack.c.l.b16 %v1240
      %v1305 = vunpack.c.l.b16 %v1241
      %v1306 = vunpack.c.l.b16 %v1242
      %v1307 = vunpack.c.l.b16 %v1243
      %v1308 = vunpack.c.l.b16 %v1244
      %v1309 = vunpack.c.l.b16 %v1245
      %v1310 = vunpack.c.l.b16 %v1246
      %v1311 = vunpack.c.l.b16 %v1247
      %v1312 = vunpack.c.l.b16 %v1248
      %v1313 = vunpack.c.l.b16 %v1249
      %v1314 = vunpack.c.l.b16 %v1250
      %v1315 = vunpack.c.l.b16 %v1251
      %v1316 = vunpack.c.l.b16 %v1252
      %v1317 = vunpack.c.l.b16 %v1253
      %v1318 = vunpack.c.l.b16 %v1254
      %v1319 = vunpack.c.l.b16 %v1255
      %v1320 = vpack.c.b16 %v1289, %v1288
      %v1321 = vpack.c.b16 %v1291, %v1290
      %v1322 = vpack.c.b16 %v1293, %v1292
      %v1323 = vpack.c.b16 %v1295, %v1294
      %v1324 = vpack.c.b16 %v1297, %v1296
      %v1325 = vpack.c.b16 %v1299, %v1298
      %v1326 = vpack.c.b16 %v1301, %v1300
      %v1327 = vpack.c.b16 %v1303, %v1302
      %v1328 = vpack.c.b16 %v1305, %v1304
      %v1329 = vpack.c.b16 %v1307, %v1306
      %v1330 = vpack.c.b16 %v1309, %v1308
      %v1331 = vpack.c.b16 %v1311, %v1310
      %v1332 = vpack.c.b16 %v1313, %v1312
      %v1333 = vpack.c.b16 %v1315, %v1314
      %v1334 = vpack.c.b16 %v1317, %v1316
      %v1335 = vpack.c.b16 %v1319, %v1318
      %1352 = vmatprep.subr.bf16.mxu0 0
      %1353 = vmatpush1.bf16.msra.mxu0 %v1320
      %1354 = vmatprep.subr.bf16.mxu0 0
      %1355 = vmatpush1.bf16.msra.mxu0 %v1321
      %1356 = vmatprep.subr.bf16.mxu0 0
      %1357 = vmatpush1.bf16.msra.mxu0 %v1322
      %1358 = vmatprep.subr.bf16.mxu0 0
      %1359 = vmatpush1.bf16.msra.mxu0 %v1323
      %1360 = vmatprep.subr.bf16.mxu0 0
      %1361 = vmatpush1.bf16.msra.mxu0 %v1324
      %1362 = vmatprep.subr.bf16.mxu0 0
      %1363 = vmatpush1.bf16.msra.mxu0 %v1325
      %1364 = vmatprep.subr.bf16.mxu0 0
      %1365 = vmatpush1.bf16.msra.mxu0 %v1326
      %1366 = vmatprep.subr.bf16.mxu0 0
      %1367 = vmatpush1.bf16.msra.mxu0 %v1327
      %1368 = vmatprep.subr.bf16.mxu0 0
      %1369 = vmatpush1.bf16.msra.mxu0 %v1328
      %1370 = vmatprep.subr.bf16.mxu0 0
      %1371 = vmatpush1.bf16.msra.mxu0 %v1329
      %1372 = vmatprep.subr.bf16.mxu0 0
      %1373 = vmatpush1.bf16.msra.mxu0 %v1330
      %1374 = vmatprep.subr.bf16.mxu0 0
      %1375 = vmatpush1.bf16.msra.mxu0 %v1331
      %1376 = vmatprep.subr.bf16.mxu0 0
      %1377 = vmatpush1.bf16.msra.mxu0 %v1332
      %1378 = vmatprep.subr.bf16.mxu0 0
      %1379 = vmatpush1.bf16.msra.mxu0 %v1333
      %1380 = vmatprep.subr.bf16.mxu0 0
      %1381 = vmatpush1.bf16.msra.mxu0 %v1334
      %1382 = vmatprep.subr.bf16.mxu0 0
      %1383 = vmatpush1.bf16.msra.mxu0 %v1335
      %1384 = vmatprep.mubr.bf16.mxu0 %v1221
      %1385 = vmatmul.mubr.bf16.gmra.mrb[0].mxu0 %v1220
      %v1386 = vpop.f32.mrb[0].mxu0
      %v1387 = vadd.f32 0.0, %v1386
      %v1388 = vpop.f32.mrb[0].mxu0
      %v1389 = vpop.f32.mrb[0].mxu0
      %v1390 = vpop.f32.mrb[0].mxu0
      %1391 = vdwg.mxu0
      %1392 = vmatprep.subr.bf16.mxu0 0
      %1393 = vmatpush1.bf16.msra.mxu0 %v1320
      %1394 = vmatprep.subr.bf16.mxu0 0
      %1395 = vmatpush1.bf16.msra.mxu0 %v1321
      %1396 = vmatprep.subr.bf16.mxu0 0
      %1397 = vmatpush1.bf16.msra.mxu0 %v1322
      %1398 = vmatprep.subr.bf16.mxu0 0
      %1399 = vmatpush1.bf16.msra.mxu0 %v1323
      %1400 = vmatprep.subr.bf16.mxu0 0
      %1401 = vmatpush1.bf16.msra.mxu0 %v1324
      %1402 = vmatprep.subr.bf16.mxu0 0
      %1403 = vmatpush1.bf16.msra.mxu0 %v1325
      %1404 = vmatprep.subr.bf16.mxu0 0
      %1405 = vmatpush1.bf16.msra.mxu0 %v1326
      %1406 = vmatprep.subr.bf16.mxu0 0
      %1407 = vmatpush1.bf16.msra.mxu0 %v1327
      %1408 = vmatprep.subr.bf16.mxu0 0
      %1409 = vmatpush1.bf16.msra.mxu0 %v1328
      %1410 = vmatprep.subr.bf16.mxu0 0
      %1411 = vmatpush1.bf16.msra.mxu0 %v1329
      %1412 = vmatprep.subr.bf16.mxu0 0
      %1413 = vmatpush1.bf16.msra.mxu0 %v1330
      %1414 = vmatprep.subr.bf16.mxu0 0
      %1415 = vmatpush1.bf16.msra.mxu0 %v1331
      %1416 = vmatprep.subr.bf16.mxu0 0
      %1417 = vmatpush1.bf16.msra.mxu0 %v1332
      %1418 = vmatprep.subr.bf16.mxu0 0
      %1419 = vmatpush1.bf16.msra.mxu0 %v1333
      %1420 = vmatprep.subr.bf16.mxu0 0
      %1421 = vmatpush1.bf16.msra.mxu0 %v1334
      %1422 = vmatprep.subr.bf16.mxu0 0
      %1423 = vmatpush1.bf16.msra.mxu0 %v1335
      %1424 = vmatprep.mubr.bf16.mxu0 %v1223
      %1425 = vmatmul.mubr.bf16.gmra.mrb[0].mxu0 %v1222
      %v1426 = vpop.f32.mrb[0].mxu0
      %v1427 = vadd.f32 0.0, %v1426
      %v1428 = vpop.f32.mrb[0].mxu0
      %v1429 = vpop.f32.mrb[0].mxu0
      %v1430 = vpop.f32.mrb[0].mxu0
      %1431 = vdwg.mxu0
      %1433 = vrot.lane.b32.xlu0 %v1427, 64
      %v1434 = vpop.permute.xlu0 %1433
      %vm1436 = vcmask 523264
      %v1437 = vsel %vm1436, %v1387, %v1434
      %1439 = vrot.lane.b32.xlu0 %v1437, 9
      %v1440 = vpop.permute.xlu0 %1439
      %vm1442 = vcmask 72704
      %v1443 = vlaneseq
      %v1444 = vshrl.u32 %v1443, 7
      %v1445 = vsub.s32 0, %v1444
      %v1446 = vrot.slane %v443, %v1445
      %v1447 = vmul.f32 %v1440, %v1446
      %1448 = vrot.lane.b32.xlu0 %v1437, 8
      %v1449 = vpop.permute.xlu0 %1448
      %v1451 = vlaneseq
      %v1452 = vshrl.u32 %v1451, 7
      %v1453 = vsub.s32 0, %v1452
      %v1454 = vrot.slane %v444, %v1453
      %v1455 = vmul.f32 %v1449, %v1454
      %1456 = vrot.lane.b32.xlu0 %v1437, 7
      %v1457 = vpop.permute.xlu0 %1456
      %v1459 = vlaneseq
      %v1460 = vshrl.u32 %v1459, 7
      %v1461 = vsub.s32 0, %v1460
      %v1462 = vrot.slane %v445, %v1461
      %v1463 = vmul.f32 %v1457, %v1462
      %1464 = vrot.lane.b32.xlu0 %v1437, 1
      %v1465 = vpop.permute.xlu0 %1464
      %v1467 = vlaneseq
      %v1468 = vshrl.u32 %v1467, 7
      %v1469 = vsub.s32 0, %v1468
      %v1470 = vrot.slane %v446, %v1469
      %v1471 = vmul.f32 %v1465, %v1470
      %1472 = vrot.lane.b32.xlu0 %v1437, 127
      %v1473 = vpop.permute.xlu0 %1472
      %v1475 = vlaneseq
      %v1476 = vshrl.u32 %v1475, 7
      %v1477 = vsub.s32 0, %v1476
      %v1478 = vrot.slane %v447, %v1477
      %v1479 = vmul.f32 %v1473, %v1478
      %1480 = vrot.lane.b32.xlu0 %v1437, 121
      %v1481 = vpop.permute.xlu0 %1480
      %v1483 = vlaneseq
      %v1484 = vshrl.u32 %v1483, 7
      %v1485 = vsub.s32 0, %v1484
      %v1486 = vrot.slane %v448, %v1485
      %v1487 = vmul.f32 %v1481, %v1486
      %1488 = vrot.lane.b32.xlu0 %v1437, 120
      %v1489 = vpop.permute.xlu0 %1488
      %v1491 = vlaneseq
      %v1492 = vshrl.u32 %v1491, 7
      %v1493 = vsub.s32 0, %v1492
      %v1494 = vrot.slane %v449, %v1493
      %v1495 = vmul.f32 %v1489, %v1494
      %1496 = vrot.lane.b32.xlu0 %v1437, 119
      %v1497 = vpop.permute.xlu0 %1496
      %v1499 = vlaneseq
      %v1500 = vshrl.u32 %v1499, 7
      %v1501 = vsub.s32 0, %v1500
      %v1502 = vrot.slane %v450, %v1501
      %v1503 = vmul.f32 %v1497, %v1502
      %v1504 = vpack.c.bf16 %v1455, %v1447
      %v1505 = vpack.c.bf16 %v1471, %v1463
      %v1506 = vpack.c.bf16 %v1479, %v1437
      %v1507 = vpack.c.bf16 %v1495, %v1487
      %v1508 = vpack.c.bf16 1.0, %v1503
      %v1509 = vld [vmem:[%s3] sm:$0xf]
      %v1510 = vld [vmem:[%s3 + $0x4] sm:$0xf]
      %v1513 = vunpack.c.l.b16 %v1509
      %v1514 = vunpack.c.l.b16 %v1510
      %v1515 = vpack.c.b16 %v1514, %v1513
      %v1517 = vsel %vm820, %v1515, 0
      %v1520 = vand.u32 %v1508, %v827
      %1522 = vmatprep.subr.bf16.mxu0 0
      %1523 = vmatpush1.bf16.msra.mxu0 %v1504
      %1524 = vmatprep.subr.bf16.mxu0 0
      %1525 = vmatpush1.bf16.msra.mxu0 %v1505
      %1526 = vmatprep.subr.bf16.mxu0 0
      %1527 = vmatpush1.bf16.msra.mxu0 %v1506
      %1528 = vmatprep.subr.bf16.mxu0 0
      %1529 = vmatpush1.bf16.msra.mxu0 %v1507
      %1530 = vmatprep.subr.bf16.mxu0 0
      %1531 = vmatpush1.bf16.msra.mxu0 %v1520
      %1532 = vmatprep.subr.bf16.mxu0 0
      %1533 = vmatpush1.bf16.msra.mxu0 0
      %1534 = vmatprep.subr.bf16.mxu0 0
      %1535 = vmatpush1.bf16.msra.mxu0 0
      %1536 = vmatprep.subr.bf16.mxu0 0
      %1537 = vmatpush1.bf16.msra.mxu0 0
      %1538 = vmatprep.subr.bf16.mxu0 0
      %1539 = vmatpush1.bf16.msra.mxu0 0
      %1540 = vmatprep.subr.bf16.mxu0 0
      %1541 = vmatpush1.bf16.msra.mxu0 0
      %1542 = vmatprep.subr.bf16.mxu0 0
      %1543 = vmatpush1.bf16.msra.mxu0 0
      %1544 = vmatprep.subr.bf16.mxu0 0
      %1545 = vmatpush1.bf16.msra.mxu0 0
      %1546 = vmatprep.subr.bf16.mxu0 0
      %1547 = vmatpush1.bf16.msra.mxu0 0
      %1548 = vmatprep.subr.bf16.mxu0 0
      %1549 = vmatpush1.bf16.msra.mxu0 0
      %1550 = vmatprep.subr.bf16.mxu0 0
      %1551 = vmatpush1.bf16.msra.mxu0 0
      %1552 = vmatprep.subr.bf16.mxu0 0
      %1553 = vmatpush1.bf16.msra.mxu0 0
      %1554 = vmatprep.mubr.bf16.mxu0 0
      %1555 = vmatmul.mubr.bf16.gmra.mrb[0].mxu0 %v1517
      %v1556 = vpop.f32.mrb[0].mxu0
      %v1557 = vadd.f32 0.0, %v1556
      %v1558 = vpop.f32.mrb[0].mxu0
      %v1559 = vpop.f32.mrb[0].mxu0
      %v1560 = vadd.f32 0.0, %v1559
      %v1561 = vpop.f32.mrb[0].mxu0
      %1562 = vdwg.mxu0
      %v1563 = vmax.f32 %v1557, 0.0
      %v1564 = vmax.f32 %v1560, 0.0
      %1567 = vrot.lane.b32.xlu0 %v1563, 9
      %v1568 = vpop.permute.xlu0 %1567
      %1569 = vrot.lane.b32.xlu0 %v1564, 9
      %v1570 = vpop.permute.xlu0 %1569
      %v1573 = vmul.f32 %v1568, %v1446
      %v1574 = vmul.f32 %v1570, %v1446
      %1575 = vrot.lane.b32.xlu0 %v1563, 8
      %v1576 = vpop.permute.xlu0 %1575
      %1577 = vrot.lane.b32.xlu0 %v1564, 8
      %v1578 = vpop.permute.xlu0 %1577
      %v1581 = vmul.f32 %v1576, %v1454
      %v1582 = vmul.f32 %v1578, %v1454
      %1583 = vrot.lane.b32.xlu0 %v1563, 7
      %v1584 = vpop.permute.xlu0 %1583
      %1585 = vrot.lane.b32.xlu0 %v1564, 7
      %v1586 = vpop.permute.xlu0 %1585
      %v1589 = vmul.f32 %v1584, %v1462
      %v1590 = vmul.f32 %v1586, %v1462
      %1591 = vrot.lane.b32.xlu0 %v1563, 1
      %v1592 = vpop.permute.xlu0 %1591
      %1593 = vrot.lane.b32.xlu0 %v1564, 1
      %v1594 = vpop.permute.xlu0 %1593
      %v1597 = vmul.f32 %v1592, %v1470
      %v1598 = vmul.f32 %v1594, %v1470
      %1599 = vrot.lane.b32.xlu0 %v1563, 127
      %v1600 = vpop.permute.xlu0 %1599
      %1601 = vrot.lane.b32.xlu0 %v1564, 127
      %v1602 = vpop.permute.xlu0 %1601
      %v1605 = vmul.f32 %v1600, %v1478
      %v1606 = vmul.f32 %v1602, %v1478
      %1607 = vrot.lane.b32.xlu0 %v1563, 121
      %v1608 = vpop.permute.xlu0 %1607
      %1609 = vrot.lane.b32.xlu0 %v1564, 121
      %v1610 = vpop.permute.xlu0 %1609
      %v1613 = vmul.f32 %v1608, %v1486
      %v1614 = vmul.f32 %v1610, %v1486
      %1615 = vrot.lane.b32.xlu0 %v1563, 120
      %v1616 = vpop.permute.xlu0 %1615
      %1617 = vrot.lane.b32.xlu0 %v1564, 120
      %v1618 = vpop.permute.xlu0 %1617
      %v1621 = vmul.f32 %v1616, %v1494
      %v1622 = vmul.f32 %v1618, %v1494
      %1623 = vrot.lane.b32.xlu0 %v1563, 119
      %v1624 = vpop.permute.xlu0 %1623
      %1625 = vrot.lane.b32.xlu0 %v1564, 119
      %v1626 = vpop.permute.xlu0 %1625
      %v1629 = vmul.f32 %v1624, %v1502
      %v1630 = vmul.f32 %v1626, %v1502
      %v1631 = vpack.c.bf16 %v1574, %v1573
      %v1632 = vpack.c.bf16 %v1582, %v1581
      %v1633 = vpack.c.bf16 %v1590, %v1589
      %v1634 = vpack.c.bf16 %v1598, %v1597
      %v1635 = vpack.c.bf16 %v1564, %v1563
      %v1636 = vpack.c.bf16 %v1606, %v1605
      %v1637 = vpack.c.bf16 %v1614, %v1613
      %v1638 = vpack.c.bf16 %v1622, %v1621
      %v1639 = vpack.c.bf16 %v1630, %v1629
      %v1640 = vpack.c.bf16 1.0, 1.0
      %v1641 = vld [vmem:[%s4] sm:$0xff]
      %v1642 = vld [vmem:[%s4 + $0x8] sm:$0xff]
      %v1645 = vunpack.c.l.b16 %v1641
      %v1646 = vunpack.c.h.b16 %v1641
      %v1647 = vunpack.c.l.b16 %v1642
      %v1648 = vunpack.c.h.b16 %v1642
      %v1649 = vpack.c.b16 %v1647, %v1645
      %v1650 = vpack.c.b16 %v1648, %v1646
      %v1653 = vsel %vm464, %v1650, 0
      %vm1655 = vcmask 1040384
      %v1656 = vsel 0, 4294967295, 65535
      %v1657 = vsel %vm1655, %v1656, 0
      %v1659 = vand.u32 %v1640, %v1657
      %1661 = vmatprep.subr.bf16.mxu0 0
      %1662 = vmatpush1.bf16.msra.mxu0 %v1631
      %1663 = vmatprep.subr.bf16.mxu0 0
      %1664 = vmatpush1.bf16.msra.mxu0 %v1632
      %1665 = vmatprep.subr.bf16.mxu0 0
      %1666 = vmatpush1.bf16.msra.mxu0 %v1633
      %1667 = vmatprep.subr.bf16.mxu0 0
      %1668 = vmatpush1.bf16.msra.mxu0 %v1634
      %1669 = vmatprep.subr.bf16.mxu0 0
      %1670 = vmatpush1.bf16.msra.mxu0 %v1635
      %1671 = vmatprep.subr.bf16.mxu0 0
      %1672 = vmatpush1.bf16.msra.mxu0 %v1636
      %1673 = vmatprep.subr.bf16.mxu0 0
      %1674 = vmatpush1.bf16.msra.mxu0 %v1637
      %1675 = vmatprep.subr.bf16.mxu0 0
      %1676 = vmatpush1.bf16.msra.mxu0 %v1638
      %1677 = vmatprep.subr.bf16.mxu0 0
      %1678 = vmatpush1.bf16.msra.mxu0 %v1639
      %1679 = vmatprep.subr.bf16.mxu0 0
      %1680 = vmatpush1.bf16.msra.mxu0 %v1659
      %1681 = vmatprep.subr.bf16.mxu0 0
      %1682 = vmatpush1.bf16.msra.mxu0 0
      %1683 = vmatprep.subr.bf16.mxu0 0
      %1684 = vmatpush1.bf16.msra.mxu0 0
      %1685 = vmatprep.subr.bf16.mxu0 0
      %1686 = vmatpush1.bf16.msra.mxu0 0
      %1687 = vmatprep.subr.bf16.mxu0 0
      %1688 = vmatpush1.bf16.msra.mxu0 0
      %1689 = vmatprep.subr.bf16.mxu0 0
      %1690 = vmatpush1.bf16.msra.mxu0 0
      %1691 = vmatprep.subr.bf16.mxu0 0
      %1692 = vmatpush1.bf16.msra.mxu0 0
      %1693 = vmatprep.mubr.bf16.mxu0 %v1653
      %1694 = vmatmul.mubr.bf16.gmra.mrb[0].mxu0 %v1649
      %v1695 = vpop.f32.mrb[0].mxu0
      %v1696 = vadd.f32 0.0, %v1695
      %v1697 = vpop.f32.mrb[0].mxu0
      %v1698 = vpop.f32.mrb[0].mxu0
      %v1699 = vadd.f32 0.0, %v1698
      %v1700 = vpop.f32.mrb[0].mxu0
      %1701 = vdwg.mxu0
      %v1702 = vmax.f32 %v1696, 0.0
      %v1703 = vmax.f32 %v1699, 0.0
      %v1704 = vpack.c.bf16 %v1703, %v1702
      %v1705 = vld [vmem:[%s11] sm:$0xff]
      %v1706 = vld [vmem:[%s11 + $0x8] sm:$0xff]
      %v1707 = vld [vmem:[%s11 + $0x10] sm:$0xff]
      %v1708 = vld [vmem:[%s11 + $0x18] sm:$0xff]
      %v1709 = vld [vmem:[%s11 + $0x20] sm:$0xff]
      %v1710 = vld [vmem:[%s11 + $0x28] sm:$0xff]
      %v1711 = vld [vmem:[%s11 + $0x30] sm:$0xff]
      %v1712 = vld [vmem:[%s11 + $0x38] sm:$0xff]
      %v1721 = vunpack.c.l.b16 %v1705
      %v1722 = vunpack.c.h.b16 %v1705
      %v1723 = vunpack.c.l.b16 %v1706
      %v1724 = vunpack.c.h.b16 %v1706
      %v1725 = vunpack.c.l.b16 %v1707
      %v1726 = vunpack.c.h.b16 %v1707
      %v1727 = vunpack.c.l.b16 %v1708
      %v1728 = vunpack.c.h.b16 %v1708
      %v1729 = vunpack.c.l.b16 %v1709
      %v1730 = vunpack.c.h.b16 %v1709
      %v1731 = vunpack.c.l.b16 %v1710
      %v1732 = vunpack.c.h.b16 %v1710
      %v1733 = vunpack.c.l.b16 %v1711
      %v1734 = vunpack.c.h.b16 %v1711
      %v1735 = vunpack.c.l.b16 %v1712
      %v1736 = vunpack.c.h.b16 %v1712
      %v1737 = vpack.c.b16 %v1723, %v1721
      %v1738 = vpack.c.b16 %v1724, %v1722
      %v1739 = vpack.c.b16 %v1727, %v1725
      %v1740 = vpack.c.b16 %v1728, %v1726
      %v1741 = vpack.c.b16 %v1731, %v1729
      %v1742 = vpack.c.b16 %v1732, %v1730
      %v1743 = vpack.c.b16 %v1735, %v1733
      %v1744 = vpack.c.b16 %v1736, %v1734
      %v1754 = vsel %vm1436, %v1704, 0
      %1756 = vmatprep.subr.bf16.mxu0 %v1738
      %1757 = vmatpush1.bf16.msra.mxu0 %v1737
      %1758 = vmatprep.subr.bf16.mxu0 %v1740
      %1759 = vmatpush1.bf16.msra.mxu0 %v1739
      %1760 = vmatprep.subr.bf16.mxu0 %v1742
      %1761 = vmatpush1.bf16.msra.mxu0 %v1741
      %1762 = vmatprep.subr.bf16.mxu0 %v1744
      %1763 = vmatpush1.bf16.msra.mxu0 %v1743
      %1764 = vmatprep.subr.bf16.mxu0 0
      %1765 = vmatpush1.bf16.msra.mxu0 0
      %1766 = vmatprep.subr.bf16.mxu0 0
      %1767 = vmatpush1.bf16.msra.mxu0 0
      %1768 = vmatprep.subr.bf16.mxu0 0
      %1769 = vmatpush1.bf16.msra.mxu0 0
      %1770 = vmatprep.subr.bf16.mxu0 0
      %1771 = vmatpush1.bf16.msra.mxu0 0
      %1772 = vmatprep.subr.bf16.mxu0 0
      %1773 = vmatpush1.bf16.msra.mxu0 0
      %1774 = vmatprep.subr.bf16.mxu0 0
      %1775 = vmatpush1.bf16.msra.mxu0 0
      %1776 = vmatprep.subr.bf16.mxu0 0
      %1777 = vmatpush1.bf16.msra.mxu0 0
      %1778 = vmatprep.subr.bf16.mxu0 0
      %1779 = vmatpush1.bf16.msra.mxu0 0
      %1780 = vmatprep.subr.bf16.mxu0 0
      %1781 = vmatpush1.bf16.msra.mxu0 0
      %1782 = vmatprep.subr.bf16.mxu0 0
      %1783 = vmatpush1.bf16.msra.mxu0 0
      %1784 = vmatprep.subr.bf16.mxu0 0
      %1785 = vmatpush1.bf16.msra.mxu0 0
      %1786 = vmatprep.subr.bf16.mxu0 0
      %1787 = vmatpush1.bf16.msra.mxu0 0
      %1788 = vmatprep.mubr.bf16.mxu0 0
      %1789 = vmatmul.mubr.bf16.gmra.mrb[0].mxu0 %v1754
      %v1790 = vpop.f32.mrb[0].mxu0
      %v1791 = vadd.f32 0.0, %v1790
      %v1792 = vpop.f32.mrb[0].mxu0
      %v1793 = vadd.f32 0.0, %v1792
      %v1794 = vpop.f32.mrb[0].mxu0
      %v1795 = vadd.f32 0.0, %v1794
      %v1796 = vpop.f32.mrb[0].mxu0
      %v1797 = vadd.f32 0.0, %v1796
      %1798 = vdwg.mxu0
      %1800 = vrot.lane.b32.xlu0 %v1704, 64
      %v1801 = vpop.permute.xlu0 %1800
      %v1803 = vsel %vm1436, %v1801, 0
      %1805 = vmatprep.subr.bf16.mxu0 %v1738
      %1806 = vmatpush1.bf16.msra.mxu0 %v1737
      %1807 = vmatprep.subr.bf16.mxu0 %v1740
      %1808 = vmatpush1.bf16.msra.mxu0 %v1739
      %1809 = vmatprep.subr.bf16.mxu0 %v1742
      %1810 = vmatpush1.bf16.msra.mxu0 %v1741
      %1811 = vmatprep.subr.bf16.mxu0 %v1744
      %1812 = vmatpush1.bf16.msra.mxu0 %v1743
      %1813 = vmatprep.subr.bf16.mxu0 0
      %1814 = vmatpush1.bf16.msra.mxu0 0
      %1815 = vmatprep.subr.bf16.mxu0 0
      %1816 = vmatpush1.bf16.msra.mxu0 0
      %1817 = vmatprep.subr.bf16.mxu0 0
      %1818 = vmatpush1.bf16.msra.mxu0 0
      %1819 = vmatprep.subr.bf16.mxu0 0
      %1820 = vmatpush1.bf16.msra.mxu0 0
      %1821 = vmatprep.subr.bf16.mxu0 0
      %1822 = vmatpush1.bf16.msra.mxu0 0
      %1823 = vmatprep.subr.bf16.mxu0 0
      %1824 = vmatpush1.bf16.msra.mxu0 0
      %1825 = vmatprep.subr.bf16.mxu0 0
      %1826 = vmatpush1.bf16.msra.mxu0 0
      %1827 = vmatprep.subr.bf16.mxu0 0
      %1828 = vmatpush1.bf16.msra.mxu0 0
      %1829 = vmatprep.subr.bf16.mxu0 0
      %1830 = vmatpush1.bf16.msra.mxu0 0
      %1831 = vmatprep.subr.bf16.mxu0 0
      %1832 = vmatpush1.bf16.msra.mxu0 0
      %1833 = vmatprep.subr.bf16.mxu0 0
      %1834 = vmatpush1.bf16.msra.mxu0 0
      %1835 = vmatprep.subr.bf16.mxu0 0
      %1836 = vmatpush1.bf16.msra.mxu0 0
      %1837 = vmatprep.mubr.bf16.mxu0 0
      %1838 = vmatmul.mubr.bf16.gmra.mrb[0].mxu0 %v1803
      %v1839 = vpop.f32.mrb[0].mxu0
      %v1840 = vadd.f32 0.0, %v1839
      %v1841 = vpop.f32.mrb[0].mxu0
      %v1842 = vadd.f32 0.0, %v1841
      %v1843 = vpop.f32.mrb[0].mxu0
      %v1844 = vadd.f32 0.0, %v1843
      %v1845 = vpop.f32.mrb[0].mxu0
      %v1846 = vadd.f32 0.0, %v1845
      %1847 = vdwg.mxu0
      %1851 = vrot.lane.b32.xlu0 %v1219, 17
      %v1852 = vpop.permute.xlu0 %1851
      %1853 = vrot.lane.b32.xlu0 %v1842, 17
      %v1854 = vpop.permute.xlu0 %1853
      %1855 = vrot.lane.b32.xlu0 %v1846, 17
      %v1856 = vpop.permute.xlu0 %1855
      %1869 = vrot.lane.b32.xlu0 %v1216, 17
      %v1870 = vpop.permute.xlu0 %1869
      %1871 = vrot.lane.b32.xlu0 %v1217, 17
      %v1872 = vpop.permute.xlu0 %1871
      %1873 = vrot.lane.b32.xlu0 %v1218, 17
      %v1874 = vpop.permute.xlu0 %1873
      %1875 = vrot.lane.b32.xlu0 %v1791, 17
      %v1876 = vpop.permute.xlu0 %1875
      %1877 = vrot.lane.b32.xlu0 %v1793, 17
      %v1878 = vpop.permute.xlu0 %1877
      %1879 = vrot.lane.b32.xlu0 %v1840, 17
      %v1880 = vpop.permute.xlu0 %1879
      %1881 = vrot.lane.b32.xlu0 %v1795, 17
      %v1882 = vpop.permute.xlu0 %1881
      %1883 = vrot.lane.b32.xlu0 %v1797, 17
      %v1884 = vpop.permute.xlu0 %1883
      %1885 = vrot.lane.b32.xlu0 %v1844, 17
      %v1886 = vpop.permute.xlu0 %1885
      %v1887 = vsel %vm464, %v1870, %v1872
      %v1888 = vsel %vm464, %v1872, %v1874
      %v1889 = vsel %vm464, %v1874, %v1852
      %v1890 = vsel %vm464, %v1876, %v1878
      %v1891 = vsel %vm464, %v1878, %v1880
      %v1892 = vsel %vm464, %v1880, %v1854
      %v1893 = vsel %vm464, %v1882, %v1884
      %v1894 = vsel %vm464, %v1884, %v1886
      %v1895 = vsel %vm464, %v1886, %v1856
      %v1908 = vsel %vm464, %v1852, %v1870
      %v1909 = vsel %vm464, %v1854, %v1876
      %v1910 = vsel %vm464, %v1856, %v1882
      %v1911 = vmul.f32 %v1908, %v477
      %v1912 = vmul.f32 %v1887, %v481
      %v1913 = vmul.f32 %v1888, %v485
      %v1914 = vmul.f32 %v1889, %v489
      %v1915 = vmul.f32 %v1909, %v477
      %v1916 = vmul.f32 %v1890, %v481
      %v1917 = vmul.f32 %v1891, %v485
      %v1918 = vmul.f32 %v1892, %v489
      %v1919 = vmul.f32 %v1910, %v477
      %v1920 = vmul.f32 %v1893, %v481
      %v1921 = vmul.f32 %v1894, %v485
      %v1922 = vmul.f32 %v1895, %v489
      %1923 = vrot.lane.b32.xlu0 %v1219, 16
      %v1924 = vpop.permute.xlu0 %1923
      %1925 = vrot.lane.b32.xlu0 %v1842, 16
      %v1926 = vpop.permute.xlu0 %1925
      %1927 = vrot.lane.b32.xlu0 %v1846, 16
      %v1928 = vpop.permute.xlu0 %1927
      %1932 = vrot.lane.b32.xlu0 %v1216, 16
      %v1933 = vpop.permute.xlu0 %1932
      %1934 = vrot.lane.b32.xlu0 %v1217, 16
      %v1935 = vpop.permute.xlu0 %1934
      %1936 = vrot.lane.b32.xlu0 %v1218, 16
      %v1937 = vpop.permute.xlu0 %1936
      %1938 = vrot.lane.b32.xlu0 %v1791, 16
      %v1939 = vpop.permute.xlu0 %1938
      %1940 = vrot.lane.b32.xlu0 %v1793, 16
      %v1941 = vpop.permute.xlu0 %1940
      %1942 = vrot.lane.b32.xlu0 %v1840, 16
      %v1943 = vpop.permute.xlu0 %1942
      %1944 = vrot.lane.b32.xlu0 %v1795, 16
      %v1945 = vpop.permute.xlu0 %1944
      %1946 = vrot.lane.b32.xlu0 %v1797, 16
      %v1947 = vpop.permute.xlu0 %1946
      %1948 = vrot.lane.b32.xlu0 %v1844, 16
      %v1949 = vpop.permute.xlu0 %1948
      %v1950 = vsel %vm507, %v1933, %v1935
      %v1951 = vsel %vm507, %v1935, %v1937
      %v1952 = vsel %vm507, %v1937, %v1924
      %v1953 = vsel %vm507, %v1939, %v1941
      %v1954 = vsel %vm507, %v1941, %v1943
      %v1955 = vsel %vm507, %v1943, %v1926
      %v1956 = vsel %vm507, %v1945, %v1947
      %v1957 = vsel %vm507, %v1947, %v1949
      %v1958 = vsel %vm507, %v1949, %v1928
      %v1971 = vsel %vm507, %v1924, %v1933
      %v1972 = vsel %vm507, %v1926, %v1939
      %v1973 = vsel %vm507, %v1928, %v1945
      %v1974 = vmul.f32 %v1971, %v520
      %v1975 = vmul.f32 %v1950, %v524
      %v1976 = vmul.f32 %v1951, %v528
      %v1977 = vmul.f32 %v1952, %v532
      %v1978 = vmul.f32 %v1972, %v520
      %v1979 = vmul.f32 %v1953, %v524
      %v1980 = vmul.f32 %v1954, %v528
      %v1981 = vmul.f32 %v1955, %v532
      %v1982 = vmul.f32 %v1973, %v520
      %v1983 = vmul.f32 %v1956, %v524
      %v1984 = vmul.f32 %v1957, %v528
      %v1985 = vmul.f32 %v1958, %v532
      %1986 = vrot.lane.b32.xlu0 %v1219, 15
      %v1987 = vpop.permute.xlu0 %1986
      %1988 = vrot.lane.b32.xlu0 %v1842, 15
      %v1989 = vpop.permute.xlu0 %1988
      %1990 = vrot.lane.b32.xlu0 %v1846, 15
      %v1991 = vpop.permute.xlu0 %1990
      %1995 = vrot.lane.b32.xlu0 %v1216, 15
      %v1996 = vpop.permute.xlu0 %1995
      %1997 = vrot.lane.b32.xlu0 %v1217, 15
      %v1998 = vpop.permute.xlu0 %1997
      %1999 = vrot.lane.b32.xlu0 %v1218, 15
      %v2000 = vpop.permute.xlu0 %1999
      %2001 = vrot.lane.b32.xlu0 %v1791, 15
      %v2002 = vpop.permute.xlu0 %2001
      %2003 = vrot.lane.b32.xlu0 %v1793, 15
      %v2004 = vpop.permute.xlu0 %2003
      %2005 = vrot.lane.b32.xlu0 %v1840, 15
      %v2006 = vpop.permute.xlu0 %2005
      %2007 = vrot.lane.b32.xlu0 %v1795, 15
      %v2008 = vpop.permute.xlu0 %2007
      %2009 = vrot.lane.b32.xlu0 %v1797, 15
      %v2010 = vpop.permute.xlu0 %2009
      %2011 = vrot.lane.b32.xlu0 %v1844, 15
      %v2012 = vpop.permute.xlu0 %2011
      %v2013 = vsel %vm550, %v1996, %v1998
      %v2014 = vsel %vm550, %v1998, %v2000
      %v2015 = vsel %vm550, %v2000, %v1987
      %v2016 = vsel %vm550, %v2002, %v2004
      %v2017 = vsel %vm550, %v2004, %v2006
      %v2018 = vsel %vm550, %v2006, %v1989
      %v2019 = vsel %vm550, %v2008, %v2010
      %v2020 = vsel %vm550, %v2010, %v2012
      %v2021 = vsel %vm550, %v2012, %v1991
      %v2034 = vsel %vm550, %v1987, %v1996
      %v2035 = vsel %vm550, %v1989, %v2002
      %v2036 = vsel %vm550, %v1991, %v2008
      %v2037 = vmul.f32 %v2034, %v563
      %v2038 = vmul.f32 %v2013, %v567
      %v2039 = vmul.f32 %v2014, %v571
      %v2040 = vmul.f32 %v2015, %v575
      %v2041 = vmul.f32 %v2035, %v563
      %v2042 = vmul.f32 %v2016, %v567
      %v2043 = vmul.f32 %v2017, %v571
      %v2044 = vmul.f32 %v2018, %v575
      %v2045 = vmul.f32 %v2036, %v563
      %v2046 = vmul.f32 %v2019, %v567
      %v2047 = vmul.f32 %v2020, %v571
      %v2048 = vmul.f32 %v2021, %v575
      %2049 = vrot.lane.b32.xlu0 %v1219, 1
      %v2050 = vpop.permute.xlu0 %2049
      %2051 = vrot.lane.b32.xlu0 %v1842, 1
      %v2052 = vpop.permute.xlu0 %2051
      %2053 = vrot.lane.b32.xlu0 %v1846, 1
      %v2054 = vpop.permute.xlu0 %2053
      %2058 = vrot.lane.b32.xlu0 %v1216, 1
      %v2059 = vpop.permute.xlu0 %2058
      %2060 = vrot.lane.b32.xlu0 %v1217, 1
      %v2061 = vpop.permute.xlu0 %2060
      %2062 = vrot.lane.b32.xlu0 %v1218, 1
      %v2063 = vpop.permute.xlu0 %2062
      %2064 = vrot.lane.b32.xlu0 %v1791, 1
      %v2065 = vpop.permute.xlu0 %2064
      %2066 = vrot.lane.b32.xlu0 %v1793, 1
      %v2067 = vpop.permute.xlu0 %2066
      %2068 = vrot.lane.b32.xlu0 %v1840, 1
      %v2069 = vpop.permute.xlu0 %2068
      %2070 = vrot.lane.b32.xlu0 %v1795, 1
      %v2071 = vpop.permute.xlu0 %2070
      %2072 = vrot.lane.b32.xlu0 %v1797, 1
      %v2073 = vpop.permute.xlu0 %2072
      %2074 = vrot.lane.b32.xlu0 %v1844, 1
      %v2075 = vpop.permute.xlu0 %2074
      %v2076 = vsel %vm593, %v2059, %v2061
      %v2077 = vsel %vm593, %v2061, %v2063
      %v2078 = vsel %vm593, %v2063, %v2050
      %v2079 = vsel %vm593, %v2065, %v2067
      %v2080 = vsel %vm593, %v2067, %v2069
      %v2081 = vsel %vm593, %v2069, %v2052
      %v2082 = vsel %vm593, %v2071, %v2073
      %v2083 = vsel %vm593, %v2073, %v2075
      %v2084 = vsel %vm593, %v2075, %v2054
      %v2097 = vsel %vm593, %v2050, %v2059
      %v2098 = vsel %vm593, %v2052, %v2065
      %v2099 = vsel %vm593, %v2054, %v2071
      %v2100 = vmul.f32 %v2097, %v606
      %v2101 = vmul.f32 %v2076, %v610
      %v2102 = vmul.f32 %v2077, %v614
      %v2103 = vmul.f32 %v2078, %v618
      %v2104 = vmul.f32 %v2098, %v606
      %v2105 = vmul.f32 %v2079, %v610
      %v2106 = vmul.f32 %v2080, %v614
      %v2107 = vmul.f32 %v2081, %v618
      %v2108 = vmul.f32 %v2099, %v606
      %v2109 = vmul.f32 %v2082, %v610
      %v2110 = vmul.f32 %v2083, %v614
      %v2111 = vmul.f32 %v2084, %v618
      %2112 = vrot.lane.b32.xlu0 %v1216, 127
      %v2113 = vpop.permute.xlu0 %2112
      %2114 = vrot.lane.b32.xlu0 %v1217, 127
      %v2115 = vpop.permute.xlu0 %2114
      %2116 = vrot.lane.b32.xlu0 %v1218, 127
      %v2117 = vpop.permute.xlu0 %2116
      %2118 = vrot.lane.b32.xlu0 %v1219, 127
      %v2119 = vpop.permute.xlu0 %2118
      %2120 = vrot.lane.b32.xlu0 %v1791, 127
      %v2121 = vpop.permute.xlu0 %2120
      %2122 = vrot.lane.b32.xlu0 %v1793, 127
      %v2123 = vpop.permute.xlu0 %2122
      %2124 = vrot.lane.b32.xlu0 %v1840, 127
      %v2125 = vpop.permute.xlu0 %2124
      %2126 = vrot.lane.b32.xlu0 %v1842, 127
      %v2127 = vpop.permute.xlu0 %2126
      %2128 = vrot.lane.b32.xlu0 %v1795, 127
      %v2129 = vpop.permute.xlu0 %2128
      %2130 = vrot.lane.b32.xlu0 %v1797, 127
      %v2131 = vpop.permute.xlu0 %2130
      %2132 = vrot.lane.b32.xlu0 %v1844, 127
      %v2133 = vpop.permute.xlu0 %2132
      %2134 = vrot.lane.b32.xlu0 %v1846, 127
      %v2135 = vpop.permute.xlu0 %2134
      %v2136 = vsel %vm635, %v2113, %v2115
      %v2137 = vsel %vm635, %v2115, %v2117
      %v2138 = vsel %vm635, %v2117, %v2119
      %v2139 = vsel %vm635, %v2121, %v2123
      %v2140 = vsel %vm635, %v2123, %v2125
      %v2141 = vsel %vm635, %v2125, %v2127
      %v2142 = vsel %vm635, %v2129, %v2131
      %v2143 = vsel %vm635, %v2131, %v2133
      %v2144 = vsel %vm635, %v2133, %v2135
      %v2160 = vsel %vm635, %v2119, %v2113
      %v2161 = vsel %vm635, %v2127, %v2121
      %v2162 = vsel %vm635, %v2135, %v2129
      %v2163 = vmul.f32 %v2136, %v649
      %v2164 = vmul.f32 %v2137, %v653
      %v2165 = vmul.f32 %v2138, %v657
      %v2166 = vmul.f32 %v2160, %v661
      %v2167 = vmul.f32 %v2139, %v649
      %v2168 = vmul.f32 %v2140, %v653
      %v2169 = vmul.f32 %v2141, %v657
      %v2170 = vmul.f32 %v2161, %v661
      %v2171 = vmul.f32 %v2142, %v649
      %v2172 = vmul.f32 %v2143, %v653
      %v2173 = vmul.f32 %v2144, %v657
      %v2174 = vmul.f32 %v2162, %v661
      %2175 = vrot.lane.b32.xlu0 %v1216, 113
      %v2176 = vpop.permute.xlu0 %2175
      %2177 = vrot.lane.b32.xlu0 %v1217, 113
      %v2178 = vpop.permute.xlu0 %2177
      %2179 = vrot.lane.b32.xlu0 %v1218, 113
      %v2180 = vpop.permute.xlu0 %2179
      %2181 = vrot.lane.b32.xlu0 %v1219, 113
      %v2182 = vpop.permute.xlu0 %2181
      %2183 = vrot.lane.b32.xlu0 %v1791, 113
      %v2184 = vpop.permute.xlu0 %2183
      %2185 = vrot.lane.b32.xlu0 %v1793, 113
      %v2186 = vpop.permute.xlu0 %2185
      %2187 = vrot.lane.b32.xlu0 %v1840, 113
      %v2188 = vpop.permute.xlu0 %2187
      %2189 = vrot.lane.b32.xlu0 %v1842, 113
      %v2190 = vpop.permute.xlu0 %2189
      %2191 = vrot.lane.b32.xlu0 %v1795, 113
      %v2192 = vpop.permute.xlu0 %2191
      %2193 = vrot.lane.b32.xlu0 %v1797, 113
      %v2194 = vpop.permute.xlu0 %2193
      %2195 = vrot.lane.b32.xlu0 %v1844, 113
      %v2196 = vpop.permute.xlu0 %2195
      %2197 = vrot.lane.b32.xlu0 %v1846, 113
      %v2198 = vpop.permute.xlu0 %2197
      %v2199 = vsel %vm678, %v2176, %v2178
      %v2200 = vsel %vm678, %v2178, %v2180
      %v2201 = vsel %vm678, %v2180, %v2182
      %v2202 = vsel %vm678, %v2184, %v2186
      %v2203 = vsel %vm678, %v2186, %v2188
      %v2204 = vsel %vm678, %v2188, %v2190
      %v2205 = vsel %vm678, %v2192, %v2194
      %v2206 = vsel %vm678, %v2194, %v2196
      %v2207 = vsel %vm678, %v2196, %v2198
      %v2223 = vsel %vm678, %v2182, %v2176
      %v2224 = vsel %vm678, %v2190, %v2184
      %v2225 = vsel %vm678, %v2198, %v2192
      %v2226 = vmul.f32 %v2199, %v692
      %v2227 = vmul.f32 %v2200, %v696
      %v2228 = vmul.f32 %v2201, %v700
      %v2229 = vmul.f32 %v2223, %v704
      %v2230 = vmul.f32 %v2202, %v692
      %v2231 = vmul.f32 %v2203, %v696
      %v2232 = vmul.f32 %v2204, %v700
      %v2233 = vmul.f32 %v2224, %v704
      %v2234 = vmul.f32 %v2205, %v692
      %v2235 = vmul.f32 %v2206, %v696
      %v2236 = vmul.f32 %v2207, %v700
      %v2237 = vmul.f32 %v2225, %v704
      %2238 = vrot.lane.b32.xlu0 %v1216, 112
      %v2239 = vpop.permute.xlu0 %2238
      %2240 = vrot.lane.b32.xlu0 %v1217, 112
      %v2241 = vpop.permute.xlu0 %2240
      %2242 = vrot.lane.b32.xlu0 %v1218, 112
      %v2243 = vpop.permute.xlu0 %2242
      %2244 = vrot.lane.b32.xlu0 %v1219, 112
      %v2245 = vpop.permute.xlu0 %2244
      %2246 = vrot.lane.b32.xlu0 %v1791, 112
      %v2247 = vpop.permute.xlu0 %2246
      %2248 = vrot.lane.b32.xlu0 %v1793, 112
      %v2249 = vpop.permute.xlu0 %2248
      %2250 = vrot.lane.b32.xlu0 %v1840, 112
      %v2251 = vpop.permute.xlu0 %2250
      %2252 = vrot.lane.b32.xlu0 %v1842, 112
      %v2253 = vpop.permute.xlu0 %2252
      %2254 = vrot.lane.b32.xlu0 %v1795, 112
      %v2255 = vpop.permute.xlu0 %2254
      %2256 = vrot.lane.b32.xlu0 %v1797, 112
      %v2257 = vpop.permute.xlu0 %2256
      %2258 = vrot.lane.b32.xlu0 %v1844, 112
      %v2259 = vpop.permute.xlu0 %2258
      %2260 = vrot.lane.b32.xlu0 %v1846, 112
      %v2261 = vpop.permute.xlu0 %2260
      %v2262 = vsel %vm721, %v2239, %v2241
      %v2263 = vsel %vm721, %v2241, %v2243
      %v2264 = vsel %vm721, %v2243, %v2245
      %v2265 = vsel %vm721, %v2247, %v2249
      %v2266 = vsel %vm721, %v2249, %v2251
      %v2267 = vsel %vm721, %v2251, %v2253
      %v2268 = vsel %vm721, %v2255, %v2257
      %v2269 = vsel %vm721, %v2257, %v2259
      %v2270 = vsel %vm721, %v2259, %v2261
      %v2286 = vsel %vm721, %v2245, %v2239
      %v2287 = vsel %vm721, %v2253, %v2247
      %v2288 = vsel %vm721, %v2261, %v2255
      %v2289 = vmul.f32 %v2262, %v735
      %v2290 = vmul.f32 %v2263, %v739
      %v2291 = vmul.f32 %v2264, %v743
      %v2292 = vmul.f32 %v2286, %v747
      %v2293 = vmul.f32 %v2265, %v735
      %v2294 = vmul.f32 %v2266, %v739
      %v2295 = vmul.f32 %v2267, %v743
      %v2296 = vmul.f32 %v2287, %v747
      %v2297 = vmul.f32 %v2268, %v735
      %v2298 = vmul.f32 %v2269, %v739
      %v2299 = vmul.f32 %v2270, %v743
      %v2300 = vmul.f32 %v2288, %v747
      %2301 = vrot.lane.b32.xlu0 %v1216, 111
      %v2302 = vpop.permute.xlu0 %2301
      %2303 = vrot.lane.b32.xlu0 %v1217, 111
      %v2304 = vpop.permute.xlu0 %2303
      %2305 = vrot.lane.b32.xlu0 %v1218, 111
      %v2306 = vpop.permute.xlu0 %2305
      %2307 = vrot.lane.b32.xlu0 %v1219, 111
      %v2308 = vpop.permute.xlu0 %2307
      %2309 = vrot.lane.b32.xlu0 %v1791, 111
      %v2310 = vpop.permute.xlu0 %2309
      %2311 = vrot.lane.b32.xlu0 %v1793, 111
      %v2312 = vpop.permute.xlu0 %2311
      %2313 = vrot.lane.b32.xlu0 %v1840, 111
      %v2314 = vpop.permute.xlu0 %2313
      %2315 = vrot.lane.b32.xlu0 %v1842, 111
      %v2316 = vpop.permute.xlu0 %2315
      %2317 = vrot.lane.b32.xlu0 %v1795, 111
      %v2318 = vpop.permute.xlu0 %2317
      %2319 = vrot.lane.b32.xlu0 %v1797, 111
      %v2320 = vpop.permute.xlu0 %2319
      %2321 = vrot.lane.b32.xlu0 %v1844, 111
      %v2322 = vpop.permute.xlu0 %2321
      %2323 = vrot.lane.b32.xlu0 %v1846, 111
      %v2324 = vpop.permute.xlu0 %2323
      %v2325 = vsel %vm764, %v2302, %v2304
      %v2326 = vsel %vm764, %v2304, %v2306
      %v2327 = vsel %vm764, %v2306, %v2308
      %v2328 = vsel %vm764, %v2310, %v2312
      %v2329 = vsel %vm764, %v2312, %v2314
      %v2330 = vsel %vm764, %v2314, %v2316
      %v2331 = vsel %vm764, %v2318, %v2320
      %v2332 = vsel %vm764, %v2320, %v2322
      %v2333 = vsel %vm764, %v2322, %v2324
      %v2349 = vsel %vm764, %v2308, %v2302
      %v2350 = vsel %vm764, %v2316, %v2310
      %v2351 = vsel %vm764, %v2324, %v2318
      %v2352 = vmul.f32 %v2325, %v778
      %v2353 = vmul.f32 %v2326, %v782
      %v2354 = vmul.f32 %v2327, %v786
      %v2355 = vmul.f32 %v2349, %v790
      %v2356 = vmul.f32 %v2328, %v778
      %v2357 = vmul.f32 %v2329, %v782
      %v2358 = vmul.f32 %v2330, %v786
      %v2359 = vmul.f32 %v2350, %v790
      %v2360 = vmul.f32 %v2331, %v778
      %v2361 = vmul.f32 %v2332, %v782
      %v2362 = vmul.f32 %v2333, %v786
      %v2363 = vmul.f32 %v2351, %v790
      %v2364 = vpack.c.bf16 %v1915, %v1911
      %v2365 = vpack.c.bf16 %v1916, %v1912
      %v2366 = vpack.c.bf16 %v1917, %v1913
      %v2367 = vpack.c.bf16 %v1918, %v1914
      %v2368 = vpack.c.bf16 %v1974, %v1919
      %v2369 = vpack.c.bf16 %v1975, %v1920
      %v2370 = vpack.c.bf16 %v1976, %v1921
      %v2371 = vpack.c.bf16 %v1977, %v1922
      %v2372 = vpack.c.bf16 %v1982, %v1978
      %v2373 = vpack.c.bf16 %v1983, %v1979
      %v2374 = vpack.c.bf16 %v1984, %v1980
      %v2375 = vpack.c.bf16 %v1985, %v1981
      %v2376 = vpack.c.bf16 %v2041, %v2037
      %v2377 = vpack.c.bf16 %v2042, %v2038
      %v2378 = vpack.c.bf16 %v2043, %v2039
      %v2379 = vpack.c.bf16 %v2044, %v2040
      %v2380 = vpack.c.bf16 %v2100, %v2045
      %v2381 = vpack.c.bf16 %v2101, %v2046
      %v2382 = vpack.c.bf16 %v2102, %v2047
      %v2383 = vpack.c.bf16 %v2103, %v2048
      %v2384 = vpack.c.bf16 %v2108, %v2104
      %v2385 = vpack.c.bf16 %v2109, %v2105
      %v2386 = vpack.c.bf16 %v2110, %v2106
      %v2387 = vpack.c.bf16 %v2111, %v2107
      %v2388 = vpack.c.bf16 %v1791, %v1216
      %v2389 = vpack.c.bf16 %v1793, %v1217
      %v2390 = vpack.c.bf16 %v1840, %v1218
      %v2391 = vpack.c.bf16 %v1842, %v1219
      %v2392 = vpack.c.bf16 %v2163, %v1795
      %v2393 = vpack.c.bf16 %v2164, %v1797
      %v2394 = vpack.c.bf16 %v2165, %v1844
      %v2395 = vpack.c.bf16 %v2166, %v1846
      %v2396 = vpack.c.bf16 %v2171, %v2167
      %v2397 = vpack.c.bf16 %v2172, %v2168
      %v2398 = vpack.c.bf16 %v2173, %v2169
      %v2399 = vpack.c.bf16 %v2174, %v2170
      %v2400 = vpack.c.bf16 %v2230, %v2226
      %v2401 = vpack.c.bf16 %v2231, %v2227
      %v2402 = vpack.c.bf16 %v2232, %v2228
      %v2403 = vpack.c.bf16 %v2233, %v2229
      %v2404 = vpack.c.bf16 %v2289, %v2234
      %v2405 = vpack.c.bf16 %v2290, %v2235
      %v2406 = vpack.c.bf16 %v2291, %v2236
      %v2407 = vpack.c.bf16 %v2292, %v2237
      %v2408 = vpack.c.bf16 %v2297, %v2293
      %v2409 = vpack.c.bf16 %v2298, %v2294
      %v2410 = vpack.c.bf16 %v2299, %v2295
      %v2411 = vpack.c.bf16 %v2300, %v2296
      %v2412 = vpack.c.bf16 %v2356, %v2352
      %v2413 = vpack.c.bf16 %v2357, %v2353
      %v2414 = vpack.c.bf16 %v2358, %v2354
      %v2415 = vpack.c.bf16 %v2359, %v2355
      %v2416 = vpack.c.bf16 1.0, %v2360
      %v2417 = vpack.c.bf16 1.0, %v2361
      %v2418 = vpack.c.bf16 1.0, %v2362
      %v2419 = vpack.c.bf16 1.0, %v2363
      %v2420 = vld [vmem:[%s5] sm:$0xff]
      %v2422 = vunpack.c.l.b16 %v2420
      %v2423 = vunpack.c.h.b16 %v2420
      %v2424 = vpack.c.b16 %v2422, %v2422
      %v2425 = vpack.c.b16 %v2423, %v2423
      %vm2427 = vcmask 728064
      %v2429 = vsel %vm2427, %v2425, 0
      %v2432 = vand.u32 %v2416, %v827
      %v2435 = vand.u32 %v2417, %v827
      %v2438 = vand.u32 %v2418, %v827
      %v2441 = vand.u32 %v2419, %v827
      %2443 = vmatprep.subr.bf16.mxu0 %v2365
      %2444 = vmatpush1.bf16.msra.mxu0 %v2364
      %2445 = vmatprep.subr.bf16.mxu0 %v2369
      %2446 = vmatpush1.bf16.msra.mxu0 %v2368
      %2447 = vmatprep.subr.bf16.mxu0 %v2373
      %2448 = vmatpush1.bf16.msra.mxu0 %v2372
      %2449 = vmatprep.subr.bf16.mxu0 %v2377
      %2450 = vmatpush1.bf16.msra.mxu0 %v2376
      %2451 = vmatprep.subr.bf16.mxu0 %v2381
      %2452 = vmatpush1.bf16.msra.mxu0 %v2380
      %2453 = vmatprep.subr.bf16.mxu0 %v2385
      %2454 = vmatpush1.bf16.msra.mxu0 %v2384
      %2455 = vmatprep.subr.bf16.mxu0 %v2389
      %2456 = vmatpush1.bf16.msra.mxu0 %v2388
      %2457 = vmatprep.subr.bf16.mxu0 %v2393
      %2458 = vmatpush1.bf16.msra.mxu0 %v2392
      %2459 = vmatprep.subr.bf16.mxu0 %v2397
      %2460 = vmatpush1.bf16.msra.mxu0 %v2396
      %2461 = vmatprep.subr.bf16.mxu0 %v2401
      %2462 = vmatpush1.bf16.msra.mxu0 %v2400
      %2463 = vmatprep.subr.bf16.mxu0 %v2405
      %2464 = vmatpush1.bf16.msra.mxu0 %v2404
      %2465 = vmatprep.subr.bf16.mxu0 %v2409
      %2466 = vmatpush1.bf16.msra.mxu0 %v2408
      %2467 = vmatprep.subr.bf16.mxu0 %v2413
      %2468 = vmatpush1.bf16.msra.mxu0 %v2412
      %2469 = vmatprep.subr.bf16.mxu0 %v2435
      %2470 = vmatpush1.bf16.msra.mxu0 %v2432
      %2471 = vmatprep.subr.bf16.mxu0 0
      %2472 = vmatpush1.bf16.msra.mxu0 0
      %2473 = vmatprep.subr.bf16.mxu0 0
      %2474 = vmatpush1.bf16.msra.mxu0 0
      %2475 = vmatprep.mubr.bf16.mxu0 %v2429
      %2476 = vmatmul.mubr.bf16.gmra.mrb[0].mxu0 %v2424
      %v2477 = vpop.f32.mrb[0].mxu0
      %v2478 = vadd.f32 0.0, %v2477
      %v2479 = vpop.f32.mrb[0].mxu0
      %v2480 = vadd.f32 0.0, %v2479
      %v2481 = vpop.f32.mrb[0].mxu0
      %v2482 = vpop.f32.mrb[0].mxu0
      %2483 = vdwg.mxu0
      %2484 = vmatprep.subr.bf16.mxu0 %v2367
      %2485 = vmatpush1.bf16.msra.mxu0 %v2366
      %2486 = vmatprep.subr.bf16.mxu0 %v2371
      %2487 = vmatpush1.bf16.msra.mxu0 %v2370
      %2488 = vmatprep.subr.bf16.mxu0 %v2375
      %2489 = vmatpush1.bf16.msra.mxu0 %v2374
      %2490 = vmatprep.subr.bf16.mxu0 %v2379
      %2491 = vmatpush1.bf16.msra.mxu0 %v2378
      %2492 = vmatprep.subr.bf16.mxu0 %v2383
      %2493 = vmatpush1.bf16.msra.mxu0 %v2382
      %2494 = vmatprep.subr.bf16.mxu0 %v2387
      %2495 = vmatpush1.bf16.msra.mxu0 %v2386
      %2496 = vmatprep.subr.bf16.mxu0 %v2391
      %2497 = vmatpush1.bf16.msra.mxu0 %v2390
      %2498 = vmatprep.subr.bf16.mxu0 %v2395
      %2499 = vmatpush1.bf16.msra.mxu0 %v2394
      %2500 = vmatprep.subr.bf16.mxu0 %v2399
      %2501 = vmatpush1.bf16.msra.mxu0 %v2398
      %2502 = vmatprep.subr.bf16.mxu0 %v2403
      %2503 = vmatpush1.bf16.msra.mxu0 %v2402
      %2504 = vmatprep.subr.bf16.mxu0 %v2407
      %2505 = vmatpush1.bf16.msra.mxu0 %v2406
      %2506 = vmatprep.subr.bf16.mxu0 %v2411
      %2507 = vmatpush1.bf16.msra.mxu0 %v2410
      %2508 = vmatprep.subr.bf16.mxu0 %v2415
      %2509 = vmatpush1.bf16.msra.mxu0 %v2414
      %2510 = vmatprep.subr.bf16.mxu0 %v2441
      %2511 = vmatpush1.bf16.msra.mxu0 %v2438
      %2512 = vmatprep.subr.bf16.mxu0 0
      %2513 = vmatpush1.bf16.msra.mxu0 0
      %2514 = vmatprep.subr.bf16.mxu0 0
      %2515 = vmatpush1.bf16.msra.mxu0 0
      %2516 = vmatprep.mubr.bf16.mxu0 %v2429
      %2517 = vmatmul.mubr.bf16.gmra.mrb[0].mxu0 %v2424
      %v2518 = vpop.f32.mrb[0].mxu0
      %v2519 = vadd.f32 0.0, %v2518
      %v2520 = vpop.f32.mrb[0].mxu0
      %v2521 = vadd.f32 0.0, %v2520
      %v2522 = vpop.f32.mrb[0].mxu0
      %v2523 = vpop.f32.mrb[0].mxu0
      %2524 = vdwg.mxu0
      %v2525 = vmax.f32 %v2478, 0.0
      %v2526 = vmax.f32 %v2480, 0.0
      %v2527 = vmax.f32 %v2519, 0.0
      %v2528 = vmax.f32 %v2521, 0.0
      %2530 = vrot.lane.b32.xlu0 %v2528, 17
      %v2531 = vpop.permute.xlu0 %2530
      %2536 = vrot.lane.b32.xlu0 %v2525, 17
      %v2537 = vpop.permute.xlu0 %2536
      %2538 = vrot.lane.b32.xlu0 %v2526, 17
      %v2539 = vpop.permute.xlu0 %2538
      %2540 = vrot.lane.b32.xlu0 %v2527, 17
      %v2541 = vpop.permute.xlu0 %2540
      %v2542 = vsel %vm464, %v2537, %v2539
      %v2543 = vsel %vm464, %v2539, %v2541
      %v2544 = vsel %vm464, %v2541, %v2531
      %v2549 = vsel %vm464, %v2531, %v2537
      %v2550 = vmul.f32 %v2549, %v477
      %v2551 = vmul.f32 %v2542, %v481
      %v2552 = vmul.f32 %v2543, %v485
      %v2553 = vmul.f32 %v2544, %v489
      %2554 = vrot.lane.b32.xlu0 %v2528, 16
      %v2555 = vpop.permute.xlu0 %2554
      %2557 = vrot.lane.b32.xlu0 %v2525, 16
      %v2558 = vpop.permute.xlu0 %2557
      %2559 = vrot.lane.b32.xlu0 %v2526, 16
      %v2560 = vpop.permute.xlu0 %2559
      %2561 = vrot.lane.b32.xlu0 %v2527, 16
      %v2562 = vpop.permute.xlu0 %2561
      %v2563 = vsel %vm507, %v2558, %v2560
      %v2564 = vsel %vm507, %v2560, %v2562
      %v2565 = vsel %vm507, %v2562, %v2555
      %v2570 = vsel %vm507, %v2555, %v2558
      %v2571 = vmul.f32 %v2570, %v520
      %v2572 = vmul.f32 %v2563, %v524
      %v2573 = vmul.f32 %v2564, %v528
      %v2574 = vmul.f32 %v2565, %v532
      %2575 = vrot.lane.b32.xlu0 %v2528, 15
      %v2576 = vpop.permute.xlu0 %2575
      %2578 = vrot.lane.b32.xlu0 %v2525, 15
      %v2579 = vpop.permute.xlu0 %2578
      %2580 = vrot.lane.b32.xlu0 %v2526, 15
      %v2581 = vpop.permute.xlu0 %2580
      %2582 = vrot.lane.b32.xlu0 %v2527, 15
      %v2583 = vpop.permute.xlu0 %2582
      %v2584 = vsel %vm550, %v2579, %v2581
      %v2585 = vsel %vm550, %v2581, %v2583
      %v2586 = vsel %vm550, %v2583, %v2576
      %v2591 = vsel %vm550, %v2576, %v2579
      %v2592 = vmul.f32 %v2591, %v563
      %v2593 = vmul.f32 %v2584, %v567
      %v2594 = vmul.f32 %v2585, %v571
      %v2595 = vmul.f32 %v2586, %v575
      %2596 = vrot.lane.b32.xlu0 %v2528, 1
      %v2597 = vpop.permute.xlu0 %2596
      %2599 = vrot.lane.b32.xlu0 %v2525, 1
      %v2600 = vpop.permute.xlu0 %2599
      %2601 = vrot.lane.b32.xlu0 %v2526, 1
      %v2602 = vpop.permute.xlu0 %2601
      %2603 = vrot.lane.b32.xlu0 %v2527, 1
      %v2604 = vpop.permute.xlu0 %2603
      %v2605 = vsel %vm593, %v2600, %v2602
      %v2606 = vsel %vm593, %v2602, %v2604
      %v2607 = vsel %vm593, %v2604, %v2597
      %v2612 = vsel %vm593, %v2597, %v2600
      %v2613 = vmul.f32 %v2612, %v606
      %v2614 = vmul.f32 %v2605, %v610
      %v2615 = vmul.f32 %v2606, %v614
      %v2616 = vmul.f32 %v2607, %v618
      %2617 = vrot.lane.b32.xlu0 %v2525, 127
      %v2618 = vpop.permute.xlu0 %2617
      %2619 = vrot.lane.b32.xlu0 %v2526, 127
      %v2620 = vpop.permute.xlu0 %2619
      %2621 = vrot.lane.b32.xlu0 %v2527, 127
      %v2622 = vpop.permute.xlu0 %2621
      %2623 = vrot.lane.b32.xlu0 %v2528, 127
      %v2624 = vpop.permute.xlu0 %2623
      %v2625 = vsel %vm635, %v2618, %v2620
      %v2626 = vsel %vm635, %v2620, %v2622
      %v2627 = vsel %vm635, %v2622, %v2624
      %v2633 = vsel %vm635, %v2624, %v2618
      %v2634 = vmul.f32 %v2625, %v649
      %v2635 = vmul.f32 %v2626, %v653
      %v2636 = vmul.f32 %v2627, %v657
      %v2637 = vmul.f32 %v2633, %v661
      %2638 = vrot.lane.b32.xlu0 %v2525, 113
      %v2639 = vpop.permute.xlu0 %2638
      %2640 = vrot.lane.b32.xlu0 %v2526, 113
      %v2641 = vpop.permute.xlu0 %2640
      %2642 = vrot.lane.b32.xlu0 %v2527, 113
      %v2643 = vpop.permute.xlu0 %2642
      %2644 = vrot.lane.b32.xlu0 %v2528, 113
      %v2645 = vpop.permute.xlu0 %2644
      %v2646 = vsel %vm678, %v2639, %v2641
      %v2647 = vsel %vm678, %v2641, %v2643
      %v2648 = vsel %vm678, %v2643, %v2645
      %v2654 = vsel %vm678, %v2645, %v2639
      %v2655 = vmul.f32 %v2646, %v692
      %v2656 = vmul.f32 %v2647, %v696
      %v2657 = vmul.f32 %v2648, %v700
      %v2658 = vmul.f32 %v2654, %v704
      %2659 = vrot.lane.b32.xlu0 %v2525, 112
      %v2660 = vpop.permute.xlu0 %2659
      %2661 = vrot.lane.b32.xlu0 %v2526, 112
      %v2662 = vpop.permute.xlu0 %2661
      %2663 = vrot.lane.b32.xlu0 %v2527, 112
      %v2664 = vpop.permute.xlu0 %2663
      %2665 = vrot.lane.b32.xlu0 %v2528, 112
      %v2666 = vpop.permute.xlu0 %2665
      %v2667 = vsel %vm721, %v2660, %v2662
      %v2668 = vsel %vm721, %v2662, %v2664
      %v2669 = vsel %vm721, %v2664, %v2666
      %v2675 = vsel %vm721, %v2666, %v2660
      %v2676 = vmul.f32 %v2667, %v735
      %v2677 = vmul.f32 %v2668, %v739
      %v2678 = vmul.f32 %v2669, %v743
      %v2679 = vmul.f32 %v2675, %v747
      %2680 = vrot.lane.b32.xlu0 %v2525, 111
      %v2681 = vpop.permute.xlu0 %2680
      %2682 = vrot.lane.b32.xlu0 %v2526, 111
      %v2683 = vpop.permute.xlu0 %2682
      %2684 = vrot.lane.b32.xlu0 %v2527, 111
      %v2685 = vpop.permute.xlu0 %2684
      %2686 = vrot.lane.b32.xlu0 %v2528, 111
      %v2687 = vpop.permute.xlu0 %2686
      %v2688 = vsel %vm764, %v2681, %v2683
      %v2689 = vsel %vm764, %v2683, %v2685
      %v2690 = vsel %vm764, %v2685, %v2687
      %v2696 = vsel %vm764, %v2687, %v2681
      %v2697 = vmul.f32 %v2688, %v778
      %v2698 = vmul.f32 %v2689, %v782
      %v2699 = vmul.f32 %v2690, %v786
      %v2700 = vmul.f32 %v2696, %v790
      %v2701 = vpack.c.bf16 %v2571, %v2550
      %v2702 = vpack.c.bf16 %v2572, %v2551
      %v2703 = vpack.c.bf16 %v2573, %v2552
      %v2704 = vpack.c.bf16 %v2574, %v2553
      %v2705 = vpack.c.bf16 %v2613, %v2592
      %v2706 = vpack.c.bf16 %v2614, %v2593
      %v2707 = vpack.c.bf16 %v2615, %v2594
      %v2708 = vpack.c.bf16 %v2616, %v2595
      %v2709 = vpack.c.bf16 %v2634, %v2525
      %v2710 = vpack.c.bf16 %v2635, %v2526
      %v2711 = vpack.c.bf16 %v2636, %v2527
      %v2712 = vpack.c.bf16 %v2637, %v2528
      %v2713 = vpack.c.bf16 %v2676, %v2655
      %v2714 = vpack.c.bf16 %v2677, %v2656
      %v2715 = vpack.c.bf16 %v2678, %v2657
      %v2716 = vpack.c.bf16 %v2679, %v2658
      %v2717 = vpack.c.bf16 1.0, %v2697
      %v2718 = vpack.c.bf16 1.0, %v2698
      %v2719 = vpack.c.bf16 1.0, %v2699
      %v2720 = vpack.c.bf16 1.0, %v2700
      %v2721 = vld [vmem:[%s6] sm:$0xf]
      %v2723 = vsel %vm820, %v2721, 0
      %v2726 = vand.u32 %v2717, %v827
      %v2729 = vand.u32 %v2718, %v827
      %v2732 = vand.u32 %v2719, %v827
      %v2735 = vand.u32 %v2720, %v827
      %2737 = vmatprep.subr.bf16.mxu0 %v2702
      %2738 = vmatpush1.bf16.msra.mxu0 %v2701
      %2739 = vmatprep.subr.bf16.mxu0 %v2706
      %2740 = vmatpush1.bf16.msra.mxu0 %v2705
      %2741 = vmatprep.subr.bf16.mxu0 %v2710
      %2742 = vmatpush1.bf16.msra.mxu0 %v2709
      %2743 = vmatprep.subr.bf16.mxu0 %v2714
      %2744 = vmatpush1.bf16.msra.mxu0 %v2713
      %2745 = vmatprep.subr.bf16.mxu0 %v2729
      %2746 = vmatpush1.bf16.msra.mxu0 %v2726
      %2747 = vmatprep.subr.bf16.mxu0 0
      %2748 = vmatpush1.bf16.msra.mxu0 0
      %2749 = vmatprep.subr.bf16.mxu0 0
      %2750 = vmatpush1.bf16.msra.mxu0 0
      %2751 = vmatprep.subr.bf16.mxu0 0
      %2752 = vmatpush1.bf16.msra.mxu0 0
      %2753 = vmatprep.subr.bf16.mxu0 0
      %2754 = vmatpush1.bf16.msra.mxu0 0
      %2755 = vmatprep.subr.bf16.mxu0 0
      %2756 = vmatpush1.bf16.msra.mxu0 0
      %2757 = vmatprep.subr.bf16.mxu0 0
      %2758 = vmatpush1.bf16.msra.mxu0 0
      %2759 = vmatprep.subr.bf16.mxu0 0
      %2760 = vmatpush1.bf16.msra.mxu0 0
      %2761 = vmatprep.subr.bf16.mxu0 0
      %2762 = vmatpush1.bf16.msra.mxu0 0
      %2763 = vmatprep.subr.bf16.mxu0 0
      %2764 = vmatpush1.bf16.msra.mxu0 0
      %2765 = vmatprep.subr.bf16.mxu0 0
      %2766 = vmatpush1.bf16.msra.mxu0 0
      %2767 = vmatprep.subr.bf16.mxu0 0
      %2768 = vmatpush1.bf16.msra.mxu0 0
      %2769 = vmatprep.mubr.bf16.mxu0 0
      %2770 = vmatmul.mubr.bf16.gmra.mrb[0].mxu0 %v2723
      %v2771 = vpop.f32.mrb[0].mxu0
      %v2772 = vadd.f32 0.0, %v2771
      %v2773 = vpop.f32.mrb[0].mxu0
      %v2774 = vadd.f32 0.0, %v2773
      %v2775 = vpop.f32.mrb[0].mxu0
      %v2776 = vpop.f32.mrb[0].mxu0
      %2777 = vdwg.mxu0
      %2778 = vmatprep.subr.bf16.mxu0 %v2704
      %2779 = vmatpush1.bf16.msra.mxu0 %v2703
      %2780 = vmatprep.subr.bf16.mxu0 %v2708
      %2781 = vmatpush1.bf16.msra.mxu0 %v2707
      %2782 = vmatprep.subr.bf16.mxu0 %v2712
      %2783 = vmatpush1.bf16.msra.mxu0 %v2711
      %2784 = vmatprep.subr.bf16.mxu0 %v2716
      %2785 = vmatpush1.bf16.msra.mxu0 %v2715
      %2786 = vmatprep.subr.bf16.mxu0 %v2735
      %2787 = vmatpush1.bf16.msra.mxu0 %v2732
      %2788 = vmatprep.subr.bf16.mxu0 0
      %2789 = vmatpush1.bf16.msra.mxu0 0
      %2790 = vmatprep.subr.bf16.mxu0 0
      %2791 = vmatpush1.bf16.msra.mxu0 0
      %2792 = vmatprep.subr.bf16.mxu0 0
      %2793 = vmatpush1.bf16.msra.mxu0 0
      %2794 = vmatprep.subr.bf16.mxu0 0
      %2795 = vmatpush1.bf16.msra.mxu0 0
      %2796 = vmatprep.subr.bf16.mxu0 0
      %2797 = vmatpush1.bf16.msra.mxu0 0
      %2798 = vmatprep.subr.bf16.mxu0 0
      %2799 = vmatpush1.bf16.msra.mxu0 0
      %2800 = vmatprep.subr.bf16.mxu0 0
      %2801 = vmatpush1.bf16.msra.mxu0 0
      %2802 = vmatprep.subr.bf16.mxu0 0
      %2803 = vmatpush1.bf16.msra.mxu0 0
      %2804 = vmatprep.subr.bf16.mxu0 0
      %2805 = vmatpush1.bf16.msra.mxu0 0
      %2806 = vmatprep.subr.bf16.mxu0 0
      %2807 = vmatpush1.bf16.msra.mxu0 0
      %2808 = vmatprep.subr.bf16.mxu0 0
      %2809 = vmatpush1.bf16.msra.mxu0 0
      %2810 = vmatprep.mubr.bf16.mxu0 0
      %2811 = vmatmul.mubr.bf16.gmra.mrb[0].mxu0 %v2723
      %v2812 = vpop.f32.mrb[0].mxu0
      %v2813 = vadd.f32 0.0, %v2812
      %v2814 = vpop.f32.mrb[0].mxu0
      %v2815 = vadd.f32 0.0, %v2814
      %v2816 = vpop.f32.mrb[0].mxu0
      %v2817 = vpop.f32.mrb[0].mxu0
      %2818 = vdwg.mxu0
      %v2819 = vmax.f32 %v2772, 0.0
      %v2820 = vmax.f32 %v2774, 0.0
      %v2821 = vmax.f32 %v2813, 0.0
      %v2822 = vmax.f32 %v2815, 0.0
      %v2823 = vpack.c.bf16 1.0, %v2819
      %v2824 = vpack.c.bf16 1.0, %v2820
      %v2825 = vpack.c.bf16 1.0, %v2821
      %v2826 = vpack.c.bf16 1.0, %v2822
      %v2827 = vld [vmem:[%s7] sm:$0xf]
      %v2829 = vsel %vm1442, %v2827, 0
      %v2832 = vand.u32 %v2823, %v827
      %v2835 = vand.u32 %v2824, %v827
      %v2838 = vand.u32 %v2825, %v827
      %v2841 = vand.u32 %v2826, %v827
      %2843 = vmatprep.subr.bf16.mxu0 %v2835
      %2844 = vmatpush1.bf16.msra.mxu0 %v2832
      %2845 = vmatprep.subr.bf16.mxu0 0
      %2846 = vmatpush1.bf16.msra.mxu0 0
      %2847 = vmatprep.subr.bf16.mxu0 0
      %2848 = vmatpush1.bf16.msra.mxu0 0
      %2849 = vmatprep.subr.bf16.mxu0 0
      %2850 = vmatpush1.bf16.msra.mxu0 0
      %2851 = vmatprep.subr.bf16.mxu0 0
      %2852 = vmatpush1.bf16.msra.mxu0 0
      %2853 = vmatprep.subr.bf16.mxu0 0
      %2854 = vmatpush1.bf16.msra.mxu0 0
      %2855 = vmatprep.subr.bf16.mxu0 0
      %2856 = vmatpush1.bf16.msra.mxu0 0
      %2857 = vmatprep.subr.bf16.mxu0 0
      %2858 = vmatpush1.bf16.msra.mxu0 0
      %2859 = vmatprep.subr.bf16.mxu0 0
      %2860 = vmatpush1.bf16.msra.mxu0 0
      %2861 = vmatprep.subr.bf16.mxu0 0
      %2862 = vmatpush1.bf16.msra.mxu0 0
      %2863 = vmatprep.subr.bf16.mxu0 0
      %2864 = vmatpush1.bf16.msra.mxu0 0
      %2865 = vmatprep.subr.bf16.mxu0 0
      %2866 = vmatpush1.bf16.msra.mxu0 0
      %2867 = vmatprep.subr.bf16.mxu0 0
      %2868 = vmatpush1.bf16.msra.mxu0 0
      %2869 = vmatprep.subr.bf16.mxu0 0
      %2870 = vmatpush1.bf16.msra.mxu0 0
      %2871 = vmatprep.subr.bf16.mxu0 0
      %2872 = vmatpush1.bf16.msra.mxu0 0
      %2873 = vmatprep.subr.bf16.mxu0 0
      %2874 = vmatpush1.bf16.msra.mxu0 0
      %2875 = vmatprep.mubr.bf16.mxu0 0
      %2876 = vmatmul.mubr.bf16.gmra.mrb[0].mxu0 %v2829
      %v2877 = vpop.f32.mrb[0].mxu0
      %v2878 = vadd.f32 0.0, %v2877
      %v2879 = vpop.f32.mrb[0].mxu0
      %v2880 = vadd.f32 0.0, %v2879
      %v2881 = vpop.f32.mrb[0].mxu0
      %v2882 = vpop.f32.mrb[0].mxu0
      %2883 = vdwg.mxu0
      %2884 = vmatprep.subr.bf16.mxu0 %v2841
      %2885 = vmatpush1.bf16.msra.mxu0 %v2838
      %2886 = vmatprep.subr.bf16.mxu0 0
      %2887 = vmatpush1.bf16.msra.mxu0 0
      %2888 = vmatprep.subr.bf16.mxu0 0
      %2889 = vmatpush1.bf16.msra.mxu0 0
      %2890 = vmatprep.subr.bf16.mxu0 0
      %2891 = vmatpush1.bf16.msra.mxu0 0
      %2892 = vmatprep.subr.bf16.mxu0 0
      %2893 = vmatpush1.bf16.msra.mxu0 0
      %2894 = vmatprep.subr.bf16.mxu0 0
      %2895 = vmatpush1.bf16.msra.mxu0 0
      %2896 = vmatprep.subr.bf16.mxu0 0
      %2897 = vmatpush1.bf16.msra.mxu0 0
      %2898 = vmatprep.subr.bf16.mxu0 0
      %2899 = vmatpush1.bf16.msra.mxu0 0
      %2900 = vmatprep.subr.bf16.mxu0 0
      %2901 = vmatpush1.bf16.msra.mxu0 0
      %2902 = vmatprep.subr.bf16.mxu0 0
      %2903 = vmatpush1.bf16.msra.mxu0 0
      %2904 = vmatprep.subr.bf16.mxu0 0
      %2905 = vmatpush1.bf16.msra.mxu0 0
      %2906 = vmatprep.subr.bf16.mxu0 0
      %2907 = vmatpush1.bf16.msra.mxu0 0
      %2908 = vmatprep.subr.bf16.mxu0 0
      %2909 = vmatpush1.bf16.msra.mxu0 0
      %2910 = vmatprep.subr.bf16.mxu0 0
      %2911 = vmatpush1.bf16.msra.mxu0 0
      %2912 = vmatprep.subr.bf16.mxu0 0
      %2913 = vmatpush1.bf16.msra.mxu0 0
      %2914 = vmatprep.subr.bf16.mxu0 0
      %2915 = vmatpush1.bf16.msra.mxu0 0
      %2916 = vmatprep.mubr.bf16.mxu0 0
      %2917 = vmatmul.mubr.bf16.gmra.mrb[0].mxu0 %v2829
      %v2918 = vpop.f32.mrb[0].mxu0
      %v2919 = vadd.f32 0.0, %v2918
      %v2920 = vpop.f32.mrb[0].mxu0
      %v2921 = vadd.f32 0.0, %v2920
      %v2922 = vpop.f32.mrb[0].mxu0
      %v2923 = vpop.f32.mrb[0].mxu0
      %2924 = vdwg.mxu0
      %2925 = vst [vmem:[%s420] sm:$0xff] %v2878
      %2926 = vst [vmem:[%s420 + $0x8] sm:$0xff] %v2880
      %s2927 = scalar_lea.vmem %s420, 16
      %2928 = vst [vmem:[%s2927] sm:$0xff] %v2919
      %2929 = vst [vmem:[%s2927 + $0x8] sm:$0xff] %v2921
      %s2930 = smul.u32 2, %s23
      %p2931 = scmp.lt.s32.totalorder %s2930, 3
      %s2932 = scalar_select %p2931, %s2930, 3
      %s2933 = smul.addr %s2932, 2
      %s2934 = smul.addr %s2933, 8
      %s2935 = scalar_lea.vmem %s12, %s2934
      // Predicated region
      $region69: #{_forward_impl.1} parent=67 // pred_check
        %p2936 = pneg %p298
      $region70: #{_forward_impl.1} parent=67 // pred_check_branch
        %2938 = sbr.rel (%p2936) target = $region72
      $region71: #{_forward_impl.1} parent=67 // pred_region
        %s2939 = smul.u32 2, %s23
      $region72: #{_forward_impl.1} parent=67 // pred_fallthru
        _
    $region68: #{_forward_impl.1} parent=5 // pred_fallthru
      _
    %p2940 = scmp.le.s32.totalorder 2, %s18
    // Predicated region
    $region73: #{_forward_impl.1} parent=5 // pred_check
      %p2941 = pneg %p2940
    $region74: #{_forward_impl.1} parent=5 // pred_check_branch
      %2943 = sbr.rel (%p2941) target = $region76
    $region75: #{_forward_impl.1} parent=5 // pred_region
      %s2944 = ssub.s32 %s18, 2
      // Predicated region
      $region77: #{_forward_impl.1} parent=75 // pred_check
        %p2945 = pneg %p304
      $region78: #{_forward_impl.1} parent=75 // pred_check_branch
        %2947 = sbr.rel (%p2945) target = $region80
      $region79: #{_forward_impl.1} parent=75 // pred_region
        %s2948 = smul.u32 2, %s24
        %p2949 = scmp.lt.s32.totalorder %s2948, 3
        %s2950 = scalar_select %p2949, %s2948, 3
        %s2951 = smul.addr %s2950, 2
        %s2952 = smul.addr %s2951, 8
        %s2953 = scalar_lea.vmem %s12, %s2952
      $region80: #{_forward_impl.1} parent=75 // pred_fallthru
        _
    $region76: #{_forward_impl.1} parent=5 // pred_fallthru
      _
  $region6: #{_forward_impl.1} parent=0 // loop_footer
    %s22 = sadd.s32 1, %s18
  $region7: #{_forward_impl.1} parent=0 // loop_footer_branch
    %17 = sbr.rel target = $region3
  $region8: #{_forward_impl.1} parent=0 // loop_exit
    _

</llo_original>
